<compile_context>
chip_gen: v6e
topology: v6e:2x2x1
jax: 0.10.0
libtpu: 0.0.40
codegen_flags: <defaults>
</compile_context>

<pallas_src>
import functools
import math

import jax
import jax.numpy as jnp
from jax import lax
from jax.experimental import pallas as pl
from jax.experimental.pallas import tpu as pltpu

LRELU_SLOPE = 0.1
_HALO = 64                       # >= K_pad - stride for every layer (max 42 - 1)
_FIRST_K_ROUND = 16              # layer-0 (Cin=1, K=15) im2col width
_TT_TARGET = 256                 # max output rows per time tile
_ACC_BYTES_CAP = 128 * 1024      # keep the f32 accumulator <= 32 vregs


# ----------------------------------------------------------------------------
# generation-aware defaults
# ----------------------------------------------------------------------------
def _tpu_defaults():
    try:
        kind = jax.devices()[0].device_kind.lower()
    except Exception:  # pragma: no cover - backend not initialized
        kind = ""
    is_v5 = "v5" in kind
    is_v7 = "v7" in kind
    lane_target = 128 if is_v5 else 256   # group-packing output-lane target (MXU N)
    kc_target = 128 if is_v5 else 256     # tap-stacking contraction-depth target (MXU K)
    tn_wide = 128 if is_v5 else 256       # preferred output tile width
    vmem_limit = (48 if is_v7 else 64) * 1024 * 1024
    return lane_target, kc_target, tn_wide, vmem_limit


_LANE_TARGET, _KC_TARGET, _TN_WIDE, _VMEM_LIMIT = _tpu_defaults()


def _round_up(a, m):
    return ((a + m - 1) // m) * m


# ----------------------------------------------------------------------------
# Pallas kernel: one (packed-group, n-tile, batch, time-tile) Conv1d step
# ----------------------------------------------------------------------------
def _conv_kernel(xa_ref, xh_ref, w_ref, b_ref, o_ref, win_ref, *,
                 K_pad, S, stride, tt, Kc, slope):
    """xa_ref : (tin=tt*stride, Kc) main input rows               (bf16)
    xh_ref : (_HALO, Kc) halo rows following the main block       (bf16)
    w_ref  : (K_pad//S, S*Kc, tn) tap-stacked block-diag weights  (bf16)
    b_ref  : (1, tn) bias                                         (f32)
    o_ref  : (tt, tn) output tile                                 (bf16)
    win_ref: (stride, tt + _HALO//stride, Kc) phase-major window scratch
    """
    hpp = _HALO // stride
    # De-interleave the strided window ONCE (`stride` strided reads instead of
    # K strided tap reads); tap k then reads phase k%stride contiguously at
    # phase-row k//stride.
    for p in range(stride):
        if stride == 1:
            xa_p, xh_p = xa_ref[...], xh_ref[...]
        else:
            xa_p = xa_ref[pl.ds(p, tt, stride=stride), :]
            xh_p = xh_ref[pl.ds(p, hpp, stride=stride), :]
        win_ref[p, 0:tt, :] = xa_p
        win_ref[p, tt:tt + hpp, :] = xh_p

    tn = o_ref.shape[-1]
    acc = jnp.zeros((tt, tn), jnp.float32)
    for g in range(K_pad // S):                      # static, unrolled tap-group loop
        parts = []
        for s in range(S):
            k = g * S + s
            parts.append(win_ref[k % stride, pl.ds(k // stride, tt), :])
        xk = parts[0] if S == 1 else jnp.concatenate(parts, axis=-1)
        acc = acc + jnp.dot(xk, w_ref[g], preferred_element_type=jnp.float32)
    acc = acc + b_ref[...]
    if slope is not None:
        acc = jnp.where(acc >= 0.0, acc, acc * slope)
    o_ref[...] = acc.astype(o_ref.dtype)


# ----------------------------------------------------------------------------
# group packing + tap stacking (block-diagonal, generation-aware targets)
# ----------------------------------------------------------------------------
def _pack_geometry(cout, cin, K, groups):
    cout_g = cout // groups
    cin_g = cin // groups
    p = min(groups, max(1, _LANE_TARGET // cout_g))   # groups packed per kernel step
    while groups % p:
        p -= 1
    gp = groups // p
    kc = p * cin_g
    nc = p * cout_g
    s = max(1, min(K, _KC_TARGET // kc))              # tap-stacking factor
    k_pad = _round_up(K, s)
    return dict(P=p, Gp=gp, Kc=kc, Nc=nc, Cin_g=cin_g, Cout_g=cout_g,
                K=K, S=s, K_pad=k_pad, KG=k_pad // s)


def _pack_layer_params(w, b, groups):
    """w: (Cout, Cin//groups, K) f32, b: (Cout,) f32 ->
    wp: (Gp, K_pad//S, S*P*Cin_g, P*Cout_g) bf16  (block-diagonal, tap-stacked)
    bp: (Gp, 1, P*Cout_g) f32
    """
    cout, cin_g, K = w.shape
    cin = cin_g * groups
    geo = _pack_geometry(cout, cin, K, groups)
    P, Gp, cout_g = geo["P"], geo["Gp"], geo["Cout_g"]
    S, K_pad, KG, Kc, Nc = geo["S"], geo["K_pad"], geo["KG"], geo["Kc"], geo["Nc"]
    w4 = jnp.transpose(w.reshape(groups, cout_g, cin_g, K), (0, 3, 2, 1))  # (G,K,ci,co)
    w4 = jnp.pad(w4, ((0, 0), (0, K_pad - K), (0, 0), (0, 0)))             # zero taps
    w5 = w4.reshape(Gp, P, K_pad, cin_g, cout_g)
    eye = jnp.eye(P, dtype=w.dtype)
    wp = jnp.einsum("gpkic,pq->gkpiqc", w5, eye)                           # block-diag
    wp = wp.reshape(Gp, K_pad, Kc, Nc)
    wp = wp.reshape(Gp, KG, S * Kc, Nc).astype(jnp.bfloat16)               # tap-stack
    bp = b.reshape(Gp, 1, Nc).astype(jnp.float32)
    return wp, bp


# ----------------------------------------------------------------------------
# grouped Conv1d (+bias, optional leaky-relu) on channels-last bf16 activations
# ----------------------------------------------------------------------------
def conv1d_layer(x, wp, bp, *, cout, cin, K, stride, pad, groups, slope):
    """x: (B, T, Cin) bf16 -> (B, T_out, Cout) bf16."""
    B, T, cin_x = x.shape
    assert cin_x == cin
    geo = _pack_geometry(cout, cin, K, groups)
    Gp, Kc, Nc = geo["Gp"], geo["Kc"], geo["Nc"]
    S, K_pad, KG = geo["S"], geo["K_pad"], geo["KG"]
    assert K_pad <= _HALO + stride
    T_out = (T + 2 * pad - K) // stride + 1
    assert T_out >= 1

    # ---- lane-dense output-channel tile (256 on v6e/v7x, 128 on v5e) ----
    if Nc % _TN_WIDE == 0:
        tn = _TN_WIDE
    elif Nc % 128 == 0:
        tn = 128
    else:
        tn = Nc
    NN = Nc // tn

    # ---- time tiling: cap tt so the f32 accumulator stays <= 32 vregs ----
    tt_cap = max(64, min(_TT_TARGET, _ACC_BYTES_CAP // (4 * tn)))
    unit = max(8, _HALO // stride)                 # keeps tin a multiple of _HALO
    tt = min(tt_cap, _round_up(T_out, unit))
    NT = pl.cdiv(T_out, tt)
    T_out_pad = NT * tt
    tin = tt * stride
    T_in_pad = NT * tin + _HALO
    right = T_in_pad - T - pad
    assert right >= 0

    xp = jnp.pad(x, ((0, 0), (pad, right), (0, 0)))
    xr = xp.reshape(B, T_in_pad, Gp, Kc)           # packed-group split (free reshape)
    halo_stride = tin // _HALO

    kernel = functools.partial(_conv_kernel, K_pad=K_pad, S=S, stride=stride,
                               tt=tt, Kc=Kc, slope=slope)
    out = pl.pallas_call(
        kernel,
        out_shape=jax.ShapeDtypeStruct((B, T_out_pad, Gp, Nc), jnp.bfloat16),
        # Weight axes OUTERMOST, batch + time inside: each packed-weight block
        # is DMA'd exactly once and stays VMEM-resident while (B, NT) streams.
        grid=(Gp, NN, B, NT),
        in_specs=[
            pl.BlockSpec((None, tin, None, Kc), lambda g, n, b, t: (b, t, g, 0)),
            pl.BlockSpec((None, _HALO, None, Kc),
                         lambda g, n, b, t: (b, (t + 1) * halo_stride, g, 0)),
            pl.BlockSpec((None, KG, S * Kc, tn), lambda g, n, b, t: (g, 0, 0, n)),
            pl.BlockSpec((None, 1, tn), lambda g, n, b, t: (g, 0, n)),
        ],
        out_specs=pl.BlockSpec((None, tt, None, tn),
                               lambda g, n, b, t: (b, t, g, n)),
        scratch_shapes=[pltpu.VMEM((stride, tt + _HALO // stride, Kc), jnp.bfloat16)],
        compiler_params=pltpu.CompilerParams(
            dimension_semantics=("parallel", "parallel", "parallel", "parallel"),
            vmem_limit_bytes=_VMEM_LIMIT),
    )(xr, xr, wp, bp)

    return out.reshape(B, T_out_pad, Gp * Nc)[:, :T_out, :]


# ----------------------------------------------------------------------------
# layer-0 helper: im2col the (B, T, 1) input to a lane-dense 16-wide contraction
# ----------------------------------------------------------------------------
def _im2col_first_layer(x, K, pad, k_round):
    """x: (B, T, 1) -> (B, T_out, k_round), cols[b,t,k] = x[b, t - pad + k, 0]."""
    B, T, _ = x.shape
    T_out = T + 2 * pad - K + 1
    xp = jnp.pad(x[..., 0], ((0, 0), (pad, pad + (k_round - K))))
    return jnp.stack([xp[:, k:k + T_out] for k in range(k_round)], axis=-1)


# ----------------------------------------------------------------------------
# conv_post (1024 -> 1, K=3): plain XLA contraction (1-lane Pallas tile is
# all masked stores for negligible FLOPs)
# ----------------------------------------------------------------------------
def conv_post_apply(x, w, b):
    """x: (B, T, 1024) bf16; w: (1, 1024, 3) f32; b: (1,) f32 -> (B, T, 1) bf16."""
    B, T, _ = x.shape
    xp = jnp.pad(x, ((0, 0), (1, 1), (0, 0))).astype(jnp.float32)
    wf = w.astype(jnp.bfloat16).astype(jnp.float32)[0]   # (1024, 3), matches bf16 weights
    acc = jnp.zeros((B, T), jnp.float32)
    for k in range(3):
        acc = acc + jnp.dot(xp[:, k:k + T, :], wf[:, k])
    return (acc + b[0])[..., None].astype(jnp.bfloat16)


# ----------------------------------------------------------------------------
# AvgPool1d(4, 2, padding=2), count_include_pad=True — plain strided adds (VPU)
# ----------------------------------------------------------------------------
def avg_pool1d_4_2_2(x):
    """x: (B, T, C) channels-last."""
    B, T, C = x.shape
    T_out = T // 2 + 1
    xp = jnp.pad(x, ((0, 0), (2, 2), (0, 0)))
    s = [xp[:, j:j + 2 * T_out:2, :] for j in range(4)]
    return 0.25 * (s[0] + s[1] + s[2] + s[3])


# ----------------------------------------------------------------------------
# DiscriminatorS / MultiScaleDiscriminator
# ----------------------------------------------------------------------------
# (Cout, Cin, K, stride, padding, groups) — the 7 convs; conv_post separate
_DISC_S_SPECS = (
    (128,  1,    15, 1, 7,  1),
    (128,  128,  41, 2, 20, 4),
    (256,  128,  41, 2, 20, 16),
    (512,  256,  41, 4, 20, 16),
    (1024, 512,  41, 4, 20, 16),
    (1024, 1024, 41, 1, 20, 16),
    (1024, 1024, 5,  1, 2,  1),
)
_CONV_POST_SPEC = (1, 1024, 3, 1, 1, 1)


def _init_conv_params(key, cout, cin, k, groups):
    """PyTorch Conv1d default init (uniform +/- 1/sqrt(fan_in)).  weight_norm /
    spectral_norm are training-time re-parameterizations; folded into w here."""
    kw, kb = jax.random.split(key)
    fan_in = (cin // groups) * k
    bound = 1.0 / math.sqrt(fan_in)
    w = jax.random.uniform(kw, (cout, cin // groups, k), jnp.float32, -bound, bound)
    b = jax.random.uniform(kb, (cout,), jnp.float32, -bound, bound)
    return w, b


def _pack_first_layer(w, b):
    """Fold the (128, 1, 15) first conv into a 16-wide im2col contraction."""
    cout, _, k = w.shape
    w_i2c = jnp.pad(jnp.transpose(w, (0, 2, 1)),
                    ((0, 0), (0, _FIRST_K_ROUND - k), (0, 0)))   # (cout, 16, 1)
    return _pack_layer_params(w_i2c, b, 1)


def init_discriminator_s(key):
    keys = jax.random.split(key, len(_DISC_S_SPECS) + 1)
    params = []
    # layer 0 (Cin=1): im2col-folded packed weight
    cout, cin, k, stride, pad, groups = _DISC_S_SPECS[0]
    w, b = _init_conv_params(keys[0], cout, cin, k, groups)
    wp, bp = _pack_first_layer(w, b)
    params.append({"wp": wp, "bp": bp})
    # layers 1..6: block-diagonal, tap-stacked packed weights
    for lkey, (cout, cin, k, stride, pad, groups) in zip(keys[1:-1], _DISC_S_SPECS[1:]):
        w, b = _init_conv_params(lkey, cout, cin, k, groups)
        wp, bp = _pack_layer_params(w, b, groups)
        params.append({"wp": wp, "bp": bp})
    # conv_post: plain dense weight (XLA path)
    cout, cin, k, stride, pad, groups = _CONV_POST_SPEC
    w, b = _init_conv_params(keys[-1], cout, cin, k, groups)
    params.append({"w": w, "b": b})
    return params


def init_multi_scale_discriminator(key):
    return [init_discriminator_s(k) for k in jax.random.split(key, 3)]


def discriminator_s_forward(x, params):
    """x: (B, T, 1) bf16 channels-last.  Returns (flattened scores, fmap list)."""
    fmap = []
    # layer 0: wrapper-side im2col -> lane-dense 16-wide contraction
    cout, cin, k, stride, pad, groups = _DISC_S_SPECS[0]
    cols = _im2col_first_layer(x, k, pad, _FIRST_K_ROUND)
    x = conv1d_layer(cols, params[0]["wp"], params[0]["bp"], cout=cout,
                     cin=_FIRST_K_ROUND, K=1, stride=1, pad=0, groups=1,
                     slope=LRELU_SLOPE)
    fmap.append(x)
    # layers 1..6
    for spec, layer in zip(_DISC_S_SPECS[1:], params[1:len(_DISC_S_SPECS)]):
        cout, cin, k, stride, pad, groups = spec
        x = conv1d_layer(x, layer["wp"], layer["bp"], cout=cout, cin=cin, K=k,
                         stride=stride, pad=pad, groups=groups, slope=LRELU_SLOPE)
        fmap.append(x)
    # conv_post (no activation)
    x = conv_post_apply(x, params[-1]["w"], params[-1]["b"])
    fmap.append(x)
    return x.reshape(x.shape[0], -1), fmap


def multi_scale_discriminator_forward(y, y_hat, msd_params):
    """y, y_hat: (B, 1, T) f32 (PyTorch NCL layout)."""
    B = y.shape[0]
    y = jnp.transpose(y, (0, 2, 1))          # -> channels-last (B, T, 1)
    y_hat = jnp.transpose(y_hat, (0, 2, 1))
    y_d_rs, y_d_gs, fmap_rs, fmap_gs = [], [], [], []
    for i, d_params in enumerate(msd_params):
        if i != 0:
            y = avg_pool1d_4_2_2(y)
            y_hat = avg_pool1d_4_2_2(y_hat)
        # run real + generated through the discriminator in ONE batched pass
        xx = jnp.concatenate([y, y_hat], axis=0).astype(jnp.bfloat16)
        scores, fmap = discriminator_s_forward(xx, d_params)
        y_d_rs.append(scores[:B].astype(jnp.float32))
        y_d_gs.append(scores[B:].astype(jnp.float32))
        fmap_rs.append([f[:B] for f in fmap])
        fmap_gs.append([f[B:] for f in fmap])
    return y_d_rs, y_d_gs, fmap_rs, fmap_gs


# ----------------------------------------------------------------------------
# numerical self-test of the Pallas conv against lax.conv_general_dilated
# ----------------------------------------------------------------------------
def _reference_conv1d(x, w, b, *, stride, pad, groups, slope):
    xf = x.astype(jnp.float32)
    wf = w.astype(jnp.bfloat16).astype(jnp.float32)   # match the kernel's bf16 weights
    out = lax.conv_general_dilated(
        xf, jnp.transpose(wf, (2, 1, 0)), window_strides=(stride,),
        padding=[(pad, pad)], feature_group_count=groups,
        dimension_numbers=("NWC", "WIO", "NWC"),
        precision=lax.Precision.HIGHEST)
    out = out + b[None, None, :]
    if slope is not None:
        out = jnp.where(out >= 0.0, out, out * slope)
    return out


def _self_test(key):
    # layer-0 path: im2col + 16-wide contraction
    key, kx, kw = jax.random.split(key, 3)
    cout, cin, k, stride, pad, groups = _DISC_S_SPECS[0]
    x = jax.random.normal(kx, (2, 48, 1), jnp.float32).astype(jnp.bfloat16)
    w, b = _init_conv_params(kw, cout, cin, k, groups)
    wp, bp = _pack_first_layer(w, b)
    cols = _im2col_first_layer(x, k, pad, _FIRST_K_ROUND)
    got = conv1d_layer(cols, wp, bp, cout=cout, cin=_FIRST_K_ROUND, K=1,
                       stride=1, pad=0, groups=1, slope=LRELU_SLOPE)
    want = _reference_conv1d(x, w, b, stride=stride, pad=pad, groups=groups,
                             slope=LRELU_SLOPE)
    err = float(jnp.max(jnp.abs(got.astype(jnp.float32) - want)))
    assert err < 5e-2, ("layer0", err)

    # grouped / strided / dense layers through the generic kernel
    cases = [(_DISC_S_SPECS[2], 48), (_DISC_S_SPECS[4], 40), (_DISC_S_SPECS[6], 16)]
    for (cout, cin, k, stride, pad, groups), T in cases:
        key, kx, kw = jax.random.split(key, 3)
        x = jax.random.normal(kx, (2, T, cin), jnp.float32).astype(jnp.bfloat16)
        w, b = _init_conv_params(kw, cout, cin, k, groups)
        wp, bp = _pack_layer_params(w, b, groups)
        got = conv1d_layer(x, wp, bp, cout=cout, cin=cin, K=k, stride=stride,
                           pad=pad, groups=groups, slope=LRELU_SLOPE)
        want = _reference_conv1d(x, w, b, stride=stride, pad=pad, groups=groups,
                                 slope=LRELU_SLOPE)
        err = float(jnp.max(jnp.abs(got.astype(jnp.float32) - want)))
        assert err < 5e-2, (cout, cin, k, stride, groups, err)


if __name__ == "__main__":
    key = jax.random.PRNGKey(0)
    key, ky, kyh, kp, kt = jax.random.split(key, 5)

    # verify the conv kernel numerically on real layer configs
    _self_test(kt)

    # small audio-like inputs: (batch=2, channels=1, time=32), PyTorch NCL layout
    B, T = 2, 32
    y = jax.random.normal(ky, (B, 1, T), dtype=jnp.float32)
    y_hat = jax.random.normal(kyh, (B, 1, T), dtype=jnp.float32)
    msd_params = init_multi_scale_discriminator(kp)

    fwd = jax.jit(multi_scale_discriminator_forward)
    y_d_rs, y_d_gs, fmap_rs, fmap_gs = fwd(y, y_hat, msd_params)
    jax.block_until_ready((y_d_rs, y_d_gs, fmap_rs, fmap_gs))

    # structural sanity checks (3 scales, 8 fmap entries each, finite outputs)
    assert len(y_d_rs) == 3 and len(y_d_gs) == 3
    assert len(fmap_rs) == 3 and all(len(f) == 8 for f in fmap_rs)
    assert len(fmap_gs) == 3 and all(len(f) == 8 for f in fmap_gs)
    assert all(v.shape[0] == B for v in y_d_rs + y_d_gs)
    assert all(bool(jnp.all(jnp.isfinite(v))) for v in y_d_rs + y_d_gs)

    print("KERNEL_OK")
</pallas_src>

<mosaic_0001>
module attributes {stable_mosaic.version = 11 : i64} {
  func.func @_conv_kernel(%arg0: i32, %arg1: i32, %arg2: i32, %arg3: i32, %arg4: memref<1x64x1x16xbf16, #tpu.memory_space<vmem>>, %arg5: memref<1x64x1x16xbf16, #tpu.memory_space<vmem>>, %arg6: memref<1x1x16x128xbf16, #tpu.memory_space<vmem>>, %arg7: memref<1x1x128xf32, #tpu.memory_space<vmem>>, %arg8: memref<1x64x1x128xbf16, #tpu.memory_space<vmem>>, %arg9: memref<1x128x16xbf16, #tpu.memory_space<vmem>>) attributes {dimension_semantics = [#tpu.dimension_semantics<parallel>, #tpu.dimension_semantics<parallel>, #tpu.dimension_semantics<parallel>, #tpu.dimension_semantics<parallel>], iteration_bounds = array<i64: 1, 1, 2, 1>, scalar_prefetch = 0 : i64, scratch_operands = 1 : i64, tpu.core_type = #tpu.core_type<tc>, window_params = [{transform_indices = @transform_0, window_bounds = array<i64: 1, 64, 1, 16>}, {transform_indices = @transform_1, window_bounds = array<i64: 1, 64, 1, 16>}, {transform_indices = @transform_2, window_bounds = array<i64: 1, 1, 16, 128>}, {transform_indices = @transform_3, window_bounds = array<i64: 1, 1, 128>}, {transform_indices = @transform_4, window_bounds = array<i64: 1, 64, 1, 128>}]} {
    %c0 = arith.constant 0 : index
    %c0_0 = arith.constant 0 : index
    %c0_1 = arith.constant 0 : index
    %c0_2 = arith.constant 0 : index
    %0 = vector.load %arg4[%c0, %c0_0, %c0_1, %c0_2] : memref<1x64x1x16xbf16, #tpu.memory_space<vmem>>, vector<1x64x1x16xbf16>
    %1 = vector.shape_cast %0 : vector<1x64x1x16xbf16> to vector<64x16xbf16>
    %c0_3 = arith.constant 0 : index
    %c0_4 = arith.constant 0 : index
    %c0_5 = arith.constant 0 : index
    %c0_6 = arith.constant 0 : index
    %2 = vector.load %arg5[%c0_3, %c0_4, %c0_5, %c0_6] : memref<1x64x1x16xbf16, #tpu.memory_space<vmem>>, vector<1x64x1x16xbf16>
    %3 = vector.shape_cast %2 : vector<1x64x1x16xbf16> to vector<64x16xbf16>
    %c0_7 = arith.constant 0 : index
    %c0_8 = arith.constant 0 : index
    %c0_9 = arith.constant 0 : index
    %4 = vector.load %arg9[%c0_7, %c0_8, %c0_9] : memref<1x128x16xbf16, #tpu.memory_space<vmem>>, vector<1x64x16xbf16>
    %5 = vector.shape_cast %4 : vector<1x64x16xbf16> to vector<64x16xbf16>
    %6 = vector.shape_cast %1 : vector<64x16xbf16> to vector<1x64x16xbf16>
    tpu.vector_store %arg9[%c0_7, %c0_8, %c0_9], %6 {strides = array<i32>} : memref<1x128x16xbf16, #tpu.memory_space<vmem>>, vector<1x64x16xbf16>,
    %c0_10 = arith.constant 0 : index
    %c64 = arith.constant 64 : index
    %c0_11 = arith.constant 0 : index
    %7 = vector.load %arg9[%c0_10, %c64, %c0_11] : memref<1x128x16xbf16, #tpu.memory_space<vmem>>, vector<1x64x16xbf16>
    %8 = vector.shape_cast %7 : vector<1x64x16xbf16> to vector<64x16xbf16>
    %9 = vector.shape_cast %3 : vector<64x16xbf16> to vector<1x64x16xbf16>
    tpu.vector_store %arg9[%c0_10, %c64, %c0_11], %9 {strides = array<i32>} : memref<1x128x16xbf16, #tpu.memory_space<vmem>>, vector<1x64x16xbf16>,
    %cst = arith.constant 0.000000e+00 : f32
    %10 = vector.broadcast %cst : f32 to vector<64x128xf32>
    %c0_12 = arith.constant 0 : index
    %c0_13 = arith.constant 0 : index
    %c0_14 = arith.constant 0 : index
    %11 = vector.load %arg9[%c0_12, %c0_13, %c0_14] : memref<1x128x16xbf16, #tpu.memory_space<vmem>>, vector<1x64x16xbf16>
    %12 = vector.shape_cast %11 : vector<1x64x16xbf16> to vector<64x16xbf16>
    %c0_15 = arith.constant 0 : index
    %c0_16 = arith.constant 0 : index
    %c0_17 = arith.constant 0 : index
    %c0_18 = arith.constant 0 : index
    %13 = vector.load %arg6[%c0_15, %c0_16, %c0_17, %c0_18] : memref<1x1x16x128xbf16, #tpu.memory_space<vmem>>, vector<1x1x16x128xbf16>
    %14 = vector.shape_cast %13 : vector<1x1x16x128xbf16> to vector<16x128xbf16>
    %cst_19 = arith.constant dense<0.000000e+00> : vector<64x128xf32>
    %15 = tpu.matmul %12, %14, %cst_19 {dimension_numbers = #tpu.dot_dimension_numbers<[1], [0], [0], [1], [0, 0, 1, 1], [], []>} : vector<64x16xbf16>, vector<16x128xbf16>, vector<64x128xf32> -> vector<64x128xf32>
    %16 = arith.addf %10, %15 : vector<64x128xf32>
    %c0_20 = arith.constant 0 : index
    %c0_21 = arith.constant 0 : index
    %c0_22 = arith.constant 0 : index
    %17 = vector.load %arg7[%c0_20, %c0_21, %c0_22] : memref<1x1x128xf32, #tpu.memory_space<vmem>>, vector<1x1x128xf32>
    %18 = vector.shape_cast %17 : vector<1x1x128xf32> to vector<1x128xf32>
    %19 = vector.broadcast %18 : vector<1x128xf32> to vector<64x128xf32>
    %20 = arith.addf %16, %19 : vector<64x128xf32>
    %cst_23 = arith.constant 0.000000e+00 : f32
    %21 = vector.broadcast %cst_23 : f32 to vector<64x128xf32>
    %22 = arith.cmpf oge, %20, %21 : vector<64x128xf32>
    %cst_24 = arith.constant 1.000000e-01 : f32
    %23 = vector.broadcast %cst_24 : f32 to vector<64x128xf32>
    %24 = arith.mulf %20, %23 : vector<64x128xf32>
    %25 = arith.select %22, %20, %24 : vector<64x128xi1>, vector<64x128xf32>
    %26 = arith.truncf %25 : vector<64x128xf32> to vector<64x128xbf16>
    %c0_25 = arith.constant 0 : index
    %c0_26 = arith.constant 0 : index
    %c0_27 = arith.constant 0 : index
    %c0_28 = arith.constant 0 : index
    %27 = vector.load %arg8[%c0_25, %c0_26, %c0_27, %c0_28] : memref<1x64x1x128xbf16, #tpu.memory_space<vmem>>, vector<1x64x1x128xbf16>
    %28 = vector.shape_cast %27 : vector<1x64x1x128xbf16> to vector<64x128xbf16>
    %29 = vector.shape_cast %26 : vector<64x128xbf16> to vector<1x64x1x128xbf16>
    tpu.vector_store %arg8[%c0_25, %c0_26, %c0_27, %c0_28], %29 {strides = array<i32>} : memref<1x64x1x128xbf16, #tpu.memory_space<vmem>>, vector<1x64x1x128xbf16>,
    return
  }
  func.func @transform_0(%arg0: i32, %arg1: i32, %arg2: i32, %arg3: i32) -> (i32, i32, i32, i32) {
    %c0_i32 = arith.constant 0 : i32
    %c0_i32_0 = arith.constant 0 : i32
    return %arg2, %arg3, %arg0, %c0_i32 : i32, i32, i32, i32
  }
  func.func @transform_1(%arg0: i32, %arg1: i32, %arg2: i32, %arg3: i32) -> (i32, i32, i32, i32) {
    %c1_i32 = arith.constant 1 : i32
    %0 = arith.addi %arg3, %c1_i32 : i32
    %c1_i32_0 = arith.constant 1 : i32
    %1 = arith.muli %0, %c1_i32_0 : i32
    %c0_i32 = arith.constant 0 : i32
    %c0_i32_1 = arith.constant 0 : i32
    return %arg2, %1, %arg0, %c0_i32 : i32, i32, i32, i32
  }
  func.func @transform_2(%arg0: i32, %arg1: i32, %arg2: i32, %arg3: i32) -> (i32, i32, i32, i32) {
    %c0_i32 = arith.constant 0 : i32
    %c0_i32_0 = arith.constant 0 : i32
    %c0_i32_1 = arith.constant 0 : i32
    return %arg0, %c0_i32, %c0_i32_0, %arg1 : i32, i32, i32, i32
  }
  func.func @transform_3(%arg0: i32, %arg1: i32, %arg2: i32, %arg3: i32) -> (i32, i32, i32) {
    %c0_i32 = arith.constant 0 : i32
    %c0_i32_0 = arith.constant 0 : i32
    return %arg0, %c0_i32, %arg1 : i32, i32, i32
  }
  func.func @transform_4(%arg0: i32, %arg1: i32, %arg2: i32, %arg3: i32) -> (i32, i32, i32, i32) {
    %c0_i32 = arith.constant 0 : i32
    return %arg2, %arg3, %arg0, %arg1 : i32, i32, i32, i32
  }
}

</mosaic_0001>

<llo_original>
// kernel: tpu_custom_call.1
$region0: #{tpu_custom_call.1}
  #allocation0 [shape = 'u32[]', space=smem, size = 0x4, offset = 0x4, fixed_abs, tag = 'smem constant byte address 0x4 - core index']
  #allocation1 [shape = 'u32[144,128]{1,0:T(1,128)}', space=vmem, size = 0x12000, scoped, tag = 'internal scratch']
  #allocation2 [shape = 'bf16[1,128,16]{2,1,0:T(8,128)(2,1)}', space=vmem, size = 0x8000, scoped, tag = 'scratch operand']
  %s0 = inlined_call_operand.vmem [shape: bf16[2,128,1,16], index: 0, kind: input, shape index: {}]
  %s1 = inlined_call_operand.vmem [shape: bf16[2,128,1,16], index: 1, kind: input, shape index: {}]
  %s2 = inlined_call_operand.vmem [shape: bf16[1,1,16,128], index: 2, kind: input, shape index: {}]
  %s3 = inlined_call_operand.vmem [shape: f32[1,1,128], index: 3, kind: input, shape index: {}]
  %s4 = inlined_call_operand.vmem [shape: bf16[2,64,1,128], index: 4, kind: output, shape index: {}]
  %s5 = sld [smem:[#allocation0]]
  $region49: #{tpu_custom_call.1} parent=0
    _
  %s7 = ssub.s32 1, %s5
  %s8 = scalar_select 0, %s7, %s5
  loop: start=0, step=1, limit=4
  $region2: #{tpu_custom_call.1} parent=0 // loop_pre_header
    _
  $region3: #{tpu_custom_call.1} parent=0 // loop_header
    %s10 = sphi 0, %s14
    %p11 = scmp.ge.s32.totalorder %s10, 4
    %s17 = sphi 0, %s43
    %s18 = sphi 0, %s39
    %s19 = sphi 0, %s35
    %s20 = sphi 0, %s31
    %s21 = sphi 0, %s17
    %s22 = sphi 0, %s18
    %s23 = sphi 0, %s19
    %s24 = sphi 0, %s20
    %s25 = sphi 0, %s21
    %s26 = sphi 0, %s22
    %s27 = sphi 0, %s23
    %s28 = sphi 0, %s24
    %s50 = sphi 0, %s52
    %s53 = sphi 0, %s50
    %s54 = sphi 0, %s53
    %s70 = sphi 0, %s54
    %s82 = sphi 0, %s84
    %s85 = sphi 0, %s82
    %s86 = sphi 0, %s85
    %s102 = sphi 0, %s86
    %s110 = sphi 0, %s112
    %s113 = sphi 0, %s110
    %s114 = sphi 0, %s113
    %s130 = sphi 0, %s114
    %s138 = sphi 0, %s140
    %s141 = sphi 0, %s138
    %s142 = sphi 0, %s141
    %s158 = sphi 0, %s142
    %s170 = sphi 0, %s172
    %s173 = sphi 0, %s170
    %s174 = sphi 0, %s173
    %s190 = sphi 0, %s174
  $region4: #{tpu_custom_call.1} parent=0 // loop_header_branch
    %13 = sbr.rel (%p11) target = $region8
  $region5: #{tpu_custom_call.1} parent=0 // loop_body
    %s15 = ssub.s32 %s10, 1
    %s16 = ssub.s32 %s10, 2
    %s29 = sadd.s32 1, %s20
    %p30 = scmp.ge.s32.totalorder %s29, 1
    %s31 = scalar_select %p30, 0, %s29
    %s32 = sadd.s32 1, %s19
    %s33 = scalar_select %p30, %s32, %s19
    %p34 = scmp.ge.s32.totalorder %s33, 2
    %s35 = scalar_select %p34, 0, %s33
    %s36 = sadd.s32 1, %s18
    %s37 = scalar_select %p34, %s36, %s18
    %p38 = scmp.ge.s32.totalorder %s37, 1
    %s39 = scalar_select %p38, 0, %s37
    %s40 = sadd.s32 1, %s17
    %s41 = scalar_select %p38, %s40, %s17
    %p42 = scmp.ge.s32.totalorder %s41, 1
    %s43 = scalar_select %p42, 0, %s41
    %s44 = ssub.s32 %s19, %s35
    %s45 = ssub.s32 %s20, %s31
    %s46 = sor.u32 %s44, %s45
    %s47 = ssub.s32 %s17, %s43
    %s48 = sor.u32 %s46, %s47
    %p49 = scmp.eq.s32.totalorder %s48, 0
    %s51 = sadd.s32 %s50, 1
    %s52 = scalar_select %p49, %s50, %s51
    %p55 = pneg %p49
    %p56 = scmp.eq.s32.totalorder %s10, 1
    %p57 = por %p55, %p56
    %p58 = scmp.ne.s32.totalorder %s50, %s53
    %p59 = scmp.eq.s32.totalorder %s10, 0
    %p60 = por %p58, %p59
    %p61 = scmp.ne.s32.totalorder %s50, %s53
    %p62 = scmp.eq.s32.totalorder %s15, 1
    %p63 = por %p61, %p62
    %p64 = scmp.ne.s32.totalorder %s53, %s54
    %p65 = scmp.eq.s32.totalorder %s15, 0
    %p66 = por %p64, %p65
    %p67 = scmp.ne.s32.totalorder %s53, %s54
    %p68 = scmp.eq.s32.totalorder %s16, 1
    %p69 = por %p67, %p68
    %p71 = scmp.ne.s32.totalorder %s54, %s70
    %p72 = scmp.eq.s32.totalorder %s16, 0
    %p73 = por %p71, %p72
    %s74 = sadd.s32 %s20, 1
    %s75 = sadd.s32 %s31, 1
    %s76 = ssub.s32 %s19, %s35
    %s77 = ssub.s32 %s74, %s75
    %s78 = sor.u32 %s76, %s77
    %s79 = ssub.s32 %s17, %s43
    %s80 = sor.u32 %s78, %s79
    %p81 = scmp.eq.s32.totalorder %s80, 0
    %s83 = sadd.s32 %s82, 1
    %s84 = scalar_select %p81, %s82, %s83
    %p87 = pneg %p81
    %p88 = scmp.eq.s32.totalorder %s10, 1
    %p89 = por %p87, %p88
    %p90 = scmp.ne.s32.totalorder %s82, %s85
    %p91 = scmp.eq.s32.totalorder %s10, 0
    %p92 = por %p90, %p91
    %p93 = scmp.ne.s32.totalorder %s82, %s85
    %p94 = scmp.eq.s32.totalorder %s15, 1
    %p95 = por %p93, %p94
    %p96 = scmp.ne.s32.totalorder %s85, %s86
    %p97 = scmp.eq.s32.totalorder %s15, 0
    %p98 = por %p96, %p97
    %p99 = scmp.ne.s32.totalorder %s85, %s86
    %p100 = scmp.eq.s32.totalorder %s16, 1
    %p101 = por %p99, %p100
    %p103 = scmp.ne.s32.totalorder %s86, %s102
    %p104 = scmp.eq.s32.totalorder %s16, 0
    %p105 = por %p103, %p104
    %s106 = ssub.s32 %s17, %s43
    %s107 = ssub.s32 %s18, %s39
    %s108 = sor.u32 %s106, %s107
    %p109 = scmp.eq.s32.totalorder %s108, 0
    %s111 = sadd.s32 %s110, 1
    %s112 = scalar_select %p109, %s110, %s111
    %p115 = pneg %p109
    %p116 = scmp.eq.s32.totalorder %s10, 1
    %p117 = por %p115, %p116
    %p118 = scmp.ne.s32.totalorder %s110, %s113
    %p119 = scmp.eq.s32.totalorder %s10, 0
    %p120 = por %p118, %p119
    %p121 = scmp.ne.s32.totalorder %s110, %s113
    %p122 = scmp.eq.s32.totalorder %s15, 1
    %p123 = por %p121, %p122
    %p124 = scmp.ne.s32.totalorder %s113, %s114
    %p125 = scmp.eq.s32.totalorder %s15, 0
    %p126 = por %p124, %p125
    %p127 = scmp.ne.s32.totalorder %s113, %s114
    %p128 = scmp.eq.s32.totalorder %s16, 1
    %p129 = por %p127, %p128
    %p131 = scmp.ne.s32.totalorder %s114, %s130
    %p132 = scmp.eq.s32.totalorder %s16, 0
    %p133 = por %p131, %p132
    %s134 = ssub.s32 %s17, %s43
    %s135 = ssub.s32 %s18, %s39
    %s136 = sor.u32 %s134, %s135
    %p137 = scmp.eq.s32.totalorder %s136, 0
    %s139 = sadd.s32 %s138, 1
    %s140 = scalar_select %p137, %s138, %s139
    %p143 = pneg %p137
    %p144 = scmp.eq.s32.totalorder %s10, 1
    %p145 = por %p143, %p144
    %p146 = scmp.ne.s32.totalorder %s138, %s141
    %p147 = scmp.eq.s32.totalorder %s10, 0
    %p148 = por %p146, %p147
    %p149 = scmp.ne.s32.totalorder %s138, %s141
    %p150 = scmp.eq.s32.totalorder %s15, 1
    %p151 = por %p149, %p150
    %p152 = scmp.ne.s32.totalorder %s141, %s142
    %p153 = scmp.eq.s32.totalorder %s15, 0
    %p154 = por %p152, %p153
    %p155 = scmp.ne.s32.totalorder %s141, %s142
    %p156 = scmp.eq.s32.totalorder %s16, 1
    %p157 = por %p155, %p156
    %p159 = scmp.ne.s32.totalorder %s142, %s158
    %p160 = scmp.eq.s32.totalorder %s16, 0
    %p161 = por %p159, %p160
    %s162 = ssub.s32 %s19, %s35
    %s163 = ssub.s32 %s20, %s31
    %s164 = sor.u32 %s162, %s163
    %s165 = ssub.s32 %s17, %s43
    %s166 = sor.u32 %s164, %s165
    %s167 = ssub.s32 %s18, %s39
    %s168 = sor.u32 %s166, %s167
    %p169 = scmp.eq.s32.totalorder %s168, 0
    %s171 = sadd.s32 %s170, 1
    %s172 = scalar_select %p169, %s170, %s171
    %p175 = pneg %p169
    %p176 = scmp.eq.s32.totalorder %s10, 1
    %p177 = por %p175, %p176
    %p178 = scmp.ne.s32.totalorder %s170, %s173
    %p179 = scmp.eq.s32.totalorder %s10, 0
    %p180 = por %p178, %p179
    %p181 = scmp.ne.s32.totalorder %s170, %s173
    %p182 = scmp.eq.s32.totalorder %s15, 1
    %p183 = por %p181, %p182
    %p184 = scmp.ne.s32.totalorder %s173, %s174
    %p185 = scmp.eq.s32.totalorder %s15, 0
    %p186 = por %p184, %p185
    %p187 = scmp.ne.s32.totalorder %s173, %s174
    %p188 = scmp.eq.s32.totalorder %s16, 1
    %p189 = por %p187, %p188
    %p191 = scmp.ne.s32.totalorder %s174, %s190
    %p192 = scmp.eq.s32.totalorder %s16, 0
    %p193 = por %p191, %p192
    %p194 = scmp.le.s32.totalorder 1, %s10
    %p195 = scmp.lt.s32.totalorder %s10, 3
    %p196 = pnand %p194, %p195
    %p197 = pneg %p196
    // Predicated region
    $region9: #{tpu_custom_call.1} parent=5 // pred_check
      _
    $region10: #{tpu_custom_call.1} parent=5 // pred_check_branch
      %199 = sbr.rel (%p196) target = $region12
    $region11: #{tpu_custom_call.1} parent=5 // pred_region
      %s200 = ssub.s32 %s10, 1
      // Predicated region
      $region13: #{tpu_custom_call.1} parent=11 // pred_check
        %p201 = pneg %p126
      $region14: #{tpu_custom_call.1} parent=11 // pred_check_branch
        %203 = sbr.rel (%p201) target = $region16
      $region15: #{tpu_custom_call.1} parent=11 // pred_region
        %p204 = scmp.lt.s32.totalorder %s21, 0
        %s205 = scalar_select %p204, %s21, 0
        %p206 = scmp.lt.s32.totalorder %s22, 0
        %s207 = scalar_select %p206, %s22, 0
        %s208 = smul.addr %s205, 2
        %s209 = sadd.s32 %s207, %s208
        %s210 = smul.addr %s209, 4
        %s211 = scalar_lea.vmem %s2, %s210
      $region16: #{tpu_custom_call.1} parent=11 // pred_fallthru
        _
      // Predicated region
      $region17: #{tpu_custom_call.1} parent=11 // pred_check
        %p212 = pneg %p154
      $region18: #{tpu_custom_call.1} parent=11 // pred_check_branch
        %214 = sbr.rel (%p212) target = $region20
      $region19: #{tpu_custom_call.1} parent=11 // pred_region
        %p215 = scmp.lt.s32.totalorder %s21, 0
        %s216 = scalar_select %p215, %s21, 0
        %p217 = scmp.lt.s32.totalorder %s22, 0
        %s218 = scalar_select %p217, %s22, 0
        %s219 = sadd.s32 %s218, %s216
        %s220 = scalar_lea.vmem %s3, %s219
      $region20: #{tpu_custom_call.1} parent=11 // pred_fallthru
        _
    $region12: #{tpu_custom_call.1} parent=5 // pred_fallthru
      _
    %p221 = scmp.lt.s32.totalorder %s10, 2
    // Predicated region
    $region21: #{tpu_custom_call.1} parent=5 // pred_check
      %p222 = pneg %p221
    $region22: #{tpu_custom_call.1} parent=5 // pred_check_branch
      %224 = sbr.rel (%p222) target = $region24
    $region23: #{tpu_custom_call.1} parent=5 // pred_region
      // Predicated region
      $region25: #{tpu_custom_call.1} parent=23 // pred_check
        %p225 = pneg %p60
      $region26: #{tpu_custom_call.1} parent=23 // pred_check_branch
        %227 = sbr.rel (%p225) target = $region28
      $region27: #{tpu_custom_call.1} parent=23 // pred_region
        %s228 = smul.u32 64, %s20
        %p229 = scmp.lt.s32.totalorder %s19, 1
        %s230 = scalar_select %p229, %s19, 1
        %p231 = scmp.lt.s32.totalorder %s228, 127
        %s232 = scalar_select %p231, %s228, 127
        %p233 = scmp.lt.s32.totalorder %s17, 0
        %s234 = scalar_select %p233, %s17, 0
        %s235 = sadd.s32 %s234, %s232
        %s236 = smul.addr %s230, 128
        %s237 = sadd.s32 %s235, %s236
        %s238 = scalar_lea.vmem %s0, %s237
        %s239 = smul.u32 64, %s20
      $region28: #{tpu_custom_call.1} parent=23 // pred_fallthru
        _
      // Predicated region
      $region29: #{tpu_custom_call.1} parent=23 // pred_check
        %p240 = pneg %p92
      $region30: #{tpu_custom_call.1} parent=23 // pred_check_branch
        %242 = sbr.rel (%p240) target = $region32
      $region31: #{tpu_custom_call.1} parent=23 // pred_region
        %s243 = sadd.s32 %s20, 1
        %s244 = smul.u32 64, %s243
        %p245 = scmp.lt.s32.totalorder %s19, 1
        %s246 = scalar_select %p245, %s19, 1
        %p247 = scmp.lt.s32.totalorder %s244, 127
        %s248 = scalar_select %p247, %s244, 127
        %p249 = scmp.lt.s32.totalorder %s17, 0
        %s250 = scalar_select %p249, %s17, 0
        %s251 = sadd.s32 %s250, %s248
        %s252 = smul.addr %s246, 128
        %s253 = sadd.s32 %s251, %s252
        %s254 = scalar_lea.vmem %s1, %s253
        %s255 = sadd.s32 %s20, 1
        %s256 = smul.u32 64, %s255
      $region32: #{tpu_custom_call.1} parent=23 // pred_fallthru
        _
    $region24: #{tpu_custom_call.1} parent=5 // pred_fallthru
      _
    %p257 = scmp.le.s32.totalorder 1, %s10
    %p258 = scmp.lt.s32.totalorder %s10, 3
    %p259 = pnand %p257, %p258
    %p260 = pneg %p259
    // Predicated region
    $region33: #{tpu_custom_call.1} parent=5 // pred_check
      _
    $region34: #{tpu_custom_call.1} parent=5 // pred_check_branch
      %262 = sbr.rel (%p259) target = $region36
    $region35: #{tpu_custom_call.1} parent=5 // pred_region
      %s263 = ssub.s32 %s10, 1
      %s264 = smul.u32 64, %s24
      %p265 = scmp.lt.s32.totalorder %s23, 1
      %s266 = scalar_select %p265, %s23, 1
      %p267 = scmp.lt.s32.totalorder %s264, 127
      %s268 = scalar_select %p267, %s264, 127
      %p269 = scmp.lt.s32.totalorder %s21, 0
      %s270 = scalar_select %p269, %s21, 0
      %s271 = sadd.s32 %s270, %s268
      %s272 = smul.addr %s266, 128
      %s273 = sadd.s32 %s271, %s272
      %s274 = scalar_lea.vmem %s0, %s273
      %p275 = pneg %p66
      %p276 = pneg %p63
      %s277 = sadd.s32 %s24, 1
      %s278 = smul.u32 64, %s277
      %p279 = scmp.lt.s32.totalorder %s23, 1
      %s280 = scalar_select %p279, %s23, 1
      %p281 = scmp.lt.s32.totalorder %s278, 127
      %s282 = scalar_select %p281, %s278, 127
      %p283 = scmp.lt.s32.totalorder %s21, 0
      %s284 = scalar_select %p283, %s21, 0
      %s285 = sadd.s32 %s284, %s282
      %s286 = smul.addr %s280, 128
      %s287 = sadd.s32 %s285, %s286
      %s288 = scalar_lea.vmem %s1, %s287
      %p289 = pneg %p98
      %p290 = pneg %p95
      %p291 = scmp.lt.s32.totalorder %s21, 0
      %s292 = scalar_select %p291, %s21, 0
      %p293 = scmp.lt.s32.totalorder %s22, 0
      %s294 = scalar_select %p293, %s22, 0
      %s295 = smul.addr %s292, 2
      %s296 = sadd.s32 %s294, %s295
      %s297 = smul.addr %s296, 4
      %s298 = scalar_lea.vmem %s2, %s297
      %p299 = pneg %p126
      %p300 = pneg %p123
      %p301 = scmp.lt.s32.totalorder %s21, 0
      %s302 = scalar_select %p301, %s21, 0
      %p303 = scmp.lt.s32.totalorder %s22, 0
      %s304 = scalar_select %p303, %s22, 0
      %s305 = sadd.s32 %s304, %s302
      %s306 = scalar_lea.vmem %s3, %s305
      %p307 = pneg %p154
      %p308 = pneg %p151
      %p309 = pneg %p186
      %p310 = pneg %p183
      %s311 = smul.u32 64, %s24
      %p312 = scmp.lt.s32.totalorder %s23, 1
      %s313 = scalar_select %p312, %s23, 1
      %p314 = scmp.lt.s32.totalorder %s311, 63
      %s315 = scalar_select %p314, %s311, 63
      %p316 = scmp.lt.s32.totalorder %s21, 0
      %s317 = scalar_select %p316, %s21, 0
      %p318 = scmp.lt.s32.totalorder %s22, 0
      %s319 = scalar_select %p318, %s22, 0
      %s320 = sadd.s32 %s319, %s317
      %s321 = sadd.s32 %s320, %s315
      %s322 = smul.addr %s313, 64
      %s323 = sadd.s32 %s321, %s322
      %s324 = scalar_lea.vmem %s4, %s323
      %s325 = smul.u32 64, %s24
      %p326 = scmp.lt.s32.totalorder %s23, 1
      %s327 = scalar_select %p326, %s23, 1
      %p328 = scmp.lt.s32.totalorder %s325, 127
      %s329 = scalar_select %p328, %s325, 127
      %p330 = scmp.lt.s32.totalorder %s21, 0
      %s331 = scalar_select %p330, %s21, 0
      %s332 = sadd.s32 %s331, %s329
      %s333 = smul.addr %s327, 128
      %s334 = sadd.s32 %s332, %s333
      %s335 = scalar_lea.vmem %s0, %s334
      %s336 = smul.u32 64, %s24
      %s337 = sadd.s32 %s24, 1
      %s338 = smul.u32 64, %s337
      %p339 = scmp.lt.s32.totalorder %s23, 1
      %s340 = scalar_select %p339, %s23, 1
      %p341 = scmp.lt.s32.totalorder %s338, 127
      %s342 = scalar_select %p341, %s338, 127
      %p343 = scmp.lt.s32.totalorder %s21, 0
      %s344 = scalar_select %p343, %s21, 0
      %s345 = sadd.s32 %s344, %s342
      %s346 = smul.addr %s340, 128
      %s347 = sadd.s32 %s345, %s346
      %s348 = scalar_lea.vmem %s1, %s347
      %s349 = sadd.s32 %s24, 1
      %s350 = smul.u32 64, %s349
      %p351 = scmp.lt.s32.totalorder %s21, 0
      %s352 = scalar_select %p351, %s21, 0
      %p353 = scmp.lt.s32.totalorder %s22, 0
      %s354 = scalar_select %p353, %s22, 0
      %s355 = smul.addr %s352, 2
      %s356 = sadd.s32 %s354, %s355
      %s357 = smul.addr %s356, 4
      %s358 = scalar_lea.vmem %s2, %s357
      %p359 = scmp.lt.s32.totalorder %s21, 0
      %s360 = scalar_select %p359, %s21, 0
      %p361 = scmp.lt.s32.totalorder %s22, 0
      %s362 = scalar_select %p361, %s22, 0
      %s363 = sadd.s32 %s362, %s360
      %s364 = scalar_lea.vmem %s3, %s363
      %s365 = smul.u32 64, %s24
      %p366 = scmp.lt.s32.totalorder %s23, 1
      %s367 = scalar_select %p366, %s23, 1
      %p368 = scmp.lt.s32.totalorder %s365, 63
      %s369 = scalar_select %p368, %s365, 63
      %p370 = scmp.lt.s32.totalorder %s21, 0
      %s371 = scalar_select %p370, %s21, 0
      %p372 = scmp.lt.s32.totalorder %s22, 0
      %s373 = scalar_select %p372, %s22, 0
      %s374 = sadd.s32 %s373, %s371
      %s375 = sadd.s32 %s374, %s369
      %s376 = smul.addr %s367, 64
      %s377 = sadd.s32 %s375, %s376
      %s378 = scalar_lea.vmem %s4, %s377
      %s379 = smul.u32 64, %s24
      %v381 = vld [vmem:[%s335] sm:$0x1]
      %v382 = vld [vmem:[%s335 + $0x1] sm:$0x1]
      %v383 = vld [vmem:[%s335 + $0x2] sm:$0x1]
      %v384 = vld [vmem:[%s335 + $0x3] sm:$0x1]
      %v385 = vld [vmem:[%s335 + $0x4] sm:$0x1]
      %v386 = vld [vmem:[%s335 + $0x5] sm:$0x1]
      %v387 = vld [vmem:[%s335 + $0x6] sm:$0x1]
      %v388 = vld [vmem:[%s335 + $0x7] sm:$0x1]
      %v389 = vld [vmem:[%s335 + $0x8] sm:$0x1]
      %v390 = vld [vmem:[%s335 + $0x9] sm:$0x1]
      %v391 = vld [vmem:[%s335 + $0xa] sm:$0x1]
      %v392 = vld [vmem:[%s335 + $0xb] sm:$0x1]
      %v393 = vld [vmem:[%s335 + $0xc] sm:$0x1]
      %v394 = vld [vmem:[%s335 + $0xd] sm:$0x1]
      %v395 = vld [vmem:[%s335 + $0xe] sm:$0x1]
      %v396 = vld [vmem:[%s335 + $0xf] sm:$0x1]
      %v397 = vld [vmem:[%s335 + $0x10] sm:$0x1]
      %v398 = vld [vmem:[%s335 + $0x11] sm:$0x1]
      %v399 = vld [vmem:[%s335 + $0x12] sm:$0x1]
      %v400 = vld [vmem:[%s335 + $0x13] sm:$0x1]
      %v401 = vld [vmem:[%s335 + $0x14] sm:$0x1]
      %v402 = vld [vmem:[%s335 + $0x15] sm:$0x1]
      %v403 = vld [vmem:[%s335 + $0x16] sm:$0x1]
      %v404 = vld [vmem:[%s335 + $0x17] sm:$0x1]
      %v405 = vld [vmem:[%s335 + $0x18] sm:$0x1]
      %v406 = vld [vmem:[%s335 + $0x19] sm:$0x1]
      %v407 = vld [vmem:[%s335 + $0x1a] sm:$0x1]
      %v408 = vld [vmem:[%s335 + $0x1b] sm:$0x1]
      %v409 = vld [vmem:[%s335 + $0x1c] sm:$0x1]
      %v410 = vld [vmem:[%s335 + $0x1d] sm:$0x1]
      %v411 = vld [vmem:[%s335 + $0x1e] sm:$0x1]
      %v412 = vld [vmem:[%s335 + $0x1f] sm:$0x1]
      %v413 = vld [vmem:[%s335 + $0x20] sm:$0x1]
      %v414 = vld [vmem:[%s335 + $0x21] sm:$0x1]
      %v415 = vld [vmem:[%s335 + $0x22] sm:$0x1]
      %v416 = vld [vmem:[%s335 + $0x23] sm:$0x1]
      %v417 = vld [vmem:[%s335 + $0x24] sm:$0x1]
      %v418 = vld [vmem:[%s335 + $0x25] sm:$0x1]
      %v419 = vld [vmem:[%s335 + $0x26] sm:$0x1]
      %v420 = vld [vmem:[%s335 + $0x27] sm:$0x1]
      %v421 = vld [vmem:[%s335 + $0x28] sm:$0x1]
      %v422 = vld [vmem:[%s335 + $0x29] sm:$0x1]
      %v423 = vld [vmem:[%s335 + $0x2a] sm:$0x1]
      %v424 = vld [vmem:[%s335 + $0x2b] sm:$0x1]
      %v425 = vld [vmem:[%s335 + $0x2c] sm:$0x1]
      %v426 = vld [vmem:[%s335 + $0x2d] sm:$0x1]
      %v427 = vld [vmem:[%s335 + $0x2e] sm:$0x1]
      %v428 = vld [vmem:[%s335 + $0x2f] sm:$0x1]
      %v429 = vld [vmem:[%s335 + $0x30] sm:$0x1]
      %v430 = vld [vmem:[%s335 + $0x31] sm:$0x1]
      %v431 = vld [vmem:[%s335 + $0x32] sm:$0x1]
      %v432 = vld [vmem:[%s335 + $0x33] sm:$0x1]
      %v433 = vld [vmem:[%s335 + $0x34] sm:$0x1]
      %v434 = vld [vmem:[%s335 + $0x35] sm:$0x1]
      %v435 = vld [vmem:[%s335 + $0x36] sm:$0x1]
      %v436 = vld [vmem:[%s335 + $0x37] sm:$0x1]
      %v437 = vld [vmem:[%s335 + $0x38] sm:$0x1]
      %v438 = vld [vmem:[%s335 + $0x39] sm:$0x1]
      %v439 = vld [vmem:[%s335 + $0x3a] sm:$0x1]
      %v440 = vld [vmem:[%s335 + $0x3b] sm:$0x1]
      %v441 = vld [vmem:[%s335 + $0x3c] sm:$0x1]
      %v442 = vld [vmem:[%s335 + $0x3d] sm:$0x1]
      %v443 = vld [vmem:[%s335 + $0x3e] sm:$0x1]
      %v444 = vld [vmem:[%s335 + $0x3f] sm:$0x1]
      %v445 = vld [vmem:[%s348] sm:$0x1]
      %v446 = vld [vmem:[%s348 + $0x1] sm:$0x1]
      %v447 = vld [vmem:[%s348 + $0x2] sm:$0x1]
      %v448 = vld [vmem:[%s348 + $0x3] sm:$0x1]
      %v449 = vld [vmem:[%s348 + $0x4] sm:$0x1]
      %v450 = vld [vmem:[%s348 + $0x5] sm:$0x1]
      %v451 = vld [vmem:[%s348 + $0x6] sm:$0x1]
      %v452 = vld [vmem:[%s348 + $0x7] sm:$0x1]
      %v453 = vld [vmem:[%s348 + $0x8] sm:$0x1]
      %v454 = vld [vmem:[%s348 + $0x9] sm:$0x1]
      %v455 = vld [vmem:[%s348 + $0xa] sm:$0x1]
      %v456 = vld [vmem:[%s348 + $0xb] sm:$0x1]
      %v457 = vld [vmem:[%s348 + $0xc] sm:$0x1]
      %v458 = vld [vmem:[%s348 + $0xd] sm:$0x1]
      %v459 = vld [vmem:[%s348 + $0xe] sm:$0x1]
      %v460 = vld [vmem:[%s348 + $0xf] sm:$0x1]
      %v461 = vld [vmem:[%s348 + $0x10] sm:$0x1]
      %v462 = vld [vmem:[%s348 + $0x11] sm:$0x1]
      %v463 = vld [vmem:[%s348 + $0x12] sm:$0x1]
      %v464 = vld [vmem:[%s348 + $0x13] sm:$0x1]
      %v465 = vld [vmem:[%s348 + $0x14] sm:$0x1]
      %v466 = vld [vmem:[%s348 + $0x15] sm:$0x1]
      %v467 = vld [vmem:[%s348 + $0x16] sm:$0x1]
      %v468 = vld [vmem:[%s348 + $0x17] sm:$0x1]
      %v469 = vld [vmem:[%s348 + $0x18] sm:$0x1]
      %v470 = vld [vmem:[%s348 + $0x19] sm:$0x1]
      %v471 = vld [vmem:[%s348 + $0x1a] sm:$0x1]
      %v472 = vld [vmem:[%s348 + $0x1b] sm:$0x1]
      %v473 = vld [vmem:[%s348 + $0x1c] sm:$0x1]
      %v474 = vld [vmem:[%s348 + $0x1d] sm:$0x1]
      %v475 = vld [vmem:[%s348 + $0x1e] sm:$0x1]
      %v476 = vld [vmem:[%s348 + $0x1f] sm:$0x1]
      %v477 = vld [vmem:[%s348 + $0x20] sm:$0x1]
      %v478 = vld [vmem:[%s348 + $0x21] sm:$0x1]
      %v479 = vld [vmem:[%s348 + $0x22] sm:$0x1]
      %v480 = vld [vmem:[%s348 + $0x23] sm:$0x1]
      %v481 = vld [vmem:[%s348 + $0x24] sm:$0x1]
      %v482 = vld [vmem:[%s348 + $0x25] sm:$0x1]
      %v483 = vld [vmem:[%s348 + $0x26] sm:$0x1]
      %v484 = vld [vmem:[%s348 + $0x27] sm:$0x1]
      %v485 = vld [vmem:[%s348 + $0x28] sm:$0x1]
      %v486 = vld [vmem:[%s348 + $0x29] sm:$0x1]
      %v487 = vld [vmem:[%s348 + $0x2a] sm:$0x1]
      %v488 = vld [vmem:[%s348 + $0x2b] sm:$0x1]
      %v489 = vld [vmem:[%s348 + $0x2c] sm:$0x1]
      %v490 = vld [vmem:[%s348 + $0x2d] sm:$0x1]
      %v491 = vld [vmem:[%s348 + $0x2e] sm:$0x1]
      %v492 = vld [vmem:[%s348 + $0x2f] sm:$0x1]
      %v493 = vld [vmem:[%s348 + $0x30] sm:$0x1]
      %v494 = vld [vmem:[%s348 + $0x31] sm:$0x1]
      %v495 = vld [vmem:[%s348 + $0x32] sm:$0x1]
      %v496 = vld [vmem:[%s348 + $0x33] sm:$0x1]
      %v497 = vld [vmem:[%s348 + $0x34] sm:$0x1]
      %v498 = vld [vmem:[%s348 + $0x35] sm:$0x1]
      %v499 = vld [vmem:[%s348 + $0x36] sm:$0x1]
      %v500 = vld [vmem:[%s348 + $0x37] sm:$0x1]
      %v501 = vld [vmem:[%s348 + $0x38] sm:$0x1]
      %v502 = vld [vmem:[%s348 + $0x39] sm:$0x1]
      %v503 = vld [vmem:[%s348 + $0x3a] sm:$0x1]
      %v504 = vld [vmem:[%s348 + $0x3b] sm:$0x1]
      %v505 = vld [vmem:[%s348 + $0x3c] sm:$0x1]
      %v506 = vld [vmem:[%s348 + $0x3d] sm:$0x1]
      %v507 = vld [vmem:[%s348 + $0x3e] sm:$0x1]
      %v508 = vld [vmem:[%s348 + $0x3f] sm:$0x1]
      %v574 = vunpack.c.l.s4 1935823168
      %v575 = vunpack.c.0.s8 %v574
      %v576 = vlaneseq
      %v577 = vshrl.u32 %v576, 7
      %v578 = vsub.s32 %v575, %v577
      %v579 = vrot.slane %v381, %v578
      %v581 = vunpack.c.l.s4 1935823168
      %v582 = vunpack.c.0.s8 %v581
      %v583 = vlaneseq
      %v584 = vshrl.u32 %v583, 7
      %v585 = vsub.s32 %v582, %v584
      %v586 = vrot.slane %v579, %v585
      %v588 = vunpack.c.l.s4 1935823168
      %v589 = vunpack.c.0.s8 %v588
      %v590 = vlaneseq
      %v591 = vshrl.u32 %v590, 7
      %v592 = vsub.s32 %v589, %v591
      %v593 = vrot.slane %v382, %v592
      %v595 = vunpack.c.l.s4 1935823168
      %v596 = vunpack.c.0.s8 %v595
      %v597 = vlaneseq
      %v598 = vshrl.u32 %v597, 7
      %v599 = vsub.s32 %v596, %v598
      %v600 = vrot.slane %v593, %v599
      %v602 = vunpack.c.l.s4 1935823168
      %v603 = vunpack.c.0.s8 %v602
      %v604 = vlaneseq
      %v605 = vshrl.u32 %v604, 7
      %v606 = vsub.s32 %v603, %v605
      %v607 = vrot.slane %v383, %v606
      %v609 = vunpack.c.l.s4 1935823168
      %v610 = vunpack.c.0.s8 %v609
      %v611 = vlaneseq
      %v612 = vshrl.u32 %v611, 7
      %v613 = vsub.s32 %v610, %v612
      %v614 = vrot.slane %v607, %v613
      %v616 = vunpack.c.l.s4 1935823168
      %v617 = vunpack.c.0.s8 %v616
      %v618 = vlaneseq
      %v619 = vshrl.u32 %v618, 7
      %v620 = vsub.s32 %v617, %v619
      %v621 = vrot.slane %v384, %v620
      %v623 = vunpack.c.l.s4 1935823168
      %v624 = vunpack.c.0.s8 %v623
      %v625 = vlaneseq
      %v626 = vshrl.u32 %v625, 7
      %v627 = vsub.s32 %v624, %v626
      %v628 = vrot.slane %v621, %v627
      %v630 = vunpack.c.l.s4 1935823168
      %v631 = vunpack.c.0.s8 %v630
      %v632 = vlaneseq
      %v633 = vshrl.u32 %v632, 7
      %v634 = vsub.s32 %v631, %v633
      %v635 = vrot.slane %v385, %v634
      %v637 = vunpack.c.l.s4 1935823168
      %v638 = vunpack.c.0.s8 %v637
      %v639 = vlaneseq
      %v640 = vshrl.u32 %v639, 7
      %v641 = vsub.s32 %v638, %v640
      %v642 = vrot.slane %v635, %v641
      %v644 = vunpack.c.l.s4 1935823168
      %v645 = vunpack.c.0.s8 %v644
      %v646 = vlaneseq
      %v647 = vshrl.u32 %v646, 7
      %v648 = vsub.s32 %v645, %v647
      %v649 = vrot.slane %v386, %v648
      %v651 = vunpack.c.l.s4 1935823168
      %v652 = vunpack.c.0.s8 %v651
      %v653 = vlaneseq
      %v654 = vshrl.u32 %v653, 7
      %v655 = vsub.s32 %v652, %v654
      %v656 = vrot.slane %v649, %v655
      %v658 = vunpack.c.l.s4 1935823168
      %v659 = vunpack.c.0.s8 %v658
      %v660 = vlaneseq
      %v661 = vshrl.u32 %v660, 7
      %v662 = vsub.s32 %v659, %v661
      %v663 = vrot.slane %v387, %v662
      %v665 = vunpack.c.l.s4 1935823168
      %v666 = vunpack.c.0.s8 %v665
      %v667 = vlaneseq
      %v668 = vshrl.u32 %v667, 7
      %v669 = vsub.s32 %v666, %v668
      %v670 = vrot.slane %v663, %v669
      %v672 = vunpack.c.l.s4 1935823168
      %v673 = vunpack.c.0.s8 %v672
      %v674 = vlaneseq
      %v675 = vshrl.u32 %v674, 7
      %v676 = vsub.s32 %v673, %v675
      %v677 = vrot.slane %v388, %v676
      %v679 = vunpack.c.l.s4 1935823168
      %v680 = vunpack.c.0.s8 %v679
      %v681 = vlaneseq
      %v682 = vshrl.u32 %v681, 7
      %v683 = vsub.s32 %v680, %v682
      %v684 = vrot.slane %v677, %v683
      %v686 = vunpack.c.l.s4 1935823168
      %v687 = vunpack.c.0.s8 %v686
      %v688 = vlaneseq
      %v689 = vshrl.u32 %v688, 7
      %v690 = vsub.s32 %v687, %v689
      %v691 = vrot.slane %v389, %v690
      %v693 = vunpack.c.l.s4 1935823168
      %v694 = vunpack.c.0.s8 %v693
      %v695 = vlaneseq
      %v696 = vshrl.u32 %v695, 7
      %v697 = vsub.s32 %v694, %v696
      %v698 = vrot.slane %v691, %v697
      %v700 = vunpack.c.l.s4 1935823168
      %v701 = vunpack.c.0.s8 %v700
      %v702 = vlaneseq
      %v703 = vshrl.u32 %v702, 7
      %v704 = vsub.s32 %v701, %v703
      %v705 = vrot.slane %v390, %v704
      %v707 = vunpack.c.l.s4 1935823168
      %v708 = vunpack.c.0.s8 %v707
      %v709 = vlaneseq
      %v710 = vshrl.u32 %v709, 7
      %v711 = vsub.s32 %v708, %v710
      %v712 = vrot.slane %v705, %v711
      %v714 = vunpack.c.l.s4 1935823168
      %v715 = vunpack.c.0.s8 %v714
      %v716 = vlaneseq
      %v717 = vshrl.u32 %v716, 7
      %v718 = vsub.s32 %v715, %v717
      %v719 = vrot.slane %v391, %v718
      %v721 = vunpack.c.l.s4 1935823168
      %v722 = vunpack.c.0.s8 %v721
      %v723 = vlaneseq
      %v724 = vshrl.u32 %v723, 7
      %v725 = vsub.s32 %v722, %v724
      %v726 = vrot.slane %v719, %v725
      %v728 = vunpack.c.l.s4 1935823168
      %v729 = vunpack.c.0.s8 %v728
      %v730 = vlaneseq
      %v731 = vshrl.u32 %v730, 7
      %v732 = vsub.s32 %v729, %v731
      %v733 = vrot.slane %v392, %v732
      %v735 = vunpack.c.l.s4 1935823168
      %v736 = vunpack.c.0.s8 %v735
      %v737 = vlaneseq
      %v738 = vshrl.u32 %v737, 7
      %v739 = vsub.s32 %v736, %v738
      %v740 = vrot.slane %v733, %v739
      %v742 = vunpack.c.l.s4 1935823168
      %v743 = vunpack.c.0.s8 %v742
      %v744 = vlaneseq
      %v745 = vshrl.u32 %v744, 7
      %v746 = vsub.s32 %v743, %v745
      %v747 = vrot.slane %v393, %v746
      %v749 = vunpack.c.l.s4 1935823168
      %v750 = vunpack.c.0.s8 %v749
      %v751 = vlaneseq
      %v752 = vshrl.u32 %v751, 7
      %v753 = vsub.s32 %v750, %v752
      %v754 = vrot.slane %v747, %v753
      %v756 = vunpack.c.l.s4 1935823168
      %v757 = vunpack.c.0.s8 %v756
      %v758 = vlaneseq
      %v759 = vshrl.u32 %v758, 7
      %v760 = vsub.s32 %v757, %v759
      %v761 = vrot.slane %v394, %v760
      %v763 = vunpack.c.l.s4 1935823168
      %v764 = vunpack.c.0.s8 %v763
      %v765 = vlaneseq
      %v766 = vshrl.u32 %v765, 7
      %v767 = vsub.s32 %v764, %v766
      %v768 = vrot.slane %v761, %v767
      %v770 = vunpack.c.l.s4 1935823168
      %v771 = vunpack.c.0.s8 %v770
      %v772 = vlaneseq
      %v773 = vshrl.u32 %v772, 7
      %v774 = vsub.s32 %v771, %v773
      %v775 = vrot.slane %v395, %v774
      %v777 = vunpack.c.l.s4 1935823168
      %v778 = vunpack.c.0.s8 %v777
      %v779 = vlaneseq
      %v780 = vshrl.u32 %v779, 7
      %v781 = vsub.s32 %v778, %v780
      %v782 = vrot.slane %v775, %v781
      %v784 = vunpack.c.l.s4 1935823168
      %v785 = vunpack.c.0.s8 %v784
      %v786 = vlaneseq
      %v787 = vshrl.u32 %v786, 7
      %v788 = vsub.s32 %v785, %v787
      %v789 = vrot.slane %v396, %v788
      %v791 = vunpack.c.l.s4 1935823168
      %v792 = vunpack.c.0.s8 %v791
      %v793 = vlaneseq
      %v794 = vshrl.u32 %v793, 7
      %v795 = vsub.s32 %v792, %v794
      %v796 = vrot.slane %v789, %v795
      %v798 = vunpack.c.l.s4 1935823168
      %v799 = vunpack.c.0.s8 %v798
      %v800 = vlaneseq
      %v801 = vshrl.u32 %v800, 7
      %v802 = vsub.s32 %v799, %v801
      %v803 = vrot.slane %v397, %v802
      %v805 = vunpack.c.l.s4 1935823168
      %v806 = vunpack.c.0.s8 %v805
      %v807 = vlaneseq
      %v808 = vshrl.u32 %v807, 7
      %v809 = vsub.s32 %v806, %v808
      %v810 = vrot.slane %v803, %v809
      %v812 = vunpack.c.l.s4 1935823168
      %v813 = vunpack.c.0.s8 %v812
      %v814 = vlaneseq
      %v815 = vshrl.u32 %v814, 7
      %v816 = vsub.s32 %v813, %v815
      %v817 = vrot.slane %v398, %v816
      %v819 = vunpack.c.l.s4 1935823168
      %v820 = vunpack.c.0.s8 %v819
      %v821 = vlaneseq
      %v822 = vshrl.u32 %v821, 7
      %v823 = vsub.s32 %v820, %v822
      %v824 = vrot.slane %v817, %v823
      %v826 = vunpack.c.l.s4 1935823168
      %v827 = vunpack.c.0.s8 %v826
      %v828 = vlaneseq
      %v829 = vshrl.u32 %v828, 7
      %v830 = vsub.s32 %v827, %v829
      %v831 = vrot.slane %v399, %v830
      %v833 = vunpack.c.l.s4 1935823168
      %v834 = vunpack.c.0.s8 %v833
      %v835 = vlaneseq
      %v836 = vshrl.u32 %v835, 7
      %v837 = vsub.s32 %v834, %v836
      %v838 = vrot.slane %v831, %v837
      %v840 = vunpack.c.l.s4 1935823168
      %v841 = vunpack.c.0.s8 %v840
      %v842 = vlaneseq
      %v843 = vshrl.u32 %v842, 7
      %v844 = vsub.s32 %v841, %v843
      %v845 = vrot.slane %v400, %v844
      %v847 = vunpack.c.l.s4 1935823168
      %v848 = vunpack.c.0.s8 %v847
      %v849 = vlaneseq
      %v850 = vshrl.u32 %v849, 7
      %v851 = vsub.s32 %v848, %v850
      %v852 = vrot.slane %v845, %v851
      %v854 = vunpack.c.l.s4 1935823168
      %v855 = vunpack.c.0.s8 %v854
      %v856 = vlaneseq
      %v857 = vshrl.u32 %v856, 7
      %v858 = vsub.s32 %v855, %v857
      %v859 = vrot.slane %v401, %v858
      %v861 = vunpack.c.l.s4 1935823168
      %v862 = vunpack.c.0.s8 %v861
      %v863 = vlaneseq
      %v864 = vshrl.u32 %v863, 7
      %v865 = vsub.s32 %v862, %v864
      %v866 = vrot.slane %v859, %v865
      %v868 = vunpack.c.l.s4 1935823168
      %v869 = vunpack.c.0.s8 %v868
      %v870 = vlaneseq
      %v871 = vshrl.u32 %v870, 7
      %v872 = vsub.s32 %v869, %v871
      %v873 = vrot.slane %v402, %v872
      %v875 = vunpack.c.l.s4 1935823168
      %v876 = vunpack.c.0.s8 %v875
      %v877 = vlaneseq
      %v878 = vshrl.u32 %v877, 7
      %v879 = vsub.s32 %v876, %v878
      %v880 = vrot.slane %v873, %v879
      %v882 = vunpack.c.l.s4 1935823168
      %v883 = vunpack.c.0.s8 %v882
      %v884 = vlaneseq
      %v885 = vshrl.u32 %v884, 7
      %v886 = vsub.s32 %v883, %v885
      %v887 = vrot.slane %v403, %v886
      %v889 = vunpack.c.l.s4 1935823168
      %v890 = vunpack.c.0.s8 %v889
      %v891 = vlaneseq
      %v892 = vshrl.u32 %v891, 7
      %v893 = vsub.s32 %v890, %v892
      %v894 = vrot.slane %v887, %v893
      %v896 = vunpack.c.l.s4 1935823168
      %v897 = vunpack.c.0.s8 %v896
      %v898 = vlaneseq
      %v899 = vshrl.u32 %v898, 7
      %v900 = vsub.s32 %v897, %v899
      %v901 = vrot.slane %v404, %v900
      %v903 = vunpack.c.l.s4 1935823168
      %v904 = vunpack.c.0.s8 %v903
      %v905 = vlaneseq
      %v906 = vshrl.u32 %v905, 7
      %v907 = vsub.s32 %v904, %v906
      %v908 = vrot.slane %v901, %v907
      %v910 = vunpack.c.l.s4 1935823168
      %v911 = vunpack.c.0.s8 %v910
      %v912 = vlaneseq
      %v913 = vshrl.u32 %v912, 7
      %v914 = vsub.s32 %v911, %v913
      %v915 = vrot.slane %v405, %v914
      %v917 = vunpack.c.l.s4 1935823168
      %v918 = vunpack.c.0.s8 %v917
      %v919 = vlaneseq
      %v920 = vshrl.u32 %v919, 7
      %v921 = vsub.s32 %v918, %v920
      %v922 = vrot.slane %v915, %v921
      %v924 = vunpack.c.l.s4 1935823168
      %v925 = vunpack.c.0.s8 %v924
      %v926 = vlaneseq
      %v927 = vshrl.u32 %v926, 7
      %v928 = vsub.s32 %v925, %v927
      %v929 = vrot.slane %v406, %v928
      %v931 = vunpack.c.l.s4 1935823168
      %v932 = vunpack.c.0.s8 %v931
      %v933 = vlaneseq
      %v934 = vshrl.u32 %v933, 7
      %v935 = vsub.s32 %v932, %v934
      %v936 = vrot.slane %v929, %v935
      %v938 = vunpack.c.l.s4 1935823168
      %v939 = vunpack.c.0.s8 %v938
      %v940 = vlaneseq
      %v941 = vshrl.u32 %v940, 7
      %v942 = vsub.s32 %v939, %v941
      %v943 = vrot.slane %v407, %v942
      %v945 = vunpack.c.l.s4 1935823168
      %v946 = vunpack.c.0.s8 %v945
      %v947 = vlaneseq
      %v948 = vshrl.u32 %v947, 7
      %v949 = vsub.s32 %v946, %v948
      %v950 = vrot.slane %v943, %v949
      %v952 = vunpack.c.l.s4 1935823168
      %v953 = vunpack.c.0.s8 %v952
      %v954 = vlaneseq
      %v955 = vshrl.u32 %v954, 7
      %v956 = vsub.s32 %v953, %v955
      %v957 = vrot.slane %v408, %v956
      %v959 = vunpack.c.l.s4 1935823168
      %v960 = vunpack.c.0.s8 %v959
      %v961 = vlaneseq
      %v962 = vshrl.u32 %v961, 7
      %v963 = vsub.s32 %v960, %v962
      %v964 = vrot.slane %v957, %v963
      %v966 = vunpack.c.l.s4 1935823168
      %v967 = vunpack.c.0.s8 %v966
      %v968 = vlaneseq
      %v969 = vshrl.u32 %v968, 7
      %v970 = vsub.s32 %v967, %v969
      %v971 = vrot.slane %v409, %v970
      %v973 = vunpack.c.l.s4 1935823168
      %v974 = vunpack.c.0.s8 %v973
      %v975 = vlaneseq
      %v976 = vshrl.u32 %v975, 7
      %v977 = vsub.s32 %v974, %v976
      %v978 = vrot.slane %v971, %v977
      %v980 = vunpack.c.l.s4 1935823168
      %v981 = vunpack.c.0.s8 %v980
      %v982 = vlaneseq
      %v983 = vshrl.u32 %v982, 7
      %v984 = vsub.s32 %v981, %v983
      %v985 = vrot.slane %v410, %v984
      %v987 = vunpack.c.l.s4 1935823168
      %v988 = vunpack.c.0.s8 %v987
      %v989 = vlaneseq
      %v990 = vshrl.u32 %v989, 7
      %v991 = vsub.s32 %v988, %v990
      %v992 = vrot.slane %v985, %v991
      %v994 = vunpack.c.l.s4 1935823168
      %v995 = vunpack.c.0.s8 %v994
      %v996 = vlaneseq
      %v997 = vshrl.u32 %v996, 7
      %v998 = vsub.s32 %v995, %v997
      %v999 = vrot.slane %v411, %v998
      %v1001 = vunpack.c.l.s4 1935823168
      %v1002 = vunpack.c.0.s8 %v1001
      %v1003 = vlaneseq
      %v1004 = vshrl.u32 %v1003, 7
      %v1005 = vsub.s32 %v1002, %v1004
      %v1006 = vrot.slane %v999, %v1005
      %v1008 = vunpack.c.l.s4 1935823168
      %v1009 = vunpack.c.0.s8 %v1008
      %v1010 = vlaneseq
      %v1011 = vshrl.u32 %v1010, 7
      %v1012 = vsub.s32 %v1009, %v1011
      %v1013 = vrot.slane %v412, %v1012
      %v1015 = vunpack.c.l.s4 1935823168
      %v1016 = vunpack.c.0.s8 %v1015
      %v1017 = vlaneseq
      %v1018 = vshrl.u32 %v1017, 7
      %v1019 = vsub.s32 %v1016, %v1018
      %v1020 = vrot.slane %v1013, %v1019
      %v1022 = vunpack.c.l.s4 1935823168
      %v1023 = vunpack.c.0.s8 %v1022
      %v1024 = vlaneseq
      %v1025 = vshrl.u32 %v1024, 7
      %v1026 = vsub.s32 %v1023, %v1025
      %v1027 = vrot.slane %v413, %v1026
      %v1029 = vunpack.c.l.s4 1935823168
      %v1030 = vunpack.c.0.s8 %v1029
      %v1031 = vlaneseq
      %v1032 = vshrl.u32 %v1031, 7
      %v1033 = vsub.s32 %v1030, %v1032
      %v1034 = vrot.slane %v1027, %v1033
      %v1036 = vunpack.c.l.s4 1935823168
      %v1037 = vunpack.c.0.s8 %v1036
      %v1038 = vlaneseq
      %v1039 = vshrl.u32 %v1038, 7
      %v1040 = vsub.s32 %v1037, %v1039
      %v1041 = vrot.slane %v414, %v1040
      %v1043 = vunpack.c.l.s4 1935823168
      %v1044 = vunpack.c.0.s8 %v1043
      %v1045 = vlaneseq
      %v1046 = vshrl.u32 %v1045, 7
      %v1047 = vsub.s32 %v1044, %v1046
      %v1048 = vrot.slane %v1041, %v1047
      %v1050 = vunpack.c.l.s4 1935823168
      %v1051 = vunpack.c.0.s8 %v1050
      %v1052 = vlaneseq
      %v1053 = vshrl.u32 %v1052, 7
      %v1054 = vsub.s32 %v1051, %v1053
      %v1055 = vrot.slane %v415, %v1054
      %v1057 = vunpack.c.l.s4 1935823168
      %v1058 = vunpack.c.0.s8 %v1057
      %v1059 = vlaneseq
      %v1060 = vshrl.u32 %v1059, 7
      %v1061 = vsub.s32 %v1058, %v1060
      %v1062 = vrot.slane %v1055, %v1061
      %v1064 = vunpack.c.l.s4 1935823168
      %v1065 = vunpack.c.0.s8 %v1064
      %v1066 = vlaneseq
      %v1067 = vshrl.u32 %v1066, 7
      %v1068 = vsub.s32 %v1065, %v1067
      %v1069 = vrot.slane %v416, %v1068
      %v1071 = vunpack.c.l.s4 1935823168
      %v1072 = vunpack.c.0.s8 %v1071
      %v1073 = vlaneseq
      %v1074 = vshrl.u32 %v1073, 7
      %v1075 = vsub.s32 %v1072, %v1074
      %v1076 = vrot.slane %v1069, %v1075
      %v1078 = vunpack.c.l.s4 1935823168
      %v1079 = vunpack.c.0.s8 %v1078
      %v1080 = vlaneseq
      %v1081 = vshrl.u32 %v1080, 7
      %v1082 = vsub.s32 %v1079, %v1081
      %v1083 = vrot.slane %v417, %v1082
      %v1085 = vunpack.c.l.s4 1935823168
      %v1086 = vunpack.c.0.s8 %v1085
      %v1087 = vlaneseq
      %v1088 = vshrl.u32 %v1087, 7
      %v1089 = vsub.s32 %v1086, %v1088
      %v1090 = vrot.slane %v1083, %v1089
      %v1092 = vunpack.c.l.s4 1935823168
      %v1093 = vunpack.c.0.s8 %v1092
      %v1094 = vlaneseq
      %v1095 = vshrl.u32 %v1094, 7
      %v1096 = vsub.s32 %v1093, %v1095
      %v1097 = vrot.slane %v418, %v1096
      %v1099 = vunpack.c.l.s4 1935823168
      %v1100 = vunpack.c.0.s8 %v1099
      %v1101 = vlaneseq
      %v1102 = vshrl.u32 %v1101, 7
      %v1103 = vsub.s32 %v1100, %v1102
      %v1104 = vrot.slane %v1097, %v1103
      %v1106 = vunpack.c.l.s4 1935823168
      %v1107 = vunpack.c.0.s8 %v1106
      %v1108 = vlaneseq
      %v1109 = vshrl.u32 %v1108, 7
      %v1110 = vsub.s32 %v1107, %v1109
      %v1111 = vrot.slane %v419, %v1110
      %v1113 = vunpack.c.l.s4 1935823168
      %v1114 = vunpack.c.0.s8 %v1113
      %v1115 = vlaneseq
      %v1116 = vshrl.u32 %v1115, 7
      %v1117 = vsub.s32 %v1114, %v1116
      %v1118 = vrot.slane %v1111, %v1117
      %v1120 = vunpack.c.l.s4 1935823168
      %v1121 = vunpack.c.0.s8 %v1120
      %v1122 = vlaneseq
      %v1123 = vshrl.u32 %v1122, 7
      %v1124 = vsub.s32 %v1121, %v1123
      %v1125 = vrot.slane %v420, %v1124
      %v1127 = vunpack.c.l.s4 1935823168
      %v1128 = vunpack.c.0.s8 %v1127
      %v1129 = vlaneseq
      %v1130 = vshrl.u32 %v1129, 7
      %v1131 = vsub.s32 %v1128, %v1130
      %v1132 = vrot.slane %v1125, %v1131
      %v1134 = vunpack.c.l.s4 1935823168
      %v1135 = vunpack.c.0.s8 %v1134
      %v1136 = vlaneseq
      %v1137 = vshrl.u32 %v1136, 7
      %v1138 = vsub.s32 %v1135, %v1137
      %v1139 = vrot.slane %v421, %v1138
      %v1141 = vunpack.c.l.s4 1935823168
      %v1142 = vunpack.c.0.s8 %v1141
      %v1143 = vlaneseq
      %v1144 = vshrl.u32 %v1143, 7
      %v1145 = vsub.s32 %v1142, %v1144
      %v1146 = vrot.slane %v1139, %v1145
      %v1148 = vunpack.c.l.s4 1935823168
      %v1149 = vunpack.c.0.s8 %v1148
      %v1150 = vlaneseq
      %v1151 = vshrl.u32 %v1150, 7
      %v1152 = vsub.s32 %v1149, %v1151
      %v1153 = vrot.slane %v422, %v1152
      %v1155 = vunpack.c.l.s4 1935823168
      %v1156 = vunpack.c.0.s8 %v1155
      %v1157 = vlaneseq
      %v1158 = vshrl.u32 %v1157, 7
      %v1159 = vsub.s32 %v1156, %v1158
      %v1160 = vrot.slane %v1153, %v1159
      %v1162 = vunpack.c.l.s4 1935823168
      %v1163 = vunpack.c.0.s8 %v1162
      %v1164 = vlaneseq
      %v1165 = vshrl.u32 %v1164, 7
      %v1166 = vsub.s32 %v1163, %v1165
      %v1167 = vrot.slane %v423, %v1166
      %v1169 = vunpack.c.l.s4 1935823168
      %v1170 = vunpack.c.0.s8 %v1169
      %v1171 = vlaneseq
      %v1172 = vshrl.u32 %v1171, 7
      %v1173 = vsub.s32 %v1170, %v1172
      %v1174 = vrot.slane %v1167, %v1173
      %v1176 = vunpack.c.l.s4 1935823168
      %v1177 = vunpack.c.0.s8 %v1176
      %v1178 = vlaneseq
      %v1179 = vshrl.u32 %v1178, 7
      %v1180 = vsub.s32 %v1177, %v1179
      %v1181 = vrot.slane %v424, %v1180
      %v1183 = vunpack.c.l.s4 1935823168
      %v1184 = vunpack.c.0.s8 %v1183
      %v1185 = vlaneseq
      %v1186 = vshrl.u32 %v1185, 7
      %v1187 = vsub.s32 %v1184, %v1186
      %v1188 = vrot.slane %v1181, %v1187
      %v1190 = vunpack.c.l.s4 1935823168
      %v1191 = vunpack.c.0.s8 %v1190
      %v1192 = vlaneseq
      %v1193 = vshrl.u32 %v1192, 7
      %v1194 = vsub.s32 %v1191, %v1193
      %v1195 = vrot.slane %v425, %v1194
      %v1197 = vunpack.c.l.s4 1935823168
      %v1198 = vunpack.c.0.s8 %v1197
      %v1199 = vlaneseq
      %v1200 = vshrl.u32 %v1199, 7
      %v1201 = vsub.s32 %v1198, %v1200
      %v1202 = vrot.slane %v1195, %v1201
      %v1204 = vunpack.c.l.s4 1935823168
      %v1205 = vunpack.c.0.s8 %v1204
      %v1206 = vlaneseq
      %v1207 = vshrl.u32 %v1206, 7
      %v1208 = vsub.s32 %v1205, %v1207
      %v1209 = vrot.slane %v426, %v1208
      %v1211 = vunpack.c.l.s4 1935823168
      %v1212 = vunpack.c.0.s8 %v1211
      %v1213 = vlaneseq
      %v1214 = vshrl.u32 %v1213, 7
      %v1215 = vsub.s32 %v1212, %v1214
      %v1216 = vrot.slane %v1209, %v1215
      %v1218 = vunpack.c.l.s4 1935823168
      %v1219 = vunpack.c.0.s8 %v1218
      %v1220 = vlaneseq
      %v1221 = vshrl.u32 %v1220, 7
      %v1222 = vsub.s32 %v1219, %v1221
      %v1223 = vrot.slane %v427, %v1222
      %v1225 = vunpack.c.l.s4 1935823168
      %v1226 = vunpack.c.0.s8 %v1225
      %v1227 = vlaneseq
      %v1228 = vshrl.u32 %v1227, 7
      %v1229 = vsub.s32 %v1226, %v1228
      %v1230 = vrot.slane %v1223, %v1229
      %v1232 = vunpack.c.l.s4 1935823168
      %v1233 = vunpack.c.0.s8 %v1232
      %v1234 = vlaneseq
      %v1235 = vshrl.u32 %v1234, 7
      %v1236 = vsub.s32 %v1233, %v1235
      %v1237 = vrot.slane %v428, %v1236
      %v1239 = vunpack.c.l.s4 1935823168
      %v1240 = vunpack.c.0.s8 %v1239
      %v1241 = vlaneseq
      %v1242 = vshrl.u32 %v1241, 7
      %v1243 = vsub.s32 %v1240, %v1242
      %v1244 = vrot.slane %v1237, %v1243
      %v1246 = vunpack.c.l.s4 1935823168
      %v1247 = vunpack.c.0.s8 %v1246
      %v1248 = vlaneseq
      %v1249 = vshrl.u32 %v1248, 7
      %v1250 = vsub.s32 %v1247, %v1249
      %v1251 = vrot.slane %v429, %v1250
      %v1253 = vunpack.c.l.s4 1935823168
      %v1254 = vunpack.c.0.s8 %v1253
      %v1255 = vlaneseq
      %v1256 = vshrl.u32 %v1255, 7
      %v1257 = vsub.s32 %v1254, %v1256
      %v1258 = vrot.slane %v1251, %v1257
      %v1260 = vunpack.c.l.s4 1935823168
      %v1261 = vunpack.c.0.s8 %v1260
      %v1262 = vlaneseq
      %v1263 = vshrl.u32 %v1262, 7
      %v1264 = vsub.s32 %v1261, %v1263
      %v1265 = vrot.slane %v430, %v1264
      %v1267 = vunpack.c.l.s4 1935823168
      %v1268 = vunpack.c.0.s8 %v1267
      %v1269 = vlaneseq
      %v1270 = vshrl.u32 %v1269, 7
      %v1271 = vsub.s32 %v1268, %v1270
      %v1272 = vrot.slane %v1265, %v1271
      %v1274 = vunpack.c.l.s4 1935823168
      %v1275 = vunpack.c.0.s8 %v1274
      %v1276 = vlaneseq
      %v1277 = vshrl.u32 %v1276, 7
      %v1278 = vsub.s32 %v1275, %v1277
      %v1279 = vrot.slane %v431, %v1278
      %v1281 = vunpack.c.l.s4 1935823168
      %v1282 = vunpack.c.0.s8 %v1281
      %v1283 = vlaneseq
      %v1284 = vshrl.u32 %v1283, 7
      %v1285 = vsub.s32 %v1282, %v1284
      %v1286 = vrot.slane %v1279, %v1285
      %v1288 = vunpack.c.l.s4 1935823168
      %v1289 = vunpack.c.0.s8 %v1288
      %v1290 = vlaneseq
      %v1291 = vshrl.u32 %v1290, 7
      %v1292 = vsub.s32 %v1289, %v1291
      %v1293 = vrot.slane %v432, %v1292
      %v1295 = vunpack.c.l.s4 1935823168
      %v1296 = vunpack.c.0.s8 %v1295
      %v1297 = vlaneseq
      %v1298 = vshrl.u32 %v1297, 7
      %v1299 = vsub.s32 %v1296, %v1298
      %v1300 = vrot.slane %v1293, %v1299
      %v1302 = vunpack.c.l.s4 1935823168
      %v1303 = vunpack.c.0.s8 %v1302
      %v1304 = vlaneseq
      %v1305 = vshrl.u32 %v1304, 7
      %v1306 = vsub.s32 %v1303, %v1305
      %v1307 = vrot.slane %v433, %v1306
      %v1309 = vunpack.c.l.s4 1935823168
      %v1310 = vunpack.c.0.s8 %v1309
      %v1311 = vlaneseq
      %v1312 = vshrl.u32 %v1311, 7
      %v1313 = vsub.s32 %v1310, %v1312
      %v1314 = vrot.slane %v1307, %v1313
      %v1316 = vunpack.c.l.s4 1935823168
      %v1317 = vunpack.c.0.s8 %v1316
      %v1318 = vlaneseq
      %v1319 = vshrl.u32 %v1318, 7
      %v1320 = vsub.s32 %v1317, %v1319
      %v1321 = vrot.slane %v434, %v1320
      %v1323 = vunpack.c.l.s4 1935823168
      %v1324 = vunpack.c.0.s8 %v1323
      %v1325 = vlaneseq
      %v1326 = vshrl.u32 %v1325, 7
      %v1327 = vsub.s32 %v1324, %v1326
      %v1328 = vrot.slane %v1321, %v1327
      %v1330 = vunpack.c.l.s4 1935823168
      %v1331 = vunpack.c.0.s8 %v1330
      %v1332 = vlaneseq
      %v1333 = vshrl.u32 %v1332, 7
      %v1334 = vsub.s32 %v1331, %v1333
      %v1335 = vrot.slane %v435, %v1334
      %v1337 = vunpack.c.l.s4 1935823168
      %v1338 = vunpack.c.0.s8 %v1337
      %v1339 = vlaneseq
      %v1340 = vshrl.u32 %v1339, 7
      %v1341 = vsub.s32 %v1338, %v1340
      %v1342 = vrot.slane %v1335, %v1341
      %v1344 = vunpack.c.l.s4 1935823168
      %v1345 = vunpack.c.0.s8 %v1344
      %v1346 = vlaneseq
      %v1347 = vshrl.u32 %v1346, 7
      %v1348 = vsub.s32 %v1345, %v1347
      %v1349 = vrot.slane %v436, %v1348
      %v1351 = vunpack.c.l.s4 1935823168
      %v1352 = vunpack.c.0.s8 %v1351
      %v1353 = vlaneseq
      %v1354 = vshrl.u32 %v1353, 7
      %v1355 = vsub.s32 %v1352, %v1354
      %v1356 = vrot.slane %v1349, %v1355
      %v1358 = vunpack.c.l.s4 1935823168
      %v1359 = vunpack.c.0.s8 %v1358
      %v1360 = vlaneseq
      %v1361 = vshrl.u32 %v1360, 7
      %v1362 = vsub.s32 %v1359, %v1361
      %v1363 = vrot.slane %v437, %v1362
      %v1365 = vunpack.c.l.s4 1935823168
      %v1366 = vunpack.c.0.s8 %v1365
      %v1367 = vlaneseq
      %v1368 = vshrl.u32 %v1367, 7
      %v1369 = vsub.s32 %v1366, %v1368
      %v1370 = vrot.slane %v1363, %v1369
      %v1372 = vunpack.c.l.s4 1935823168
      %v1373 = vunpack.c.0.s8 %v1372
      %v1374 = vlaneseq
      %v1375 = vshrl.u32 %v1374, 7
      %v1376 = vsub.s32 %v1373, %v1375
      %v1377 = vrot.slane %v438, %v1376
      %v1379 = vunpack.c.l.s4 1935823168
      %v1380 = vunpack.c.0.s8 %v1379
      %v1381 = vlaneseq
      %v1382 = vshrl.u32 %v1381, 7
      %v1383 = vsub.s32 %v1380, %v1382
      %v1384 = vrot.slane %v1377, %v1383
      %v1386 = vunpack.c.l.s4 1935823168
      %v1387 = vunpack.c.0.s8 %v1386
      %v1388 = vlaneseq
      %v1389 = vshrl.u32 %v1388, 7
      %v1390 = vsub.s32 %v1387, %v1389
      %v1391 = vrot.slane %v439, %v1390
      %v1393 = vunpack.c.l.s4 1935823168
      %v1394 = vunpack.c.0.s8 %v1393
      %v1395 = vlaneseq
      %v1396 = vshrl.u32 %v1395, 7
      %v1397 = vsub.s32 %v1394, %v1396
      %v1398 = vrot.slane %v1391, %v1397
      %v1400 = vunpack.c.l.s4 1935823168
      %v1401 = vunpack.c.0.s8 %v1400
      %v1402 = vlaneseq
      %v1403 = vshrl.u32 %v1402, 7
      %v1404 = vsub.s32 %v1401, %v1403
      %v1405 = vrot.slane %v440, %v1404
      %v1407 = vunpack.c.l.s4 1935823168
      %v1408 = vunpack.c.0.s8 %v1407
      %v1409 = vlaneseq
      %v1410 = vshrl.u32 %v1409, 7
      %v1411 = vsub.s32 %v1408, %v1410
      %v1412 = vrot.slane %v1405, %v1411
      %v1414 = vunpack.c.l.s4 1935823168
      %v1415 = vunpack.c.0.s8 %v1414
      %v1416 = vlaneseq
      %v1417 = vshrl.u32 %v1416, 7
      %v1418 = vsub.s32 %v1415, %v1417
      %v1419 = vrot.slane %v441, %v1418
      %v1421 = vunpack.c.l.s4 1935823168
      %v1422 = vunpack.c.0.s8 %v1421
      %v1423 = vlaneseq
      %v1424 = vshrl.u32 %v1423, 7
      %v1425 = vsub.s32 %v1422, %v1424
      %v1426 = vrot.slane %v1419, %v1425
      %v1428 = vunpack.c.l.s4 1935823168
      %v1429 = vunpack.c.0.s8 %v1428
      %v1430 = vlaneseq
      %v1431 = vshrl.u32 %v1430, 7
      %v1432 = vsub.s32 %v1429, %v1431
      %v1433 = vrot.slane %v442, %v1432
      %v1435 = vunpack.c.l.s4 1935823168
      %v1436 = vunpack.c.0.s8 %v1435
      %v1437 = vlaneseq
      %v1438 = vshrl.u32 %v1437, 7
      %v1439 = vsub.s32 %v1436, %v1438
      %v1440 = vrot.slane %v1433, %v1439
      %v1442 = vunpack.c.l.s4 1935823168
      %v1443 = vunpack.c.0.s8 %v1442
      %v1444 = vlaneseq
      %v1445 = vshrl.u32 %v1444, 7
      %v1446 = vsub.s32 %v1443, %v1445
      %v1447 = vrot.slane %v443, %v1446
      %v1449 = vunpack.c.l.s4 1935823168
      %v1450 = vunpack.c.0.s8 %v1449
      %v1451 = vlaneseq
      %v1452 = vshrl.u32 %v1451, 7
      %v1453 = vsub.s32 %v1450, %v1452
      %v1454 = vrot.slane %v1447, %v1453
      %v1456 = vunpack.c.l.s4 1935823168
      %v1457 = vunpack.c.0.s8 %v1456
      %v1458 = vlaneseq
      %v1459 = vshrl.u32 %v1458, 7
      %v1460 = vsub.s32 %v1457, %v1459
      %v1461 = vrot.slane %v444, %v1460
      %v1463 = vunpack.c.l.s4 1935823168
      %v1464 = vunpack.c.0.s8 %v1463
      %v1465 = vlaneseq
      %v1466 = vshrl.u32 %v1465, 7
      %v1467 = vsub.s32 %v1464, %v1466
      %v1468 = vrot.slane %v1461, %v1467
      %v1469 = vunpack.c.l.b16 %v586
      %v1470 = vunpack.c.l.b16 %v600
      %v1471 = vunpack.c.l.b16 %v614
      %v1472 = vunpack.c.l.b16 %v628
      %v1473 = vunpack.c.l.b16 %v642
      %v1474 = vunpack.c.l.b16 %v656
      %v1475 = vunpack.c.l.b16 %v670
      %v1476 = vunpack.c.l.b16 %v684
      %v1477 = vunpack.c.l.b16 %v698
      %v1478 = vunpack.c.l.b16 %v712
      %v1479 = vunpack.c.l.b16 %v726
      %v1480 = vunpack.c.l.b16 %v740
      %v1481 = vunpack.c.l.b16 %v754
      %v1482 = vunpack.c.l.b16 %v768
      %v1483 = vunpack.c.l.b16 %v782
      %v1484 = vunpack.c.l.b16 %v796
      %v1485 = vunpack.c.l.b16 %v810
      %v1486 = vunpack.c.l.b16 %v824
      %v1487 = vunpack.c.l.b16 %v838
      %v1488 = vunpack.c.l.b16 %v852
      %v1489 = vunpack.c.l.b16 %v866
      %v1490 = vunpack.c.l.b16 %v880
      %v1491 = vunpack.c.l.b16 %v894
      %v1492 = vunpack.c.l.b16 %v908
      %v1493 = vunpack.c.l.b16 %v922
      %v1494 = vunpack.c.l.b16 %v936
      %v1495 = vunpack.c.l.b16 %v950
      %v1496 = vunpack.c.l.b16 %v964
      %v1497 = vunpack.c.l.b16 %v978
      %v1498 = vunpack.c.l.b16 %v992
      %v1499 = vunpack.c.l.b16 %v1006
      %v1500 = vunpack.c.l.b16 %v1020
      %v1501 = vunpack.c.l.b16 %v1034
      %v1502 = vunpack.c.l.b16 %v1048
      %v1503 = vunpack.c.l.b16 %v1062
      %v1504 = vunpack.c.l.b16 %v1076
      %v1505 = vunpack.c.l.b16 %v1090
      %v1506 = vunpack.c.l.b16 %v1104
      %v1507 = vunpack.c.l.b16 %v1118
      %v1508 = vunpack.c.l.b16 %v1132
      %v1509 = vunpack.c.l.b16 %v1146
      %v1510 = vunpack.c.l.b16 %v1160
      %v1511 = vunpack.c.l.b16 %v1174
      %v1512 = vunpack.c.l.b16 %v1188
      %v1513 = vunpack.c.l.b16 %v1202
      %v1514 = vunpack.c.l.b16 %v1216
      %v1515 = vunpack.c.l.b16 %v1230
      %v1516 = vunpack.c.l.b16 %v1244
      %v1517 = vunpack.c.l.b16 %v1258
      %v1518 = vunpack.c.l.b16 %v1272
      %v1519 = vunpack.c.l.b16 %v1286
      %v1520 = vunpack.c.l.b16 %v1300
      %v1521 = vunpack.c.l.b16 %v1314
      %v1522 = vunpack.c.l.b16 %v1328
      %v1523 = vunpack.c.l.b16 %v1342
      %v1524 = vunpack.c.l.b16 %v1356
      %v1525 = vunpack.c.l.b16 %v1370
      %v1526 = vunpack.c.l.b16 %v1384
      %v1527 = vunpack.c.l.b16 %v1398
      %v1528 = vunpack.c.l.b16 %v1412
      %v1529 = vunpack.c.l.b16 %v1426
      %v1530 = vunpack.c.l.b16 %v1440
      %v1531 = vunpack.c.l.b16 %v1454
      %v1532 = vunpack.c.l.b16 %v1468
      %v1533 = vrot.slane %v1470, 7
      %vm1534 = vcmask 1041409
      %v1535 = vsel %vm1534, %v1533, %v1469
      %v1536 = vrot.slane %v1471, 6
      %vm1537 = vcmask 1042434
      %v1538 = vsel %vm1537, %v1536, %v1535
      %v1539 = vrot.slane %v1472, 5
      %vm1540 = vcmask 1043459
      %v1541 = vsel %vm1540, %v1539, %v1538
      %v1542 = vrot.slane %v1473, 4
      %vm1543 = vcmask 1044484
      %v1544 = vsel %vm1543, %v1542, %v1541
      %v1545 = vrot.slane %v1474, 3
      %vm1546 = vcmask 1045509
      %v1547 = vsel %vm1546, %v1545, %v1544
      %v1548 = vrot.slane %v1475, 2
      %vm1549 = vcmask 1046534
      %v1550 = vsel %vm1549, %v1548, %v1547
      %v1551 = vrot.slane %v1476, 1
      %vm1552 = vcmask 1047559
      %v1553 = vsel %vm1552, %v1551, %v1550
      %v1554 = vrot.slane %v1478, 7
      %v1555 = vsel %vm1534, %v1554, %v1477
      %v1556 = vrot.slane %v1479, 6
      %v1557 = vsel %vm1537, %v1556, %v1555
      %v1558 = vrot.slane %v1480, 5
      %v1559 = vsel %vm1540, %v1558, %v1557
      %v1560 = vrot.slane %v1481, 4
      %v1561 = vsel %vm1543, %v1560, %v1559
      %v1562 = vrot.slane %v1482, 3
      %v1563 = vsel %vm1546, %v1562, %v1561
      %v1564 = vrot.slane %v1483, 2
      %v1565 = vsel %vm1549, %v1564, %v1563
      %v1566 = vrot.slane %v1484, 1
      %v1567 = vsel %vm1552, %v1566, %v1565
      %v1568 = vrot.slane %v1486, 7
      %v1569 = vsel %vm1534, %v1568, %v1485
      %v1570 = vrot.slane %v1487, 6
      %v1571 = vsel %vm1537, %v1570, %v1569
      %v1572 = vrot.slane %v1488, 5
      %v1573 = vsel %vm1540, %v1572, %v1571
      %v1574 = vrot.slane %v1489, 4
      %v1575 = vsel %vm1543, %v1574, %v1573
      %v1576 = vrot.slane %v1490, 3
      %v1577 = vsel %vm1546, %v1576, %v1575
      %v1578 = vrot.slane %v1491, 2
      %v1579 = vsel %vm1549, %v1578, %v1577
      %v1580 = vrot.slane %v1492, 1
      %v1581 = vsel %vm1552, %v1580, %v1579
      %v1582 = vrot.slane %v1494, 7
      %v1583 = vsel %vm1534, %v1582, %v1493
      %v1584 = vrot.slane %v1495, 6
      %v1585 = vsel %vm1537, %v1584, %v1583
      %v1586 = vrot.slane %v1496, 5
      %v1587 = vsel %vm1540, %v1586, %v1585
      %v1588 = vrot.slane %v1497, 4
      %v1589 = vsel %vm1543, %v1588, %v1587
      %v1590 = vrot.slane %v1498, 3
      %v1591 = vsel %vm1546, %v1590, %v1589
      %v1592 = vrot.slane %v1499, 2
      %v1593 = vsel %vm1549, %v1592, %v1591
      %v1594 = vrot.slane %v1500, 1
      %v1595 = vsel %vm1552, %v1594, %v1593
      %v1596 = vrot.slane %v1502, 7
      %v1597 = vsel %vm1534, %v1596, %v1501
      %v1598 = vrot.slane %v1503, 6
      %v1599 = vsel %vm1537, %v1598, %v1597
      %v1600 = vrot.slane %v1504, 5
      %v1601 = vsel %vm1540, %v1600, %v1599
      %v1602 = vrot.slane %v1505, 4
      %v1603 = vsel %vm1543, %v1602, %v1601
      %v1604 = vrot.slane %v1506, 3
      %v1605 = vsel %vm1546, %v1604, %v1603
      %v1606 = vrot.slane %v1507, 2
      %v1607 = vsel %vm1549, %v1606, %v1605
      %v1608 = vrot.slane %v1508, 1
      %v1609 = vsel %vm1552, %v1608, %v1607
      %v1610 = vrot.slane %v1510, 7
      %v1611 = vsel %vm1534, %v1610, %v1509
      %v1612 = vrot.slane %v1511, 6
      %v1613 = vsel %vm1537, %v1612, %v1611
      %v1614 = vrot.slane %v1512, 5
      %v1615 = vsel %vm1540, %v1614, %v1613
      %v1616 = vrot.slane %v1513, 4
      %v1617 = vsel %vm1543, %v1616, %v1615
      %v1618 = vrot.slane %v1514, 3
      %v1619 = vsel %vm1546, %v1618, %v1617
      %v1620 = vrot.slane %v1515, 2
      %v1621 = vsel %vm1549, %v1620, %v1619
      %v1622 = vrot.slane %v1516, 1
      %v1623 = vsel %vm1552, %v1622, %v1621
      %v1624 = vrot.slane %v1518, 7
      %v1625 = vsel %vm1534, %v1624, %v1517
      %v1626 = vrot.slane %v1519, 6
      %v1627 = vsel %vm1537, %v1626, %v1625
      %v1628 = vrot.slane %v1520, 5
      %v1629 = vsel %vm1540, %v1628, %v1627
      %v1630 = vrot.slane %v1521, 4
      %v1631 = vsel %vm1543, %v1630, %v1629
      %v1632 = vrot.slane %v1522, 3
      %v1633 = vsel %vm1546, %v1632, %v1631
      %v1634 = vrot.slane %v1523, 2
      %v1635 = vsel %vm1549, %v1634, %v1633
      %v1636 = vrot.slane %v1524, 1
      %v1637 = vsel %vm1552, %v1636, %v1635
      %v1638 = vrot.slane %v1526, 7
      %v1639 = vsel %vm1534, %v1638, %v1525
      %v1640 = vrot.slane %v1527, 6
      %v1641 = vsel %vm1537, %v1640, %v1639
      %v1642 = vrot.slane %v1528, 5
      %v1643 = vsel %vm1540, %v1642, %v1641
      %v1644 = vrot.slane %v1529, 4
      %v1645 = vsel %vm1543, %v1644, %v1643
      %v1646 = vrot.slane %v1530, 3
      %v1647 = vsel %vm1546, %v1646, %v1645
      %v1648 = vrot.slane %v1531, 2
      %v1649 = vsel %vm1549, %v1648, %v1647
      %v1650 = vrot.slane %v1532, 1
      %v1651 = vsel %vm1552, %v1650, %v1649
      %v1652 = vpack.c.b16 %v1553, %v1553
      %v1653 = vpack.c.b16 %v1567, %v1567
      %v1654 = vpack.c.b16 %v1581, %v1581
      %v1655 = vpack.c.b16 %v1595, %v1595
      %v1656 = vpack.c.b16 %v1609, %v1609
      %v1657 = vpack.c.b16 %v1623, %v1623
      %v1658 = vpack.c.b16 %v1637, %v1637
      %v1659 = vpack.c.b16 %v1651, %v1651
      %vm1668 = vcmask 125952
      %1669 = vst.msk [vmem:[#allocation2] sm:$0xf] %vm1668, %v1652
      %1670 = vst.msk [vmem:[#allocation2 + $0x4] sm:$0xf] %vm1668, %v1653
      %1671 = vst.msk [vmem:[#allocation2 + $0x8] sm:$0xf] %vm1668, %v1654
      %1672 = vst.msk [vmem:[#allocation2 + $0xc] sm:$0xf] %vm1668, %v1655
      %1673 = vst.msk [vmem:[#allocation2 + $0x10] sm:$0xf] %vm1668, %v1656
      %1674 = vst.msk [vmem:[#allocation2 + $0x14] sm:$0xf] %vm1668, %v1657
      %1675 = vst.msk [vmem:[#allocation2 + $0x18] sm:$0xf] %vm1668, %v1658
      %1676 = vst.msk [vmem:[#allocation2 + $0x1c] sm:$0xf] %vm1668, %v1659
      %v1742 = vunpack.c.l.s4 1935823168
      %v1743 = vunpack.c.0.s8 %v1742
      %v1744 = vlaneseq
      %v1745 = vshrl.u32 %v1744, 7
      %v1746 = vsub.s32 %v1743, %v1745
      %v1747 = vrot.slane %v445, %v1746
      %v1749 = vunpack.c.l.s4 1935823168
      %v1750 = vunpack.c.0.s8 %v1749
      %v1751 = vlaneseq
      %v1752 = vshrl.u32 %v1751, 7
      %v1753 = vsub.s32 %v1750, %v1752
      %v1754 = vrot.slane %v1747, %v1753
      %v1756 = vunpack.c.l.s4 1935823168
      %v1757 = vunpack.c.0.s8 %v1756
      %v1758 = vlaneseq
      %v1759 = vshrl.u32 %v1758, 7
      %v1760 = vsub.s32 %v1757, %v1759
      %v1761 = vrot.slane %v446, %v1760
      %v1763 = vunpack.c.l.s4 1935823168
      %v1764 = vunpack.c.0.s8 %v1763
      %v1765 = vlaneseq
      %v1766 = vshrl.u32 %v1765, 7
      %v1767 = vsub.s32 %v1764, %v1766
      %v1768 = vrot.slane %v1761, %v1767
      %v1770 = vunpack.c.l.s4 1935823168
      %v1771 = vunpack.c.0.s8 %v1770
      %v1772 = vlaneseq
      %v1773 = vshrl.u32 %v1772, 7
      %v1774 = vsub.s32 %v1771, %v1773
      %v1775 = vrot.slane %v447, %v1774
      %v1777 = vunpack.c.l.s4 1935823168
      %v1778 = vunpack.c.0.s8 %v1777
      %v1779 = vlaneseq
      %v1780 = vshrl.u32 %v1779, 7
      %v1781 = vsub.s32 %v1778, %v1780
      %v1782 = vrot.slane %v1775, %v1781
      %v1784 = vunpack.c.l.s4 1935823168
      %v1785 = vunpack.c.0.s8 %v1784
      %v1786 = vlaneseq
      %v1787 = vshrl.u32 %v1786, 7
      %v1788 = vsub.s32 %v1785, %v1787
      %v1789 = vrot.slane %v448, %v1788
      %v1791 = vunpack.c.l.s4 1935823168
      %v1792 = vunpack.c.0.s8 %v1791
      %v1793 = vlaneseq
      %v1794 = vshrl.u32 %v1793, 7
      %v1795 = vsub.s32 %v1792, %v1794
      %v1796 = vrot.slane %v1789, %v1795
      %v1798 = vunpack.c.l.s4 1935823168
      %v1799 = vunpack.c.0.s8 %v1798
      %v1800 = vlaneseq
      %v1801 = vshrl.u32 %v1800, 7
      %v1802 = vsub.s32 %v1799, %v1801
      %v1803 = vrot.slane %v449, %v1802
      %v1805 = vunpack.c.l.s4 1935823168
      %v1806 = vunpack.c.0.s8 %v1805
      %v1807 = vlaneseq
      %v1808 = vshrl.u32 %v1807, 7
      %v1809 = vsub.s32 %v1806, %v1808
      %v1810 = vrot.slane %v1803, %v1809
      %v1812 = vunpack.c.l.s4 1935823168
      %v1813 = vunpack.c.0.s8 %v1812
      %v1814 = vlaneseq
      %v1815 = vshrl.u32 %v1814, 7
      %v1816 = vsub.s32 %v1813, %v1815
      %v1817 = vrot.slane %v450, %v1816
      %v1819 = vunpack.c.l.s4 1935823168
      %v1820 = vunpack.c.0.s8 %v1819
      %v1821 = vlaneseq
      %v1822 = vshrl.u32 %v1821, 7
      %v1823 = vsub.s32 %v1820, %v1822
      %v1824 = vrot.slane %v1817, %v1823
      %v1826 = vunpack.c.l.s4 1935823168
      %v1827 = vunpack.c.0.s8 %v1826
      %v1828 = vlaneseq
      %v1829 = vshrl.u32 %v1828, 7
      %v1830 = vsub.s32 %v1827, %v1829
      %v1831 = vrot.slane %v451, %v1830
      %v1833 = vunpack.c.l.s4 1935823168
      %v1834 = vunpack.c.0.s8 %v1833
      %v1835 = vlaneseq
      %v1836 = vshrl.u32 %v1835, 7
      %v1837 = vsub.s32 %v1834, %v1836
      %v1838 = vrot.slane %v1831, %v1837
      %v1840 = vunpack.c.l.s4 1935823168
      %v1841 = vunpack.c.0.s8 %v1840
      %v1842 = vlaneseq
      %v1843 = vshrl.u32 %v1842, 7
      %v1844 = vsub.s32 %v1841, %v1843
      %v1845 = vrot.slane %v452, %v1844
      %v1847 = vunpack.c.l.s4 1935823168
      %v1848 = vunpack.c.0.s8 %v1847
      %v1849 = vlaneseq
      %v1850 = vshrl.u32 %v1849, 7
      %v1851 = vsub.s32 %v1848, %v1850
      %v1852 = vrot.slane %v1845, %v1851
      %v1854 = vunpack.c.l.s4 1935823168
      %v1855 = vunpack.c.0.s8 %v1854
      %v1856 = vlaneseq
      %v1857 = vshrl.u32 %v1856, 7
      %v1858 = vsub.s32 %v1855, %v1857
      %v1859 = vrot.slane %v453, %v1858
      %v1861 = vunpack.c.l.s4 1935823168
      %v1862 = vunpack.c.0.s8 %v1861
      %v1863 = vlaneseq
      %v1864 = vshrl.u32 %v1863, 7
      %v1865 = vsub.s32 %v1862, %v1864
      %v1866 = vrot.slane %v1859, %v1865
      %v1868 = vunpack.c.l.s4 1935823168
      %v1869 = vunpack.c.0.s8 %v1868
      %v1870 = vlaneseq
      %v1871 = vshrl.u32 %v1870, 7
      %v1872 = vsub.s32 %v1869, %v1871
      %v1873 = vrot.slane %v454, %v1872
      %v1875 = vunpack.c.l.s4 1935823168
      %v1876 = vunpack.c.0.s8 %v1875
      %v1877 = vlaneseq
      %v1878 = vshrl.u32 %v1877, 7
      %v1879 = vsub.s32 %v1876, %v1878
      %v1880 = vrot.slane %v1873, %v1879
      %v1882 = vunpack.c.l.s4 1935823168
      %v1883 = vunpack.c.0.s8 %v1882
      %v1884 = vlaneseq
      %v1885 = vshrl.u32 %v1884, 7
      %v1886 = vsub.s32 %v1883, %v1885
      %v1887 = vrot.slane %v455, %v1886
      %v1889 = vunpack.c.l.s4 1935823168
      %v1890 = vunpack.c.0.s8 %v1889
      %v1891 = vlaneseq
      %v1892 = vshrl.u32 %v1891, 7
      %v1893 = vsub.s32 %v1890, %v1892
      %v1894 = vrot.slane %v1887, %v1893
      %v1896 = vunpack.c.l.s4 1935823168
      %v1897 = vunpack.c.0.s8 %v1896
      %v1898 = vlaneseq
      %v1899 = vshrl.u32 %v1898, 7
      %v1900 = vsub.s32 %v1897, %v1899
      %v1901 = vrot.slane %v456, %v1900
      %v1903 = vunpack.c.l.s4 1935823168
      %v1904 = vunpack.c.0.s8 %v1903
      %v1905 = vlaneseq
      %v1906 = vshrl.u32 %v1905, 7
      %v1907 = vsub.s32 %v1904, %v1906
      %v1908 = vrot.slane %v1901, %v1907
      %v1910 = vunpack.c.l.s4 1935823168
      %v1911 = vunpack.c.0.s8 %v1910
      %v1912 = vlaneseq
      %v1913 = vshrl.u32 %v1912, 7
      %v1914 = vsub.s32 %v1911, %v1913
      %v1915 = vrot.slane %v457, %v1914
      %v1917 = vunpack.c.l.s4 1935823168
      %v1918 = vunpack.c.0.s8 %v1917
      %v1919 = vlaneseq
      %v1920 = vshrl.u32 %v1919, 7
      %v1921 = vsub.s32 %v1918, %v1920
      %v1922 = vrot.slane %v1915, %v1921
      %v1924 = vunpack.c.l.s4 1935823168
      %v1925 = vunpack.c.0.s8 %v1924
      %v1926 = vlaneseq
      %v1927 = vshrl.u32 %v1926, 7
      %v1928 = vsub.s32 %v1925, %v1927
      %v1929 = vrot.slane %v458, %v1928
      %v1931 = vunpack.c.l.s4 1935823168
      %v1932 = vunpack.c.0.s8 %v1931
      %v1933 = vlaneseq
      %v1934 = vshrl.u32 %v1933, 7
      %v1935 = vsub.s32 %v1932, %v1934
      %v1936 = vrot.slane %v1929, %v1935
      %v1938 = vunpack.c.l.s4 1935823168
      %v1939 = vunpack.c.0.s8 %v1938
      %v1940 = vlaneseq
      %v1941 = vshrl.u32 %v1940, 7
      %v1942 = vsub.s32 %v1939, %v1941
      %v1943 = vrot.slane %v459, %v1942
      %v1945 = vunpack.c.l.s4 1935823168
      %v1946 = vunpack.c.0.s8 %v1945
      %v1947 = vlaneseq
      %v1948 = vshrl.u32 %v1947, 7
      %v1949 = vsub.s32 %v1946, %v1948
      %v1950 = vrot.slane %v1943, %v1949
      %v1952 = vunpack.c.l.s4 1935823168
      %v1953 = vunpack.c.0.s8 %v1952
      %v1954 = vlaneseq
      %v1955 = vshrl.u32 %v1954, 7
      %v1956 = vsub.s32 %v1953, %v1955
      %v1957 = vrot.slane %v460, %v1956
      %v1959 = vunpack.c.l.s4 1935823168
      %v1960 = vunpack.c.0.s8 %v1959
      %v1961 = vlaneseq
      %v1962 = vshrl.u32 %v1961, 7
      %v1963 = vsub.s32 %v1960, %v1962
      %v1964 = vrot.slane %v1957, %v1963
      %v1966 = vunpack.c.l.s4 1935823168
      %v1967 = vunpack.c.0.s8 %v1966
      %v1968 = vlaneseq
      %v1969 = vshrl.u32 %v1968, 7
      %v1970 = vsub.s32 %v1967, %v1969
      %v1971 = vrot.slane %v461, %v1970
      %v1973 = vunpack.c.l.s4 1935823168
      %v1974 = vunpack.c.0.s8 %v1973
      %v1975 = vlaneseq
      %v1976 = vshrl.u32 %v1975, 7
      %v1977 = vsub.s32 %v1974, %v1976
      %v1978 = vrot.slane %v1971, %v1977
      %v1980 = vunpack.c.l.s4 1935823168
      %v1981 = vunpack.c.0.s8 %v1980
      %v1982 = vlaneseq
      %v1983 = vshrl.u32 %v1982, 7
      %v1984 = vsub.s32 %v1981, %v1983
      %v1985 = vrot.slane %v462, %v1984
      %v1987 = vunpack.c.l.s4 1935823168
      %v1988 = vunpack.c.0.s8 %v1987
      %v1989 = vlaneseq
      %v1990 = vshrl.u32 %v1989, 7
      %v1991 = vsub.s32 %v1988, %v1990
      %v1992 = vrot.slane %v1985, %v1991
      %v1994 = vunpack.c.l.s4 1935823168
      %v1995 = vunpack.c.0.s8 %v1994
      %v1996 = vlaneseq
      %v1997 = vshrl.u32 %v1996, 7
      %v1998 = vsub.s32 %v1995, %v1997
      %v1999 = vrot.slane %v463, %v1998
      %v2001 = vunpack.c.l.s4 1935823168
      %v2002 = vunpack.c.0.s8 %v2001
      %v2003 = vlaneseq
      %v2004 = vshrl.u32 %v2003, 7
      %v2005 = vsub.s32 %v2002, %v2004
      %v2006 = vrot.slane %v1999, %v2005
      %v2008 = vunpack.c.l.s4 1935823168
      %v2009 = vunpack.c.0.s8 %v2008
      %v2010 = vlaneseq
      %v2011 = vshrl.u32 %v2010, 7
      %v2012 = vsub.s32 %v2009, %v2011
      %v2013 = vrot.slane %v464, %v2012
      %v2015 = vunpack.c.l.s4 1935823168
      %v2016 = vunpack.c.0.s8 %v2015
      %v2017 = vlaneseq
      %v2018 = vshrl.u32 %v2017, 7
      %v2019 = vsub.s32 %v2016, %v2018
      %v2020 = vrot.slane %v2013, %v2019
      %v2022 = vunpack.c.l.s4 1935823168
      %v2023 = vunpack.c.0.s8 %v2022
      %v2024 = vlaneseq
      %v2025 = vshrl.u32 %v2024, 7
      %v2026 = vsub.s32 %v2023, %v2025
      %v2027 = vrot.slane %v465, %v2026
      %v2029 = vunpack.c.l.s4 1935823168
      %v2030 = vunpack.c.0.s8 %v2029
      %v2031 = vlaneseq
      %v2032 = vshrl.u32 %v2031, 7
      %v2033 = vsub.s32 %v2030, %v2032
      %v2034 = vrot.slane %v2027, %v2033
      %v2036 = vunpack.c.l.s4 1935823168
      %v2037 = vunpack.c.0.s8 %v2036
      %v2038 = vlaneseq
      %v2039 = vshrl.u32 %v2038, 7
      %v2040 = vsub.s32 %v2037, %v2039
      %v2041 = vrot.slane %v466, %v2040
      %v2043 = vunpack.c.l.s4 1935823168
      %v2044 = vunpack.c.0.s8 %v2043
      %v2045 = vlaneseq
      %v2046 = vshrl.u32 %v2045, 7
      %v2047 = vsub.s32 %v2044, %v2046
      %v2048 = vrot.slane %v2041, %v2047
      %v2050 = vunpack.c.l.s4 1935823168
      %v2051 = vunpack.c.0.s8 %v2050
      %v2052 = vlaneseq
      %v2053 = vshrl.u32 %v2052, 7
      %v2054 = vsub.s32 %v2051, %v2053
      %v2055 = vrot.slane %v467, %v2054
      %v2057 = vunpack.c.l.s4 1935823168
      %v2058 = vunpack.c.0.s8 %v2057
      %v2059 = vlaneseq
      %v2060 = vshrl.u32 %v2059, 7
      %v2061 = vsub.s32 %v2058, %v2060
      %v2062 = vrot.slane %v2055, %v2061
      %v2064 = vunpack.c.l.s4 1935823168
      %v2065 = vunpack.c.0.s8 %v2064
      %v2066 = vlaneseq
      %v2067 = vshrl.u32 %v2066, 7
      %v2068 = vsub.s32 %v2065, %v2067
      %v2069 = vrot.slane %v468, %v2068
      %v2071 = vunpack.c.l.s4 1935823168
      %v2072 = vunpack.c.0.s8 %v2071
      %v2073 = vlaneseq
      %v2074 = vshrl.u32 %v2073, 7
      %v2075 = vsub.s32 %v2072, %v2074
      %v2076 = vrot.slane %v2069, %v2075
      %v2078 = vunpack.c.l.s4 1935823168
      %v2079 = vunpack.c.0.s8 %v2078
      %v2080 = vlaneseq
      %v2081 = vshrl.u32 %v2080, 7
      %v2082 = vsub.s32 %v2079, %v2081
      %v2083 = vrot.slane %v469, %v2082
      %v2085 = vunpack.c.l.s4 1935823168
      %v2086 = vunpack.c.0.s8 %v2085
      %v2087 = vlaneseq
      %v2088 = vshrl.u32 %v2087, 7
      %v2089 = vsub.s32 %v2086, %v2088
      %v2090 = vrot.slane %v2083, %v2089
      %v2092 = vunpack.c.l.s4 1935823168
      %v2093 = vunpack.c.0.s8 %v2092
      %v2094 = vlaneseq
      %v2095 = vshrl.u32 %v2094, 7
      %v2096 = vsub.s32 %v2093, %v2095
      %v2097 = vrot.slane %v470, %v2096
      %v2099 = vunpack.c.l.s4 1935823168
      %v2100 = vunpack.c.0.s8 %v2099
      %v2101 = vlaneseq
      %v2102 = vshrl.u32 %v2101, 7
      %v2103 = vsub.s32 %v2100, %v2102
      %v2104 = vrot.slane %v2097, %v2103
      %v2106 = vunpack.c.l.s4 1935823168
      %v2107 = vunpack.c.0.s8 %v2106
      %v2108 = vlaneseq
      %v2109 = vshrl.u32 %v2108, 7
      %v2110 = vsub.s32 %v2107, %v2109
      %v2111 = vrot.slane %v471, %v2110
      %v2113 = vunpack.c.l.s4 1935823168
      %v2114 = vunpack.c.0.s8 %v2113
      %v2115 = vlaneseq
      %v2116 = vshrl.u32 %v2115, 7
      %v2117 = vsub.s32 %v2114, %v2116
      %v2118 = vrot.slane %v2111, %v2117
      %v2120 = vunpack.c.l.s4 1935823168
      %v2121 = vunpack.c.0.s8 %v2120
      %v2122 = vlaneseq
      %v2123 = vshrl.u32 %v2122, 7
      %v2124 = vsub.s32 %v2121, %v2123
      %v2125 = vrot.slane %v472, %v2124
      %v2127 = vunpack.c.l.s4 1935823168
      %v2128 = vunpack.c.0.s8 %v2127
      %v2129 = vlaneseq
      %v2130 = vshrl.u32 %v2129, 7
      %v2131 = vsub.s32 %v2128, %v2130
      %v2132 = vrot.slane %v2125, %v2131
      %v2134 = vunpack.c.l.s4 1935823168
      %v2135 = vunpack.c.0.s8 %v2134
      %v2136 = vlaneseq
      %v2137 = vshrl.u32 %v2136, 7
      %v2138 = vsub.s32 %v2135, %v2137
      %v2139 = vrot.slane %v473, %v2138
      %v2141 = vunpack.c.l.s4 1935823168
      %v2142 = vunpack.c.0.s8 %v2141
      %v2143 = vlaneseq
      %v2144 = vshrl.u32 %v2143, 7
      %v2145 = vsub.s32 %v2142, %v2144
      %v2146 = vrot.slane %v2139, %v2145
      %v2148 = vunpack.c.l.s4 1935823168
      %v2149 = vunpack.c.0.s8 %v2148
      %v2150 = vlaneseq
      %v2151 = vshrl.u32 %v2150, 7
      %v2152 = vsub.s32 %v2149, %v2151
      %v2153 = vrot.slane %v474, %v2152
      %v2155 = vunpack.c.l.s4 1935823168
      %v2156 = vunpack.c.0.s8 %v2155
      %v2157 = vlaneseq
      %v2158 = vshrl.u32 %v2157, 7
      %v2159 = vsub.s32 %v2156, %v2158
      %v2160 = vrot.slane %v2153, %v2159
      %v2162 = vunpack.c.l.s4 1935823168
      %v2163 = vunpack.c.0.s8 %v2162
      %v2164 = vlaneseq
      %v2165 = vshrl.u32 %v2164, 7
      %v2166 = vsub.s32 %v2163, %v2165
      %v2167 = vrot.slane %v475, %v2166
      %v2169 = vunpack.c.l.s4 1935823168
      %v2170 = vunpack.c.0.s8 %v2169
      %v2171 = vlaneseq
      %v2172 = vshrl.u32 %v2171, 7
      %v2173 = vsub.s32 %v2170, %v2172
      %v2174 = vrot.slane %v2167, %v2173
      %v2176 = vunpack.c.l.s4 1935823168
      %v2177 = vunpack.c.0.s8 %v2176
      %v2178 = vlaneseq
      %v2179 = vshrl.u32 %v2178, 7
      %v2180 = vsub.s32 %v2177, %v2179
      %v2181 = vrot.slane %v476, %v2180
      %v2183 = vunpack.c.l.s4 1935823168
      %v2184 = vunpack.c.0.s8 %v2183
      %v2185 = vlaneseq
      %v2186 = vshrl.u32 %v2185, 7
      %v2187 = vsub.s32 %v2184, %v2186
      %v2188 = vrot.slane %v2181, %v2187
      %v2190 = vunpack.c.l.s4 1935823168
      %v2191 = vunpack.c.0.s8 %v2190
      %v2192 = vlaneseq
      %v2193 = vshrl.u32 %v2192, 7
      %v2194 = vsub.s32 %v2191, %v2193
      %v2195 = vrot.slane %v477, %v2194
      %v2197 = vunpack.c.l.s4 1935823168
      %v2198 = vunpack.c.0.s8 %v2197
      %v2199 = vlaneseq
      %v2200 = vshrl.u32 %v2199, 7
      %v2201 = vsub.s32 %v2198, %v2200
      %v2202 = vrot.slane %v2195, %v2201
      %v2204 = vunpack.c.l.s4 1935823168
      %v2205 = vunpack.c.0.s8 %v2204
      %v2206 = vlaneseq
      %v2207 = vshrl.u32 %v2206, 7
      %v2208 = vsub.s32 %v2205, %v2207
      %v2209 = vrot.slane %v478, %v2208
      %v2211 = vunpack.c.l.s4 1935823168
      %v2212 = vunpack.c.0.s8 %v2211
      %v2213 = vlaneseq
      %v2214 = vshrl.u32 %v2213, 7
      %v2215 = vsub.s32 %v2212, %v2214
      %v2216 = vrot.slane %v2209, %v2215
      %v2218 = vunpack.c.l.s4 1935823168
      %v2219 = vunpack.c.0.s8 %v2218
      %v2220 = vlaneseq
      %v2221 = vshrl.u32 %v2220, 7
      %v2222 = vsub.s32 %v2219, %v2221
      %v2223 = vrot.slane %v479, %v2222
      %v2225 = vunpack.c.l.s4 1935823168
      %v2226 = vunpack.c.0.s8 %v2225
      %v2227 = vlaneseq
      %v2228 = vshrl.u32 %v2227, 7
      %v2229 = vsub.s32 %v2226, %v2228
      %v2230 = vrot.slane %v2223, %v2229
      %v2232 = vunpack.c.l.s4 1935823168
      %v2233 = vunpack.c.0.s8 %v2232
      %v2234 = vlaneseq
      %v2235 = vshrl.u32 %v2234, 7
      %v2236 = vsub.s32 %v2233, %v2235
      %v2237 = vrot.slane %v480, %v2236
      %v2239 = vunpack.c.l.s4 1935823168
      %v2240 = vunpack.c.0.s8 %v2239
      %v2241 = vlaneseq
      %v2242 = vshrl.u32 %v2241, 7
      %v2243 = vsub.s32 %v2240, %v2242
      %v2244 = vrot.slane %v2237, %v2243
      %v2246 = vunpack.c.l.s4 1935823168
      %v2247 = vunpack.c.0.s8 %v2246
      %v2248 = vlaneseq
      %v2249 = vshrl.u32 %v2248, 7
      %v2250 = vsub.s32 %v2247, %v2249
      %v2251 = vrot.slane %v481, %v2250
      %v2253 = vunpack.c.l.s4 1935823168
      %v2254 = vunpack.c.0.s8 %v2253
      %v2255 = vlaneseq
      %v2256 = vshrl.u32 %v2255, 7
      %v2257 = vsub.s32 %v2254, %v2256
      %v2258 = vrot.slane %v2251, %v2257
      %v2260 = vunpack.c.l.s4 1935823168
      %v2261 = vunpack.c.0.s8 %v2260
      %v2262 = vlaneseq
      %v2263 = vshrl.u32 %v2262, 7
      %v2264 = vsub.s32 %v2261, %v2263
      %v2265 = vrot.slane %v482, %v2264
      %v2267 = vunpack.c.l.s4 1935823168
      %v2268 = vunpack.c.0.s8 %v2267
      %v2269 = vlaneseq
      %v2270 = vshrl.u32 %v2269, 7
      %v2271 = vsub.s32 %v2268, %v2270
      %v2272 = vrot.slane %v2265, %v2271
      %v2274 = vunpack.c.l.s4 1935823168
      %v2275 = vunpack.c.0.s8 %v2274
      %v2276 = vlaneseq
      %v2277 = vshrl.u32 %v2276, 7
      %v2278 = vsub.s32 %v2275, %v2277
      %v2279 = vrot.slane %v483, %v2278
      %v2281 = vunpack.c.l.s4 1935823168
      %v2282 = vunpack.c.0.s8 %v2281
      %v2283 = vlaneseq
      %v2284 = vshrl.u32 %v2283, 7
      %v2285 = vsub.s32 %v2282, %v2284
      %v2286 = vrot.slane %v2279, %v2285
      %v2288 = vunpack.c.l.s4 1935823168
      %v2289 = vunpack.c.0.s8 %v2288
      %v2290 = vlaneseq
      %v2291 = vshrl.u32 %v2290, 7
      %v2292 = vsub.s32 %v2289, %v2291
      %v2293 = vrot.slane %v484, %v2292
      %v2295 = vunpack.c.l.s4 1935823168
      %v2296 = vunpack.c.0.s8 %v2295
      %v2297 = vlaneseq
      %v2298 = vshrl.u32 %v2297, 7
      %v2299 = vsub.s32 %v2296, %v2298
      %v2300 = vrot.slane %v2293, %v2299
      %v2302 = vunpack.c.l.s4 1935823168
      %v2303 = vunpack.c.0.s8 %v2302
      %v2304 = vlaneseq
      %v2305 = vshrl.u32 %v2304, 7
      %v2306 = vsub.s32 %v2303, %v2305
      %v2307 = vrot.slane %v485, %v2306
      %v2309 = vunpack.c.l.s4 1935823168
      %v2310 = vunpack.c.0.s8 %v2309
      %v2311 = vlaneseq
      %v2312 = vshrl.u32 %v2311, 7
      %v2313 = vsub.s32 %v2310, %v2312
      %v2314 = vrot.slane %v2307, %v2313
      %v2316 = vunpack.c.l.s4 1935823168
      %v2317 = vunpack.c.0.s8 %v2316
      %v2318 = vlaneseq
      %v2319 = vshrl.u32 %v2318, 7
      %v2320 = vsub.s32 %v2317, %v2319
      %v2321 = vrot.slane %v486, %v2320
      %v2323 = vunpack.c.l.s4 1935823168
      %v2324 = vunpack.c.0.s8 %v2323
      %v2325 = vlaneseq
      %v2326 = vshrl.u32 %v2325, 7
      %v2327 = vsub.s32 %v2324, %v2326
      %v2328 = vrot.slane %v2321, %v2327
      %v2330 = vunpack.c.l.s4 1935823168
      %v2331 = vunpack.c.0.s8 %v2330
      %v2332 = vlaneseq
      %v2333 = vshrl.u32 %v2332, 7
      %v2334 = vsub.s32 %v2331, %v2333
      %v2335 = vrot.slane %v487, %v2334
      %v2337 = vunpack.c.l.s4 1935823168
      %v2338 = vunpack.c.0.s8 %v2337
      %v2339 = vlaneseq
      %v2340 = vshrl.u32 %v2339, 7
      %v2341 = vsub.s32 %v2338, %v2340
      %v2342 = vrot.slane %v2335, %v2341
      %v2344 = vunpack.c.l.s4 1935823168
      %v2345 = vunpack.c.0.s8 %v2344
      %v2346 = vlaneseq
      %v2347 = vshrl.u32 %v2346, 7
      %v2348 = vsub.s32 %v2345, %v2347
      %v2349 = vrot.slane %v488, %v2348
      %v2351 = vunpack.c.l.s4 1935823168
      %v2352 = vunpack.c.0.s8 %v2351
      %v2353 = vlaneseq
      %v2354 = vshrl.u32 %v2353, 7
      %v2355 = vsub.s32 %v2352, %v2354
      %v2356 = vrot.slane %v2349, %v2355
      %v2358 = vunpack.c.l.s4 1935823168
      %v2359 = vunpack.c.0.s8 %v2358
      %v2360 = vlaneseq
      %v2361 = vshrl.u32 %v2360, 7
      %v2362 = vsub.s32 %v2359, %v2361
      %v2363 = vrot.slane %v489, %v2362
      %v2365 = vunpack.c.l.s4 1935823168
      %v2366 = vunpack.c.0.s8 %v2365
      %v2367 = vlaneseq
      %v2368 = vshrl.u32 %v2367, 7
      %v2369 = vsub.s32 %v2366, %v2368
      %v2370 = vrot.slane %v2363, %v2369
      %v2372 = vunpack.c.l.s4 1935823168
      %v2373 = vunpack.c.0.s8 %v2372
      %v2374 = vlaneseq
      %v2375 = vshrl.u32 %v2374, 7
      %v2376 = vsub.s32 %v2373, %v2375
      %v2377 = vrot.slane %v490, %v2376
      %v2379 = vunpack.c.l.s4 1935823168
      %v2380 = vunpack.c.0.s8 %v2379
      %v2381 = vlaneseq
      %v2382 = vshrl.u32 %v2381, 7
      %v2383 = vsub.s32 %v2380, %v2382
      %v2384 = vrot.slane %v2377, %v2383
      %v2386 = vunpack.c.l.s4 1935823168
      %v2387 = vunpack.c.0.s8 %v2386
      %v2388 = vlaneseq
      %v2389 = vshrl.u32 %v2388, 7
      %v2390 = vsub.s32 %v2387, %v2389
      %v2391 = vrot.slane %v491, %v2390
      %v2393 = vunpack.c.l.s4 1935823168
      %v2394 = vunpack.c.0.s8 %v2393
      %v2395 = vlaneseq
      %v2396 = vshrl.u32 %v2395, 7
      %v2397 = vsub.s32 %v2394, %v2396
      %v2398 = vrot.slane %v2391, %v2397
      %v2400 = vunpack.c.l.s4 1935823168
      %v2401 = vunpack.c.0.s8 %v2400
      %v2402 = vlaneseq
      %v2403 = vshrl.u32 %v2402, 7
      %v2404 = vsub.s32 %v2401, %v2403
      %v2405 = vrot.slane %v492, %v2404
      %v2407 = vunpack.c.l.s4 1935823168
      %v2408 = vunpack.c.0.s8 %v2407
      %v2409 = vlaneseq
      %v2410 = vshrl.u32 %v2409, 7
      %v2411 = vsub.s32 %v2408, %v2410
      %v2412 = vrot.slane %v2405, %v2411
      %v2414 = vunpack.c.l.s4 1935823168
      %v2415 = vunpack.c.0.s8 %v2414
      %v2416 = vlaneseq
      %v2417 = vshrl.u32 %v2416, 7
      %v2418 = vsub.s32 %v2415, %v2417
      %v2419 = vrot.slane %v493, %v2418
      %v2421 = vunpack.c.l.s4 1935823168
      %v2422 = vunpack.c.0.s8 %v2421
      %v2423 = vlaneseq
      %v2424 = vshrl.u32 %v2423, 7
      %v2425 = vsub.s32 %v2422, %v2424
      %v2426 = vrot.slane %v2419, %v2425
      %v2428 = vunpack.c.l.s4 1935823168
      %v2429 = vunpack.c.0.s8 %v2428
      %v2430 = vlaneseq
      %v2431 = vshrl.u32 %v2430, 7
      %v2432 = vsub.s32 %v2429, %v2431
      %v2433 = vrot.slane %v494, %v2432
      %v2435 = vunpack.c.l.s4 1935823168
      %v2436 = vunpack.c.0.s8 %v2435
      %v2437 = vlaneseq
      %v2438 = vshrl.u32 %v2437, 7
      %v2439 = vsub.s32 %v2436, %v2438
      %v2440 = vrot.slane %v2433, %v2439
      %v2442 = vunpack.c.l.s4 1935823168
      %v2443 = vunpack.c.0.s8 %v2442
      %v2444 = vlaneseq
      %v2445 = vshrl.u32 %v2444, 7
      %v2446 = vsub.s32 %v2443, %v2445
      %v2447 = vrot.slane %v495, %v2446
      %v2449 = vunpack.c.l.s4 1935823168
      %v2450 = vunpack.c.0.s8 %v2449
      %v2451 = vlaneseq
      %v2452 = vshrl.u32 %v2451, 7
      %v2453 = vsub.s32 %v2450, %v2452
      %v2454 = vrot.slane %v2447, %v2453
      %v2456 = vunpack.c.l.s4 1935823168
      %v2457 = vunpack.c.0.s8 %v2456
      %v2458 = vlaneseq
      %v2459 = vshrl.u32 %v2458, 7
      %v2460 = vsub.s32 %v2457, %v2459
      %v2461 = vrot.slane %v496, %v2460
      %v2463 = vunpack.c.l.s4 1935823168
      %v2464 = vunpack.c.0.s8 %v2463
      %v2465 = vlaneseq
      %v2466 = vshrl.u32 %v2465, 7
      %v2467 = vsub.s32 %v2464, %v2466
      %v2468 = vrot.slane %v2461, %v2467
      %v2470 = vunpack.c.l.s4 1935823168
      %v2471 = vunpack.c.0.s8 %v2470
      %v2472 = vlaneseq
      %v2473 = vshrl.u32 %v2472, 7
      %v2474 = vsub.s32 %v2471, %v2473
      %v2475 = vrot.slane %v497, %v2474
      %v2477 = vunpack.c.l.s4 1935823168
      %v2478 = vunpack.c.0.s8 %v2477
      %v2479 = vlaneseq
      %v2480 = vshrl.u32 %v2479, 7
      %v2481 = vsub.s32 %v2478, %v2480
      %v2482 = vrot.slane %v2475, %v2481
      %v2484 = vunpack.c.l.s4 1935823168
      %v2485 = vunpack.c.0.s8 %v2484
      %v2486 = vlaneseq
      %v2487 = vshrl.u32 %v2486, 7
      %v2488 = vsub.s32 %v2485, %v2487
      %v2489 = vrot.slane %v498, %v2488
      %v2491 = vunpack.c.l.s4 1935823168
      %v2492 = vunpack.c.0.s8 %v2491
      %v2493 = vlaneseq
      %v2494 = vshrl.u32 %v2493, 7
      %v2495 = vsub.s32 %v2492, %v2494
      %v2496 = vrot.slane %v2489, %v2495
      %v2498 = vunpack.c.l.s4 1935823168
      %v2499 = vunpack.c.0.s8 %v2498
      %v2500 = vlaneseq
      %v2501 = vshrl.u32 %v2500, 7
      %v2502 = vsub.s32 %v2499, %v2501
      %v2503 = vrot.slane %v499, %v2502
      %v2505 = vunpack.c.l.s4 1935823168
      %v2506 = vunpack.c.0.s8 %v2505
      %v2507 = vlaneseq
      %v2508 = vshrl.u32 %v2507, 7
      %v2509 = vsub.s32 %v2506, %v2508
      %v2510 = vrot.slane %v2503, %v2509
      %v2512 = vunpack.c.l.s4 1935823168
      %v2513 = vunpack.c.0.s8 %v2512
      %v2514 = vlaneseq
      %v2515 = vshrl.u32 %v2514, 7
      %v2516 = vsub.s32 %v2513, %v2515
      %v2517 = vrot.slane %v500, %v2516
      %v2519 = vunpack.c.l.s4 1935823168
      %v2520 = vunpack.c.0.s8 %v2519
      %v2521 = vlaneseq
      %v2522 = vshrl.u32 %v2521, 7
      %v2523 = vsub.s32 %v2520, %v2522
      %v2524 = vrot.slane %v2517, %v2523
      %v2526 = vunpack.c.l.s4 1935823168
      %v2527 = vunpack.c.0.s8 %v2526
      %v2528 = vlaneseq
      %v2529 = vshrl.u32 %v2528, 7
      %v2530 = vsub.s32 %v2527, %v2529
      %v2531 = vrot.slane %v501, %v2530
      %v2533 = vunpack.c.l.s4 1935823168
      %v2534 = vunpack.c.0.s8 %v2533
      %v2535 = vlaneseq
      %v2536 = vshrl.u32 %v2535, 7
      %v2537 = vsub.s32 %v2534, %v2536
      %v2538 = vrot.slane %v2531, %v2537
      %v2540 = vunpack.c.l.s4 1935823168
      %v2541 = vunpack.c.0.s8 %v2540
      %v2542 = vlaneseq
      %v2543 = vshrl.u32 %v2542, 7
      %v2544 = vsub.s32 %v2541, %v2543
      %v2545 = vrot.slane %v502, %v2544
      %v2547 = vunpack.c.l.s4 1935823168
      %v2548 = vunpack.c.0.s8 %v2547
      %v2549 = vlaneseq
      %v2550 = vshrl.u32 %v2549, 7
      %v2551 = vsub.s32 %v2548, %v2550
      %v2552 = vrot.slane %v2545, %v2551
      %v2554 = vunpack.c.l.s4 1935823168
      %v2555 = vunpack.c.0.s8 %v2554
      %v2556 = vlaneseq
      %v2557 = vshrl.u32 %v2556, 7
      %v2558 = vsub.s32 %v2555, %v2557
      %v2559 = vrot.slane %v503, %v2558
      %v2561 = vunpack.c.l.s4 1935823168
      %v2562 = vunpack.c.0.s8 %v2561
      %v2563 = vlaneseq
      %v2564 = vshrl.u32 %v2563, 7
      %v2565 = vsub.s32 %v2562, %v2564
      %v2566 = vrot.slane %v2559, %v2565
      %v2568 = vunpack.c.l.s4 1935823168
      %v2569 = vunpack.c.0.s8 %v2568
      %v2570 = vlaneseq
      %v2571 = vshrl.u32 %v2570, 7
      %v2572 = vsub.s32 %v2569, %v2571
      %v2573 = vrot.slane %v504, %v2572
      %v2575 = vunpack.c.l.s4 1935823168
      %v2576 = vunpack.c.0.s8 %v2575
      %v2577 = vlaneseq
      %v2578 = vshrl.u32 %v2577, 7
      %v2579 = vsub.s32 %v2576, %v2578
      %v2580 = vrot.slane %v2573, %v2579
      %v2582 = vunpack.c.l.s4 1935823168
      %v2583 = vunpack.c.0.s8 %v2582
      %v2584 = vlaneseq
      %v2585 = vshrl.u32 %v2584, 7
      %v2586 = vsub.s32 %v2583, %v2585
      %v2587 = vrot.slane %v505, %v2586
      %v2589 = vunpack.c.l.s4 1935823168
      %v2590 = vunpack.c.0.s8 %v2589
      %v2591 = vlaneseq
      %v2592 = vshrl.u32 %v2591, 7
      %v2593 = vsub.s32 %v2590, %v2592
      %v2594 = vrot.slane %v2587, %v2593
      %v2596 = vunpack.c.l.s4 1935823168
      %v2597 = vunpack.c.0.s8 %v2596
      %v2598 = vlaneseq
      %v2599 = vshrl.u32 %v2598, 7
      %v2600 = vsub.s32 %v2597, %v2599
      %v2601 = vrot.slane %v506, %v2600
      %v2603 = vunpack.c.l.s4 1935823168
      %v2604 = vunpack.c.0.s8 %v2603
      %v2605 = vlaneseq
      %v2606 = vshrl.u32 %v2605, 7
      %v2607 = vsub.s32 %v2604, %v2606
      %v2608 = vrot.slane %v2601, %v2607
      %v2610 = vunpack.c.l.s4 1935823168
      %v2611 = vunpack.c.0.s8 %v2610
      %v2612 = vlaneseq
      %v2613 = vshrl.u32 %v2612, 7
      %v2614 = vsub.s32 %v2611, %v2613
      %v2615 = vrot.slane %v507, %v2614
      %v2617 = vunpack.c.l.s4 1935823168
      %v2618 = vunpack.c.0.s8 %v2617
      %v2619 = vlaneseq
      %v2620 = vshrl.u32 %v2619, 7
      %v2621 = vsub.s32 %v2618, %v2620
      %v2622 = vrot.slane %v2615, %v2621
      %v2624 = vunpack.c.l.s4 1935823168
      %v2625 = vunpack.c.0.s8 %v2624
      %v2626 = vlaneseq
      %v2627 = vshrl.u32 %v2626, 7
      %v2628 = vsub.s32 %v2625, %v2627
      %v2629 = vrot.slane %v508, %v2628
      %v2631 = vunpack.c.l.s4 1935823168
      %v2632 = vunpack.c.0.s8 %v2631
      %v2633 = vlaneseq
      %v2634 = vshrl.u32 %v2633, 7
      %v2635 = vsub.s32 %v2632, %v2634
      %v2636 = vrot.slane %v2629, %v2635
      %v2637 = vunpack.c.l.b16 %v1754
      %v2638 = vunpack.c.l.b16 %v1768
      %v2639 = vunpack.c.l.b16 %v1782
      %v2640 = vunpack.c.l.b16 %v1796
      %v2641 = vunpack.c.l.b16 %v1810
      %v2642 = vunpack.c.l.b16 %v1824
      %v2643 = vunpack.c.l.b16 %v1838
      %v2644 = vunpack.c.l.b16 %v1852
      %v2645 = vunpack.c.l.b16 %v1866
      %v2646 = vunpack.c.l.b16 %v1880
      %v2647 = vunpack.c.l.b16 %v1894
      %v2648 = vunpack.c.l.b16 %v1908
      %v2649 = vunpack.c.l.b16 %v1922
      %v2650 = vunpack.c.l.b16 %v1936
      %v2651 = vunpack.c.l.b16 %v1950
      %v2652 = vunpack.c.l.b16 %v1964
      %v2653 = vunpack.c.l.b16 %v1978
      %v2654 = vunpack.c.l.b16 %v1992
      %v2655 = vunpack.c.l.b16 %v2006
      %v2656 = vunpack.c.l.b16 %v2020
      %v2657 = vunpack.c.l.b16 %v2034
      %v2658 = vunpack.c.l.b16 %v2048
      %v2659 = vunpack.c.l.b16 %v2062
      %v2660 = vunpack.c.l.b16 %v2076
      %v2661 = vunpack.c.l.b16 %v2090
      %v2662 = vunpack.c.l.b16 %v2104
      %v2663 = vunpack.c.l.b16 %v2118
      %v2664 = vunpack.c.l.b16 %v2132
      %v2665 = vunpack.c.l.b16 %v2146
      %v2666 = vunpack.c.l.b16 %v2160
      %v2667 = vunpack.c.l.b16 %v2174
      %v2668 = vunpack.c.l.b16 %v2188
      %v2669 = vunpack.c.l.b16 %v2202
      %v2670 = vunpack.c.l.b16 %v2216
      %v2671 = vunpack.c.l.b16 %v2230
      %v2672 = vunpack.c.l.b16 %v2244
      %v2673 = vunpack.c.l.b16 %v2258
      %v2674 = vunpack.c.l.b16 %v2272
      %v2675 = vunpack.c.l.b16 %v2286
      %v2676 = vunpack.c.l.b16 %v2300
      %v2677 = vunpack.c.l.b16 %v2314
      %v2678 = vunpack.c.l.b16 %v2328
      %v2679 = vunpack.c.l.b16 %v2342
      %v2680 = vunpack.c.l.b16 %v2356
      %v2681 = vunpack.c.l.b16 %v2370
      %v2682 = vunpack.c.l.b16 %v2384
      %v2683 = vunpack.c.l.b16 %v2398
      %v2684 = vunpack.c.l.b16 %v2412
      %v2685 = vunpack.c.l.b16 %v2426
      %v2686 = vunpack.c.l.b16 %v2440
      %v2687 = vunpack.c.l.b16 %v2454
      %v2688 = vunpack.c.l.b16 %v2468
      %v2689 = vunpack.c.l.b16 %v2482
      %v2690 = vunpack.c.l.b16 %v2496
      %v2691 = vunpack.c.l.b16 %v2510
      %v2692 = vunpack.c.l.b16 %v2524
      %v2693 = vunpack.c.l.b16 %v2538
      %v2694 = vunpack.c.l.b16 %v2552
      %v2695 = vunpack.c.l.b16 %v2566
      %v2696 = vunpack.c.l.b16 %v2580
      %v2697 = vunpack.c.l.b16 %v2594
      %v2698 = vunpack.c.l.b16 %v2608
      %v2699 = vunpack.c.l.b16 %v2622
      %v2700 = vunpack.c.l.b16 %v2636
      %v2701 = vrot.slane %v2638, 7
      %v2702 = vsel %vm1534, %v2701, %v2637
      %v2703 = vrot.slane %v2639, 6
      %v2704 = vsel %vm1537, %v2703, %v2702
      %v2705 = vrot.slane %v2640, 5
      %v2706 = vsel %vm1540, %v2705, %v2704
      %v2707 = vrot.slane %v2641, 4
      %v2708 = vsel %vm1543, %v2707, %v2706
      %v2709 = vrot.slane %v2642, 3
      %v2710 = vsel %vm1546, %v2709, %v2708
      %v2711 = vrot.slane %v2643, 2
      %v2712 = vsel %vm1549, %v2711, %v2710
      %v2713 = vrot.slane %v2644, 1
      %v2714 = vsel %vm1552, %v2713, %v2712
      %v2715 = vrot.slane %v2646, 7
      %v2716 = vsel %vm1534, %v2715, %v2645
      %v2717 = vrot.slane %v2647, 6
      %v2718 = vsel %vm1537, %v2717, %v2716
      %v2719 = vrot.slane %v2648, 5
      %v2720 = vsel %vm1540, %v2719, %v2718
      %v2721 = vrot.slane %v2649, 4
      %v2722 = vsel %vm1543, %v2721, %v2720
      %v2723 = vrot.slane %v2650, 3
      %v2724 = vsel %vm1546, %v2723, %v2722
      %v2725 = vrot.slane %v2651, 2
      %v2726 = vsel %vm1549, %v2725, %v2724
      %v2727 = vrot.slane %v2652, 1
      %v2728 = vsel %vm1552, %v2727, %v2726
      %v2729 = vrot.slane %v2654, 7
      %v2730 = vsel %vm1534, %v2729, %v2653
      %v2731 = vrot.slane %v2655, 6
      %v2732 = vsel %vm1537, %v2731, %v2730
      %v2733 = vrot.slane %v2656, 5
      %v2734 = vsel %vm1540, %v2733, %v2732
      %v2735 = vrot.slane %v2657, 4
      %v2736 = vsel %vm1543, %v2735, %v2734
      %v2737 = vrot.slane %v2658, 3
      %v2738 = vsel %vm1546, %v2737, %v2736
      %v2739 = vrot.slane %v2659, 2
      %v2740 = vsel %vm1549, %v2739, %v2738
      %v2741 = vrot.slane %v2660, 1
      %v2742 = vsel %vm1552, %v2741, %v2740
      %v2743 = vrot.slane %v2662, 7
      %v2744 = vsel %vm1534, %v2743, %v2661
      %v2745 = vrot.slane %v2663, 6
      %v2746 = vsel %vm1537, %v2745, %v2744
      %v2747 = vrot.slane %v2664, 5
      %v2748 = vsel %vm1540, %v2747, %v2746
      %v2749 = vrot.slane %v2665, 4
      %v2750 = vsel %vm1543, %v2749, %v2748
      %v2751 = vrot.slane %v2666, 3
      %v2752 = vsel %vm1546, %v2751, %v2750
      %v2753 = vrot.slane %v2667, 2
      %v2754 = vsel %vm1549, %v2753, %v2752
      %v2755 = vrot.slane %v2668, 1
      %v2756 = vsel %vm1552, %v2755, %v2754
      %v2757 = vrot.slane %v2670, 7
      %v2758 = vsel %vm1534, %v2757, %v2669
      %v2759 = vrot.slane %v2671, 6
      %v2760 = vsel %vm1537, %v2759, %v2758
      %v2761 = vrot.slane %v2672, 5
      %v2762 = vsel %vm1540, %v2761, %v2760
      %v2763 = vrot.slane %v2673, 4
      %v2764 = vsel %vm1543, %v2763, %v2762
      %v2765 = vrot.slane %v2674, 3
      %v2766 = vsel %vm1546, %v2765, %v2764
      %v2767 = vrot.slane %v2675, 2
      %v2768 = vsel %vm1549, %v2767, %v2766
      %v2769 = vrot.slane %v2676, 1
      %v2770 = vsel %vm1552, %v2769, %v2768
      %v2771 = vrot.slane %v2678, 7
      %v2772 = vsel %vm1534, %v2771, %v2677
      %v2773 = vrot.slane %v2679, 6
      %v2774 = vsel %vm1537, %v2773, %v2772
      %v2775 = vrot.slane %v2680, 5
      %v2776 = vsel %vm1540, %v2775, %v2774
      %v2777 = vrot.slane %v2681, 4
      %v2778 = vsel %vm1543, %v2777, %v2776
      %v2779 = vrot.slane %v2682, 3
      %v2780 = vsel %vm1546, %v2779, %v2778
      %v2781 = vrot.slane %v2683, 2
      %v2782 = vsel %vm1549, %v2781, %v2780
      %v2783 = vrot.slane %v2684, 1
      %v2784 = vsel %vm1552, %v2783, %v2782
      %v2785 = vrot.slane %v2686, 7
      %v2786 = vsel %vm1534, %v2785, %v2685
      %v2787 = vrot.slane %v2687, 6
      %v2788 = vsel %vm1537, %v2787, %v2786
      %v2789 = vrot.slane %v2688, 5
      %v2790 = vsel %vm1540, %v2789, %v2788
      %v2791 = vrot.slane %v2689, 4
      %v2792 = vsel %vm1543, %v2791, %v2790
      %v2793 = vrot.slane %v2690, 3
      %v2794 = vsel %vm1546, %v2793, %v2792
      %v2795 = vrot.slane %v2691, 2
      %v2796 = vsel %vm1549, %v2795, %v2794
      %v2797 = vrot.slane %v2692, 1
      %v2798 = vsel %vm1552, %v2797, %v2796
      %v2799 = vrot.slane %v2694, 7
      %v2800 = vsel %vm1534, %v2799, %v2693
      %v2801 = vrot.slane %v2695, 6
      %v2802 = vsel %vm1537, %v2801, %v2800
      %v2803 = vrot.slane %v2696, 5
      %v2804 = vsel %vm1540, %v2803, %v2802
      %v2805 = vrot.slane %v2697, 4
      %v2806 = vsel %vm1543, %v2805, %v2804
      %v2807 = vrot.slane %v2698, 3
      %v2808 = vsel %vm1546, %v2807, %v2806
      %v2809 = vrot.slane %v2699, 2
      %v2810 = vsel %vm1549, %v2809, %v2808
      %v2811 = vrot.slane %v2700, 1
      %v2812 = vsel %vm1552, %v2811, %v2810
      %v2813 = vpack.c.b16 %v2714, %v2714
      %v2814 = vpack.c.b16 %v2728, %v2728
      %v2815 = vpack.c.b16 %v2742, %v2742
      %v2816 = vpack.c.b16 %v2756, %v2756
      %v2817 = vpack.c.b16 %v2770, %v2770
      %v2818 = vpack.c.b16 %v2784, %v2784
      %v2819 = vpack.c.b16 %v2798, %v2798
      %v2820 = vpack.c.b16 %v2812, %v2812
      %2829 = vst.msk [vmem:[#allocation2 + $0x20] sm:$0xf] %vm1668, %v2813
      %2830 = vst.msk [vmem:[#allocation2 + $0x24] sm:$0xf] %vm1668, %v2814
      %2831 = vst.msk [vmem:[#allocation2 + $0x28] sm:$0xf] %vm1668, %v2815
      %2832 = vst.msk [vmem:[#allocation2 + $0x2c] sm:$0xf] %vm1668, %v2816
      %2833 = vst.msk [vmem:[#allocation2 + $0x30] sm:$0xf] %vm1668, %v2817
      %2834 = vst.msk [vmem:[#allocation2 + $0x34] sm:$0xf] %vm1668, %v2818
      %2835 = vst.msk [vmem:[#allocation2 + $0x38] sm:$0xf] %vm1668, %v2819
      %2836 = vst.msk [vmem:[#allocation2 + $0x3c] sm:$0xf] %vm1668, %v2820
      %v2837 = vld [vmem:[#allocation2] sm:$0xf]
      %v2838 = vld [vmem:[#allocation2 + $0x4] sm:$0xf]
      %v2839 = vld [vmem:[#allocation2 + $0x8] sm:$0xf]
      %v2840 = vld [vmem:[#allocation2 + $0xc] sm:$0xf]
      %v2841 = vld [vmem:[#allocation2 + $0x10] sm:$0xf]
      %v2842 = vld [vmem:[#allocation2 + $0x14] sm:$0xf]
      %v2843 = vld [vmem:[#allocation2 + $0x18] sm:$0xf]
      %v2844 = vld [vmem:[#allocation2 + $0x1c] sm:$0xf]
      %v2845 = vld [vmem:[%s358] sm:$0xf]
      %v2846 = vld [vmem:[%s358 + $0x4] sm:$0xf]
      %v2847 = vld [vmem:[%s364] sm:$0x1]
      %v2849 = vlaneseq
      %v2850 = vshrl.u32 %v2849, 7
      %v2851 = vsub.s32 0, %v2850
      %v2852 = vrot.slane %v2847, %v2851
      %v2862 = vunpack.c.l.b16 %v2837
      %v2863 = vunpack.c.l.b16 %v2838
      %v2864 = vunpack.c.l.b16 %v2839
      %v2865 = vunpack.c.l.b16 %v2840
      %v2866 = vunpack.c.l.b16 %v2841
      %v2867 = vunpack.c.l.b16 %v2842
      %v2868 = vunpack.c.l.b16 %v2843
      %v2869 = vunpack.c.l.b16 %v2844
      %v2870 = vpack.c.b16 %v2863, %v2862
      %v2871 = vpack.c.b16 %v2865, %v2864
      %v2872 = vpack.c.b16 %v2867, %v2866
      %v2873 = vpack.c.b16 %v2869, %v2868
      %v2876 = vunpack.c.l.b16 %v2845
      %v2877 = vunpack.c.l.b16 %v2846
      %v2878 = vpack.c.b16 %v2877, %v2876
      %vm2880 = vcmask 130048
      %v2882 = vsel %vm2880, %v2870, 0
      %v2885 = vsel %vm2880, %v2871, 0
      %v2888 = vsel %vm2880, %v2872, 0
      %v2891 = vsel %vm2880, %v2873, 0
      %2893 = vmatprep.subr.bf16.mxu0 0
      %2894 = vmatpush1.bf16.msra.mxu0 0
      %2895 = vmatprep.subr.bf16.mxu0 0
      %2896 = vmatpush1.bf16.msra.mxu0 0
      %2897 = vmatprep.subr.bf16.mxu0 0
      %2898 = vmatpush1.bf16.msra.mxu0 0
      %2899 = vmatprep.subr.bf16.mxu0 0
      %2900 = vmatpush1.bf16.msra.mxu0 0
      %2901 = vmatprep.subr.bf16.mxu0 0
      %2902 = vmatpush1.bf16.msra.mxu0 0
      %2903 = vmatprep.subr.bf16.mxu0 0
      %2904 = vmatpush1.bf16.msra.mxu0 0
      %2905 = vmatprep.subr.bf16.mxu0 0
      %2906 = vmatpush1.bf16.msra.mxu0 0
      %2907 = vmatprep.subr.bf16.mxu0 0
      %2908 = vmatpush1.bf16.msra.mxu0 %v2878
      %2909 = vmatprep.subr.bf16.mxu0 0
      %2910 = vmatpush2.bf16.msra.mxu0 0
      %2911 = vmatprep.subr.bf16.mxu0 0
      %2912 = vmatpush2.bf16.msra.mxu0 0
      %2913 = vmatprep.subr.bf16.mxu0 0
      %2914 = vmatpush2.bf16.msra.mxu0 0
      %2915 = vmatprep.subr.bf16.mxu0 0
      %2916 = vmatpush2.bf16.msra.mxu0 0
      %2917 = vmatprep.subr.bf16.mxu0 0
      %2918 = vmatpush2.bf16.msra.mxu0 0
      %2919 = vmatprep.subr.bf16.mxu0 0
      %2920 = vmatpush2.bf16.msra.mxu0 0
      %2921 = vmatprep.subr.bf16.mxu0 0
      %2922 = vmatpush2.bf16.msra.mxu0 0
      %2923 = vmatprep.subr.bf16.mxu0 0
      %2924 = vmatpush2.bf16.msra.mxu0 0
      %2925 = vmatprep.mubr.bf16.mxu0 0
      %2926 = vmatmul.mubr.bf16.gmra.mxu0 %v2882
      %v2927 = vpop.f32.mrf.mxu0
      %v2928 = vadd.f32 %v2852, %v2927
      %v2929 = vpop.f32.mrf.mxu0
      %v2930 = vpop.f32.mrf.mxu0
      %v2931 = vadd.f32 %v2852, %v2930
      %v2932 = vpop.f32.mrf.mxu0
      %2933 = vmatprep.mubr.bf16.mxu0 0
      %2934 = vmatmul.mubr.bf16.gmra.mxu0 %v2885
      %v2935 = vpop.f32.mrf.mxu0
      %v2936 = vadd.f32 %v2852, %v2935
      %v2937 = vpop.f32.mrf.mxu0
      %v2938 = vpop.f32.mrf.mxu0
      %v2939 = vadd.f32 %v2852, %v2938
      %v2940 = vpop.f32.mrf.mxu0
      %2941 = vmatprep.mubr.bf16.mxu0 0
      %2942 = vmatmul.mubr.bf16.gmra.mxu0 %v2888
      %v2943 = vpop.f32.mrf.mxu0
      %v2944 = vadd.f32 %v2852, %v2943
      %v2945 = vpop.f32.mrf.mxu0
      %v2946 = vpop.f32.mrf.mxu0
      %v2947 = vadd.f32 %v2852, %v2946
      %v2948 = vpop.f32.mrf.mxu0
      %2949 = vmatprep.mubr.bf16.mxu0 0
      %2950 = vmatmul.mubr.bf16.gmra.mxu0 %v2891
      %v2951 = vpop.f32.mrf.mxu0
      %v2952 = vadd.f32 %v2852, %v2951
      %v2953 = vpop.f32.mrf.mxu0
      %v2954 = vpop.f32.mrf.mxu0
      %v2955 = vadd.f32 %v2852, %v2954
      %v2956 = vpop.f32.mrf.mxu0
      %2957 = vdwg.mxu0
      %vm2958 = vcmp.ge.f32.partialorder %v2928, 0.0
      %vm2959 = vcmp.ge.f32.partialorder %v2931, 0.0
      %vm2960 = vcmp.ge.f32.partialorder %v2936, 0.0
      %vm2961 = vcmp.ge.f32.partialorder %v2939, 0.0
      %vm2962 = vcmp.ge.f32.partialorder %v2944, 0.0
      %vm2963 = vcmp.ge.f32.partialorder %v2947, 0.0
      %vm2964 = vcmp.ge.f32.partialorder %v2952, 0.0
      %vm2965 = vcmp.ge.f32.partialorder %v2955, 0.0
      %v2966 = vmul.f32 %v2928, 0.1
      %v2967 = vmul.f32 %v2931, 0.1
      %v2968 = vmul.f32 %v2936, 0.1
      %v2969 = vmul.f32 %v2939, 0.1
      %v2970 = vmul.f32 %v2944, 0.1
      %v2971 = vmul.f32 %v2947, 0.1
      %v2972 = vmul.f32 %v2952, 0.1
      %v2973 = vmul.f32 %v2955, 0.1
      %v2974 = vsel %vm2958, %v2928, %v2966
      %v2975 = vsel %vm2959, %v2931, %v2967
      %v2976 = vsel %vm2960, %v2936, %v2968
      %v2977 = vsel %vm2961, %v2939, %v2969
      %v2978 = vsel %vm2962, %v2944, %v2970
      %v2979 = vsel %vm2963, %v2947, %v2971
      %v2980 = vsel %vm2964, %v2952, %v2972
      %v2981 = vsel %vm2965, %v2955, %v2973
      %v2982 = vpack.c.bf16 %v2975, %v2974
      %v2983 = vpack.c.bf16 %v2977, %v2976
      %v2984 = vpack.c.bf16 %v2979, %v2978
      %v2985 = vpack.c.bf16 %v2981, %v2980
      %v2990 = vcombine.high %v2982, %v2982
      %v2992 = vunpack.c.l.s4 1966171168
      %v2993 = vunpack.c.0.s8 %v2992
      %v2994 = vlaneseq
      %v2995 = vshrl.u32 %v2994, 7
      %v2996 = vsub.s32 %v2993, %v2995
      %v2997 = vrot.slane %v2982, %v2996
      %v2999 = vunpack.c.l.s4 1966171168
      %v3000 = vunpack.c.0.s8 %v2999
      %v3001 = vlaneseq
      %v3002 = vshrl.u32 %v3001, 7
      %v3003 = vsub.s32 %v3000, %v3002
      %v3004 = vrot.slane %v2990, %v3003
      %v3005 = vcombine.high %v2997, %v2997
      %v3006 = vcombine.high %v3004, %v3004
      %v3008 = vunpack.c.l.s4 1966171168
      %v3009 = vunpack.c.0.s8 %v3008
      %v3010 = vlaneseq
      %v3011 = vshrl.u32 %v3010, 7
      %v3012 = vsub.s32 %v3009, %v3011
      %v3013 = vrot.slane %v2997, %v3012
      %v3015 = vunpack.c.l.s4 1966171168
      %v3016 = vunpack.c.0.s8 %v3015
      %v3017 = vlaneseq
      %v3018 = vshrl.u32 %v3017, 7
      %v3019 = vsub.s32 %v3016, %v3018
      %v3020 = vrot.slane %v3004, %v3019
      %v3022 = vunpack.c.l.s4 1966171168
      %v3023 = vunpack.c.0.s8 %v3022
      %v3024 = vlaneseq
      %v3025 = vshrl.u32 %v3024, 7
      %v3026 = vsub.s32 %v3023, %v3025
      %v3027 = vrot.slane %v3005, %v3026
      %v3029 = vunpack.c.l.s4 1966171168
      %v3030 = vunpack.c.0.s8 %v3029
      %v3031 = vlaneseq
      %v3032 = vshrl.u32 %v3031, 7
      %v3033 = vsub.s32 %v3030, %v3032
      %v3034 = vrot.slane %v3006, %v3033
      %v3035 = vcombine.high %v3013, %v3013
      %v3036 = vcombine.high %v3020, %v3020
      %v3037 = vcombine.high %v3027, %v3027
      %v3038 = vcombine.high %v3034, %v3034
      %v3039 = vcombine.high %v2983, %v2983
      %v3041 = vunpack.c.l.s4 1966171168
      %v3042 = vunpack.c.0.s8 %v3041
      %v3043 = vlaneseq
      %v3044 = vshrl.u32 %v3043, 7
      %v3045 = vsub.s32 %v3042, %v3044
      %v3046 = vrot.slane %v2983, %v3045
      %v3048 = vunpack.c.l.s4 1966171168
      %v3049 = vunpack.c.0.s8 %v3048
      %v3050 = vlaneseq
      %v3051 = vshrl.u32 %v3050, 7
      %v3052 = vsub.s32 %v3049, %v3051
      %v3053 = vrot.slane %v3039, %v3052
      %v3054 = vcombine.high %v3046, %v3046
      %v3055 = vcombine.high %v3053, %v3053
      %v3057 = vunpack.c.l.s4 1966171168
      %v3058 = vunpack.c.0.s8 %v3057
      %v3059 = vlaneseq
      %v3060 = vshrl.u32 %v3059, 7
      %v3061 = vsub.s32 %v3058, %v3060
      %v3062 = vrot.slane %v3046, %v3061
      %v3064 = vunpack.c.l.s4 1966171168
      %v3065 = vunpack.c.0.s8 %v3064
      %v3066 = vlaneseq
      %v3067 = vshrl.u32 %v3066, 7
      %v3068 = vsub.s32 %v3065, %v3067
      %v3069 = vrot.slane %v3053, %v3068
      %v3071 = vunpack.c.l.s4 1966171168
      %v3072 = vunpack.c.0.s8 %v3071
      %v3073 = vlaneseq
      %v3074 = vshrl.u32 %v3073, 7
      %v3075 = vsub.s32 %v3072, %v3074
      %v3076 = vrot.slane %v3054, %v3075
      %v3078 = vunpack.c.l.s4 1966171168
      %v3079 = vunpack.c.0.s8 %v3078
      %v3080 = vlaneseq
      %v3081 = vshrl.u32 %v3080, 7
      %v3082 = vsub.s32 %v3079, %v3081
      %v3083 = vrot.slane %v3055, %v3082
      %v3084 = vcombine.high %v3062, %v3062
      %v3085 = vcombine.high %v3069, %v3069
      %v3086 = vcombine.high %v3076, %v3076
      %v3087 = vcombine.high %v3083, %v3083
      %v3088 = vcombine.high %v2984, %v2984
      %v3090 = vunpack.c.l.s4 1966171168
      %v3091 = vunpack.c.0.s8 %v3090
      %v3092 = vlaneseq
      %v3093 = vshrl.u32 %v3092, 7
      %v3094 = vsub.s32 %v3091, %v3093
      %v3095 = vrot.slane %v2984, %v3094
      %v3097 = vunpack.c.l.s4 1966171168
      %v3098 = vunpack.c.0.s8 %v3097
      %v3099 = vlaneseq
      %v3100 = vshrl.u32 %v3099, 7
      %v3101 = vsub.s32 %v3098, %v3100
      %v3102 = vrot.slane %v3088, %v3101
      %v3103 = vcombine.high %v3095, %v3095
      %v3104 = vcombine.high %v3102, %v3102
      %v3106 = vunpack.c.l.s4 1966171168
      %v3107 = vunpack.c.0.s8 %v3106
      %v3108 = vlaneseq
      %v3109 = vshrl.u32 %v3108, 7
      %v3110 = vsub.s32 %v3107, %v3109
      %v3111 = vrot.slane %v3095, %v3110
      %v3113 = vunpack.c.l.s4 1966171168
      %v3114 = vunpack.c.0.s8 %v3113
      %v3115 = vlaneseq
      %v3116 = vshrl.u32 %v3115, 7
      %v3117 = vsub.s32 %v3114, %v3116
      %v3118 = vrot.slane %v3102, %v3117
      %v3120 = vunpack.c.l.s4 1966171168
      %v3121 = vunpack.c.0.s8 %v3120
      %v3122 = vlaneseq
      %v3123 = vshrl.u32 %v3122, 7
      %v3124 = vsub.s32 %v3121, %v3123
      %v3125 = vrot.slane %v3103, %v3124
      %v3127 = vunpack.c.l.s4 1966171168
      %v3128 = vunpack.c.0.s8 %v3127
      %v3129 = vlaneseq
      %v3130 = vshrl.u32 %v3129, 7
      %v3131 = vsub.s32 %v3128, %v3130
      %v3132 = vrot.slane %v3104, %v3131
      %v3133 = vcombine.high %v3111, %v3111
      %v3134 = vcombine.high %v3118, %v3118
      %v3135 = vcombine.high %v3125, %v3125
      %v3136 = vcombine.high %v3132, %v3132
      %v3137 = vcombine.high %v2985, %v2985
      %v3139 = vunpack.c.l.s4 1966171168
      %v3140 = vunpack.c.0.s8 %v3139
      %v3141 = vlaneseq
      %v3142 = vshrl.u32 %v3141, 7
      %v3143 = vsub.s32 %v3140, %v3142
      %v3144 = vrot.slane %v2985, %v3143
      %v3146 = vunpack.c.l.s4 1966171168
      %v3147 = vunpack.c.0.s8 %v3146
      %v3148 = vlaneseq
      %v3149 = vshrl.u32 %v3148, 7
      %v3150 = vsub.s32 %v3147, %v3149
      %v3151 = vrot.slane %v3137, %v3150
      %v3152 = vcombine.high %v3144, %v3144
      %v3153 = vcombine.high %v3151, %v3151
      %v3155 = vunpack.c.l.s4 1966171168
      %v3156 = vunpack.c.0.s8 %v3155
      %v3157 = vlaneseq
      %v3158 = vshrl.u32 %v3157, 7
      %v3159 = vsub.s32 %v3156, %v3158
      %v3160 = vrot.slane %v3144, %v3159
      %v3162 = vunpack.c.l.s4 1966171168
      %v3163 = vunpack.c.0.s8 %v3162
      %v3164 = vlaneseq
      %v3165 = vshrl.u32 %v3164, 7
      %v3166 = vsub.s32 %v3163, %v3165
      %v3167 = vrot.slane %v3151, %v3166
      %v3169 = vunpack.c.l.s4 1966171168
      %v3170 = vunpack.c.0.s8 %v3169
      %v3171 = vlaneseq
      %v3172 = vshrl.u32 %v3171, 7
      %v3173 = vsub.s32 %v3170, %v3172
      %v3174 = vrot.slane %v3152, %v3173
      %v3176 = vunpack.c.l.s4 1966171168
      %v3177 = vunpack.c.0.s8 %v3176
      %v3178 = vlaneseq
      %v3179 = vshrl.u32 %v3178, 7
      %v3180 = vsub.s32 %v3177, %v3179
      %v3181 = vrot.slane %v3153, %v3180
      %v3182 = vcombine.high %v3160, %v3160
      %v3183 = vcombine.high %v3167, %v3167
      %v3184 = vcombine.high %v3174, %v3174
      %v3185 = vcombine.high %v3181, %v3181
      %v3186 = vunpack.i.l.s16 %v3013
      %v3187 = vunpack.i.h.s16 %v3013
      %v3188 = vunpack.i.l.s16 %v3027
      %v3189 = vunpack.i.h.s16 %v3027
      %v3190 = vunpack.i.l.s16 %v3035
      %v3191 = vunpack.i.h.s16 %v3035
      %v3192 = vunpack.i.l.s16 %v3037
      %v3193 = vunpack.i.h.s16 %v3037
      %v3194 = vunpack.i.l.s16 %v3020
      %v3195 = vunpack.i.h.s16 %v3020
      %v3196 = vunpack.i.l.s16 %v3034
      %v3197 = vunpack.i.h.s16 %v3034
      %v3198 = vunpack.i.l.s16 %v3036
      %v3199 = vunpack.i.h.s16 %v3036
      %v3200 = vunpack.i.l.s16 %v3038
      %v3201 = vunpack.i.h.s16 %v3038
      %v3202 = vunpack.i.l.s16 %v3062
      %v3203 = vunpack.i.h.s16 %v3062
      %v3204 = vunpack.i.l.s16 %v3076
      %v3205 = vunpack.i.h.s16 %v3076
      %v3206 = vunpack.i.l.s16 %v3084
      %v3207 = vunpack.i.h.s16 %v3084
      %v3208 = vunpack.i.l.s16 %v3086
      %v3209 = vunpack.i.h.s16 %v3086
      %v3210 = vunpack.i.l.s16 %v3069
      %v3211 = vunpack.i.h.s16 %v3069
      %v3212 = vunpack.i.l.s16 %v3083
      %v3213 = vunpack.i.h.s16 %v3083
      %v3214 = vunpack.i.l.s16 %v3085
      %v3215 = vunpack.i.h.s16 %v3085
      %v3216 = vunpack.i.l.s16 %v3087
      %v3217 = vunpack.i.h.s16 %v3087
      %v3218 = vunpack.i.l.s16 %v3111
      %v3219 = vunpack.i.h.s16 %v3111
      %v3220 = vunpack.i.l.s16 %v3125
      %v3221 = vunpack.i.h.s16 %v3125
      %v3222 = vunpack.i.l.s16 %v3133
      %v3223 = vunpack.i.h.s16 %v3133
      %v3224 = vunpack.i.l.s16 %v3135
      %v3225 = vunpack.i.h.s16 %v3135
      %v3226 = vunpack.i.l.s16 %v3118
      %v3227 = vunpack.i.h.s16 %v3118
      %v3228 = vunpack.i.l.s16 %v3132
      %v3229 = vunpack.i.h.s16 %v3132
      %v3230 = vunpack.i.l.s16 %v3134
      %v3231 = vunpack.i.h.s16 %v3134
      %v3232 = vunpack.i.l.s16 %v3136
      %v3233 = vunpack.i.h.s16 %v3136
      %v3234 = vunpack.i.l.s16 %v3160
      %v3235 = vunpack.i.h.s16 %v3160
      %v3236 = vunpack.i.l.s16 %v3174
      %v3237 = vunpack.i.h.s16 %v3174
      %v3238 = vunpack.i.l.s16 %v3182
      %v3239 = vunpack.i.h.s16 %v3182
      %v3240 = vunpack.i.l.s16 %v3184
      %v3241 = vunpack.i.h.s16 %v3184
      %v3242 = vunpack.i.l.s16 %v3167
      %v3243 = vunpack.i.h.s16 %v3167
      %v3244 = vunpack.i.l.s16 %v3181
      %v3245 = vunpack.i.h.s16 %v3181
      %v3246 = vunpack.i.l.s16 %v3183
      %v3247 = vunpack.i.h.s16 %v3183
      %v3248 = vunpack.i.l.s16 %v3185
      %v3249 = vunpack.i.h.s16 %v3185
      %v3250 = vpack.i.b16 %v3186, %v3186
      %v3251 = vpack.i.b16 %v3187, %v3187
      %v3252 = vpack.i.b16 %v3188, %v3188
      %v3253 = vpack.i.b16 %v3189, %v3189
      %v3254 = vpack.i.b16 %v3190, %v3190
      %v3255 = vpack.i.b16 %v3191, %v3191
      %v3256 = vpack.i.b16 %v3192, %v3192
      %v3257 = vpack.i.b16 %v3193, %v3193
      %v3258 = vpack.i.b16 %v3194, %v3194
      %v3259 = vpack.i.b16 %v3195, %v3195
      %v3260 = vpack.i.b16 %v3196, %v3196
      %v3261 = vpack.i.b16 %v3197, %v3197
      %v3262 = vpack.i.b16 %v3198, %v3198
      %v3263 = vpack.i.b16 %v3199, %v3199
      %v3264 = vpack.i.b16 %v3200, %v3200
      %v3265 = vpack.i.b16 %v3201, %v3201
      %v3266 = vpack.i.b16 %v3202, %v3202
      %v3267 = vpack.i.b16 %v3203, %v3203
      %v3268 = vpack.i.b16 %v3204, %v3204
      %v3269 = vpack.i.b16 %v3205, %v3205
      %v3270 = vpack.i.b16 %v3206, %v3206
      %v3271 = vpack.i.b16 %v3207, %v3207
      %v3272 = vpack.i.b16 %v3208, %v3208
      %v3273 = vpack.i.b16 %v3209, %v3209
      %v3274 = vpack.i.b16 %v3210, %v3210
      %v3275 = vpack.i.b16 %v3211, %v3211
      %v3276 = vpack.i.b16 %v3212, %v3212
      %v3277 = vpack.i.b16 %v3213, %v3213
      %v3278 = vpack.i.b16 %v3214, %v3214
      %v3279 = vpack.i.b16 %v3215, %v3215
      %v3280 = vpack.i.b16 %v3216, %v3216
      %v3281 = vpack.i.b16 %v3217, %v3217
      %v3282 = vpack.i.b16 %v3218, %v3218
      %v3283 = vpack.i.b16 %v3219, %v3219
      %v3284 = vpack.i.b16 %v3220, %v3220
      %v3285 = vpack.i.b16 %v3221, %v3221
      %v3286 = vpack.i.b16 %v3222, %v3222
      %v3287 = vpack.i.b16 %v3223, %v3223
      %v3288 = vpack.i.b16 %v3224, %v3224
      %v3289 = vpack.i.b16 %v3225, %v3225
      %v3290 = vpack.i.b16 %v3226, %v3226
      %v3291 = vpack.i.b16 %v3227, %v3227
      %v3292 = vpack.i.b16 %v3228, %v3228
      %v3293 = vpack.i.b16 %v3229, %v3229
      %v3294 = vpack.i.b16 %v3230, %v3230
      %v3295 = vpack.i.b16 %v3231, %v3231
      %v3296 = vpack.i.b16 %v3232, %v3232
      %v3297 = vpack.i.b16 %v3233, %v3233
      %v3298 = vpack.i.b16 %v3234, %v3234
      %v3299 = vpack.i.b16 %v3235, %v3235
      %v3300 = vpack.i.b16 %v3236, %v3236
      %v3301 = vpack.i.b16 %v3237, %v3237
      %v3302 = vpack.i.b16 %v3238, %v3238
      %v3303 = vpack.i.b16 %v3239, %v3239
      %v3304 = vpack.i.b16 %v3240, %v3240
      %v3305 = vpack.i.b16 %v3241, %v3241
      %v3306 = vpack.i.b16 %v3242, %v3242
      %v3307 = vpack.i.b16 %v3243, %v3243
      %v3308 = vpack.i.b16 %v3244, %v3244
      %v3309 = vpack.i.b16 %v3245, %v3245
      %v3310 = vpack.i.b16 %v3246, %v3246
      %v3311 = vpack.i.b16 %v3247, %v3247
      %v3312 = vpack.i.b16 %v3248, %v3248
      %v3313 = vpack.i.b16 %v3249, %v3249
      %vm3378 = vcmask 1040384
      %vm3379 = vsmask.f32 256
      %vm3380 = vmand %vm3378, %vm3379
      %v3381 = vld [vmem:[%s378] sm:$0x1]
      %v3382 = vsel %vm3380, %v3250, %v3381
      %3383 = vst [vmem:[%s378] sm:$0x1] %v3382
      %v3384 = vld [vmem:[%s378 + $0x1] sm:$0x1]
      %v3385 = vsel %vm3380, %v3251, %v3384
      %3386 = vst [vmem:[%s378 + $0x1] sm:$0x1] %v3385
      %v3387 = vld [vmem:[%s378 + $0x2] sm:$0x1]
      %v3388 = vsel %vm3380, %v3252, %v3387
      %3389 = vst [vmem:[%s378 + $0x2] sm:$0x1] %v3388
      %v3390 = vld [vmem:[%s378 + $0x3] sm:$0x1]
      %v3391 = vsel %vm3380, %v3253, %v3390
      %3392 = vst [vmem:[%s378 + $0x3] sm:$0x1] %v3391
      %v3393 = vld [vmem:[%s378 + $0x4] sm:$0x1]
      %v3394 = vsel %vm3380, %v3254, %v3393
      %3395 = vst [vmem:[%s378 + $0x4] sm:$0x1] %v3394
      %v3396 = vld [vmem:[%s378 + $0x5] sm:$0x1]
      %v3397 = vsel %vm3380, %v3255, %v3396
      %3398 = vst [vmem:[%s378 + $0x5] sm:$0x1] %v3397
      %v3399 = vld [vmem:[%s378 + $0x6] sm:$0x1]
      %v3400 = vsel %vm3380, %v3256, %v3399
      %3401 = vst [vmem:[%s378 + $0x6] sm:$0x1] %v3400
      %v3402 = vld [vmem:[%s378 + $0x7] sm:$0x1]
      %v3403 = vsel %vm3380, %v3257, %v3402
      %3404 = vst [vmem:[%s378 + $0x7] sm:$0x1] %v3403
      %v3405 = vld [vmem:[%s378 + $0x8] sm:$0x1]
      %v3406 = vsel %vm3380, %v3258, %v3405
      %3407 = vst [vmem:[%s378 + $0x8] sm:$0x1] %v3406
      %v3408 = vld [vmem:[%s378 + $0x9] sm:$0x1]
      %v3409 = vsel %vm3380, %v3259, %v3408
      %3410 = vst [vmem:[%s378 + $0x9] sm:$0x1] %v3409
      %v3411 = vld [vmem:[%s378 + $0xa] sm:$0x1]
      %v3412 = vsel %vm3380, %v3260, %v3411
      %3413 = vst [vmem:[%s378 + $0xa] sm:$0x1] %v3412
      %v3414 = vld [vmem:[%s378 + $0xb] sm:$0x1]
      %v3415 = vsel %vm3380, %v3261, %v3414
      %3416 = vst [vmem:[%s378 + $0xb] sm:$0x1] %v3415
      %v3417 = vld [vmem:[%s378 + $0xc] sm:$0x1]
      %v3418 = vsel %vm3380, %v3262, %v3417
      %3419 = vst [vmem:[%s378 + $0xc] sm:$0x1] %v3418
      %v3420 = vld [vmem:[%s378 + $0xd] sm:$0x1]
      %v3421 = vsel %vm3380, %v3263, %v3420
      %3422 = vst [vmem:[%s378 + $0xd] sm:$0x1] %v3421
      %v3423 = vld [vmem:[%s378 + $0xe] sm:$0x1]
      %v3424 = vsel %vm3380, %v3264, %v3423
      %3425 = vst [vmem:[%s378 + $0xe] sm:$0x1] %v3424
      %v3426 = vld [vmem:[%s378 + $0xf] sm:$0x1]
      %v3427 = vsel %vm3380, %v3265, %v3426
      %3428 = vst [vmem:[%s378 + $0xf] sm:$0x1] %v3427
      %v3429 = vld [vmem:[%s378 + $0x10] sm:$0x1]
      %v3430 = vsel %vm3380, %v3266, %v3429
      %3431 = vst [vmem:[%s378 + $0x10] sm:$0x1] %v3430
      %v3432 = vld [vmem:[%s378 + $0x11] sm:$0x1]
      %v3433 = vsel %vm3380, %v3267, %v3432
      %3434 = vst [vmem:[%s378 + $0x11] sm:$0x1] %v3433
      %v3435 = vld [vmem:[%s378 + $0x12] sm:$0x1]
      %v3436 = vsel %vm3380, %v3268, %v3435
      %3437 = vst [vmem:[%s378 + $0x12] sm:$0x1] %v3436
      %v3438 = vld [vmem:[%s378 + $0x13] sm:$0x1]
      %v3439 = vsel %vm3380, %v3269, %v3438
      %3440 = vst [vmem:[%s378 + $0x13] sm:$0x1] %v3439
      %v3441 = vld [vmem:[%s378 + $0x14] sm:$0x1]
      %v3442 = vsel %vm3380, %v3270, %v3441
      %3443 = vst [vmem:[%s378 + $0x14] sm:$0x1] %v3442
      %v3444 = vld [vmem:[%s378 + $0x15] sm:$0x1]
      %v3445 = vsel %vm3380, %v3271, %v3444
      %3446 = vst [vmem:[%s378 + $0x15] sm:$0x1] %v3445
      %v3447 = vld [vmem:[%s378 + $0x16] sm:$0x1]
      %v3448 = vsel %vm3380, %v3272, %v3447
      %3449 = vst [vmem:[%s378 + $0x16] sm:$0x1] %v3448
      %v3450 = vld [vmem:[%s378 + $0x17] sm:$0x1]
      %v3451 = vsel %vm3380, %v3273, %v3450
      %3452 = vst [vmem:[%s378 + $0x17] sm:$0x1] %v3451
      %v3453 = vld [vmem:[%s378 + $0x18] sm:$0x1]
      %v3454 = vsel %vm3380, %v3274, %v3453
      %3455 = vst [vmem:[%s378 + $0x18] sm:$0x1] %v3454
      %v3456 = vld [vmem:[%s378 + $0x19] sm:$0x1]
      %v3457 = vsel %vm3380, %v3275, %v3456
      %3458 = vst [vmem:[%s378 + $0x19] sm:$0x1] %v3457
      %v3459 = vld [vmem:[%s378 + $0x1a] sm:$0x1]
      %v3460 = vsel %vm3380, %v3276, %v3459
      %3461 = vst [vmem:[%s378 + $0x1a] sm:$0x1] %v3460
      %v3462 = vld [vmem:[%s378 + $0x1b] sm:$0x1]
      %v3463 = vsel %vm3380, %v3277, %v3462
      %3464 = vst [vmem:[%s378 + $0x1b] sm:$0x1] %v3463
      %v3465 = vld [vmem:[%s378 + $0x1c] sm:$0x1]
      %v3466 = vsel %vm3380, %v3278, %v3465
      %3467 = vst [vmem:[%s378 + $0x1c] sm:$0x1] %v3466
      %v3468 = vld [vmem:[%s378 + $0x1d] sm:$0x1]
      %v3469 = vsel %vm3380, %v3279, %v3468
      %3470 = vst [vmem:[%s378 + $0x1d] sm:$0x1] %v3469
      %v3471 = vld [vmem:[%s378 + $0x1e] sm:$0x1]
      %v3472 = vsel %vm3380, %v3280, %v3471
      %3473 = vst [vmem:[%s378 + $0x1e] sm:$0x1] %v3472
      %v3474 = vld [vmem:[%s378 + $0x1f] sm:$0x1]
      %v3475 = vsel %vm3380, %v3281, %v3474
      %3476 = vst [vmem:[%s378 + $0x1f] sm:$0x1] %v3475
      %v3477 = vld [vmem:[%s378 + $0x20] sm:$0x1]
      %v3478 = vsel %vm3380, %v3282, %v3477
      %3479 = vst [vmem:[%s378 + $0x20] sm:$0x1] %v3478
      %v3480 = vld [vmem:[%s378 + $0x21] sm:$0x1]
      %v3481 = vsel %vm3380, %v3283, %v3480
      %3482 = vst [vmem:[%s378 + $0x21] sm:$0x1] %v3481
      %v3483 = vld [vmem:[%s378 + $0x22] sm:$0x1]
      %v3484 = vsel %vm3380, %v3284, %v3483
      %3485 = vst [vmem:[%s378 + $0x22] sm:$0x1] %v3484
      %v3486 = vld [vmem:[%s378 + $0x23] sm:$0x1]
      %v3487 = vsel %vm3380, %v3285, %v3486
      %3488 = vst [vmem:[%s378 + $0x23] sm:$0x1] %v3487
      %v3489 = vld [vmem:[%s378 + $0x24] sm:$0x1]
      %v3490 = vsel %vm3380, %v3286, %v3489
      %3491 = vst [vmem:[%s378 + $0x24] sm:$0x1] %v3490
      %v3492 = vld [vmem:[%s378 + $0x25] sm:$0x1]
      %v3493 = vsel %vm3380, %v3287, %v3492
      %3494 = vst [vmem:[%s378 + $0x25] sm:$0x1] %v3493
      %v3495 = vld [vmem:[%s378 + $0x26] sm:$0x1]
      %v3496 = vsel %vm3380, %v3288, %v3495
      %3497 = vst [vmem:[%s378 + $0x26] sm:$0x1] %v3496
      %v3498 = vld [vmem:[%s378 + $0x27] sm:$0x1]
      %v3499 = vsel %vm3380, %v3289, %v3498
      %3500 = vst [vmem:[%s378 + $0x27] sm:$0x1] %v3499
      %v3501 = vld [vmem:[%s378 + $0x28] sm:$0x1]
      %v3502 = vsel %vm3380, %v3290, %v3501
      %3503 = vst [vmem:[%s378 + $0x28] sm:$0x1] %v3502
      %v3504 = vld [vmem:[%s378 + $0x29] sm:$0x1]
      %v3505 = vsel %vm3380, %v3291, %v3504
      %3506 = vst [vmem:[%s378 + $0x29] sm:$0x1] %v3505
      %v3507 = vld [vmem:[%s378 + $0x2a] sm:$0x1]
      %v3508 = vsel %vm3380, %v3292, %v3507
      %3509 = vst [vmem:[%s378 + $0x2a] sm:$0x1] %v3508
      %v3510 = vld [vmem:[%s378 + $0x2b] sm:$0x1]
      %v3511 = vsel %vm3380, %v3293, %v3510
      %3512 = vst [vmem:[%s378 + $0x2b] sm:$0x1] %v3511
      %v3513 = vld [vmem:[%s378 + $0x2c] sm:$0x1]
      %v3514 = vsel %vm3380, %v3294, %v3513
      %3515 = vst [vmem:[%s378 + $0x2c] sm:$0x1] %v3514
      %v3516 = vld [vmem:[%s378 + $0x2d] sm:$0x1]
      %v3517 = vsel %vm3380, %v3295, %v3516
      %3518 = vst [vmem:[%s378 + $0x2d] sm:$0x1] %v3517
      %v3519 = vld [vmem:[%s378 + $0x2e] sm:$0x1]
      %v3520 = vsel %vm3380, %v3296, %v3519
      %3521 = vst [vmem:[%s378 + $0x2e] sm:$0x1] %v3520
      %v3522 = vld [vmem:[%s378 + $0x2f] sm:$0x1]
      %v3523 = vsel %vm3380, %v3297, %v3522
      %3524 = vst [vmem:[%s378 + $0x2f] sm:$0x1] %v3523
      %v3525 = vld [vmem:[%s378 + $0x30] sm:$0x1]
      %v3526 = vsel %vm3380, %v3298, %v3525
      %3527 = vst [vmem:[%s378 + $0x30] sm:$0x1] %v3526
      %v3528 = vld [vmem:[%s378 + $0x31] sm:$0x1]
      %v3529 = vsel %vm3380, %v3299, %v3528
      %3530 = vst [vmem:[%s378 + $0x31] sm:$0x1] %v3529
      %v3531 = vld [vmem:[%s378 + $0x32] sm:$0x1]
      %v3532 = vsel %vm3380, %v3300, %v3531
      %3533 = vst [vmem:[%s378 + $0x32] sm:$0x1] %v3532
      %v3534 = vld [vmem:[%s378 + $0x33] sm:$0x1]
      %v3535 = vsel %vm3380, %v3301, %v3534
      %3536 = vst [vmem:[%s378 + $0x33] sm:$0x1] %v3535
      %v3537 = vld [vmem:[%s378 + $0x34] sm:$0x1]
      %v3538 = vsel %vm3380, %v3302, %v3537
      %3539 = vst [vmem:[%s378 + $0x34] sm:$0x1] %v3538
      %v3540 = vld [vmem:[%s378 + $0x35] sm:$0x1]
      %v3541 = vsel %vm3380, %v3303, %v3540
      %3542 = vst [vmem:[%s378 + $0x35] sm:$0x1] %v3541
      %v3543 = vld [vmem:[%s378 + $0x36] sm:$0x1]
      %v3544 = vsel %vm3380, %v3304, %v3543
      %3545 = vst [vmem:[%s378 + $0x36] sm:$0x1] %v3544
      %v3546 = vld [vmem:[%s378 + $0x37] sm:$0x1]
      %v3547 = vsel %vm3380, %v3305, %v3546
      %3548 = vst [vmem:[%s378 + $0x37] sm:$0x1] %v3547
      %v3549 = vld [vmem:[%s378 + $0x38] sm:$0x1]
      %v3550 = vsel %vm3380, %v3306, %v3549
      %3551 = vst [vmem:[%s378 + $0x38] sm:$0x1] %v3550
      %v3552 = vld [vmem:[%s378 + $0x39] sm:$0x1]
      %v3553 = vsel %vm3380, %v3307, %v3552
      %3554 = vst [vmem:[%s378 + $0x39] sm:$0x1] %v3553
      %v3555 = vld [vmem:[%s378 + $0x3a] sm:$0x1]
      %v3556 = vsel %vm3380, %v3308, %v3555
      %3557 = vst [vmem:[%s378 + $0x3a] sm:$0x1] %v3556
      %v3558 = vld [vmem:[%s378 + $0x3b] sm:$0x1]
      %v3559 = vsel %vm3380, %v3309, %v3558
      %3560 = vst [vmem:[%s378 + $0x3b] sm:$0x1] %v3559
      %v3561 = vld [vmem:[%s378 + $0x3c] sm:$0x1]
      %v3562 = vsel %vm3380, %v3310, %v3561
      %3563 = vst [vmem:[%s378 + $0x3c] sm:$0x1] %v3562
      %v3564 = vld [vmem:[%s378 + $0x3d] sm:$0x1]
      %v3565 = vsel %vm3380, %v3311, %v3564
      %3566 = vst [vmem:[%s378 + $0x3d] sm:$0x1] %v3565
      %v3567 = vld [vmem:[%s378 + $0x3e] sm:$0x1]
      %v3568 = vsel %vm3380, %v3312, %v3567
      %3569 = vst [vmem:[%s378 + $0x3e] sm:$0x1] %v3568
      %v3570 = vld [vmem:[%s378 + $0x3f] sm:$0x1]
      %v3571 = vsel %vm3380, %v3313, %v3570
      %3572 = vst [vmem:[%s378 + $0x3f] sm:$0x1] %v3571
      %s3573 = smul.u32 64, %s24
      %p3574 = scmp.lt.s32.totalorder %s23, 1
      %s3575 = scalar_select %p3574, %s23, 1
      %p3576 = scmp.lt.s32.totalorder %s3573, 63
      %s3577 = scalar_select %p3576, %s3573, 63
      %p3578 = scmp.lt.s32.totalorder %s21, 0
      %s3579 = scalar_select %p3578, %s21, 0
      %p3580 = scmp.lt.s32.totalorder %s22, 0
      %s3581 = scalar_select %p3580, %s22, 0
      %s3582 = sadd.s32 %s3581, %s3579
      %s3583 = sadd.s32 %s3582, %s3577
      %s3584 = smul.addr %s3575, 64
      %s3585 = sadd.s32 %s3583, %s3584
      %s3586 = scalar_lea.vmem %s4, %s3585
      // Predicated region
      $region37: #{tpu_custom_call.1} parent=35 // pred_check
        %p3587 = pneg %p183
      $region38: #{tpu_custom_call.1} parent=35 // pred_check_branch
        %3589 = sbr.rel (%p3587) target = $region40
      $region39: #{tpu_custom_call.1} parent=35 // pred_region
        %s3590 = smul.u32 64, %s24
      $region40: #{tpu_custom_call.1} parent=35 // pred_fallthru
        _
    $region36: #{tpu_custom_call.1} parent=5 // pred_fallthru
      _
    %p3591 = scmp.le.s32.totalorder 2, %s10
    // Predicated region
    $region41: #{tpu_custom_call.1} parent=5 // pred_check
      %p3592 = pneg %p3591
    $region42: #{tpu_custom_call.1} parent=5 // pred_check_branch
      %3594 = sbr.rel (%p3592) target = $region44
    $region43: #{tpu_custom_call.1} parent=5 // pred_region
      %s3595 = ssub.s32 %s10, 2
      // Predicated region
      $region45: #{tpu_custom_call.1} parent=43 // pred_check
        %p3596 = pneg %p189
      $region46: #{tpu_custom_call.1} parent=43 // pred_check_branch
        %3598 = sbr.rel (%p3596) target = $region48
      $region47: #{tpu_custom_call.1} parent=43 // pred_region
        %s3599 = smul.u32 64, %s28
        %p3600 = scmp.lt.s32.totalorder %s27, 1
        %s3601 = scalar_select %p3600, %s27, 1
        %p3602 = scmp.lt.s32.totalorder %s3599, 63
        %s3603 = scalar_select %p3602, %s3599, 63
        %p3604 = scmp.lt.s32.totalorder %s25, 0
        %s3605 = scalar_select %p3604, %s25, 0
        %p3606 = scmp.lt.s32.totalorder %s26, 0
        %s3607 = scalar_select %p3606, %s26, 0
        %s3608 = sadd.s32 %s3607, %s3605
        %s3609 = sadd.s32 %s3608, %s3603
        %s3610 = smul.addr %s3601, 64
        %s3611 = sadd.s32 %s3609, %s3610
        %s3612 = scalar_lea.vmem %s4, %s3611
      $region48: #{tpu_custom_call.1} parent=43 // pred_fallthru
        _
    $region44: #{tpu_custom_call.1} parent=5 // pred_fallthru
      _
  $region6: #{tpu_custom_call.1} parent=0 // loop_footer
    %s14 = sadd.s32 1, %s10
  $region7: #{tpu_custom_call.1} parent=0 // loop_footer_branch
    %9 = sbr.rel target = $region3
  $region8: #{tpu_custom_call.1} parent=0 // loop_exit
    _

</llo_original>
